<compile_context>
chip_gen: v6e
topology: v6e:2x2x1
jax: 0.10.0
libtpu: 0.0.40
codegen_flags: <defaults>
</compile_context>

<pallas_src>
import jax
import jax.numpy as jnp
from jax.experimental import pallas as pl
from jax.experimental.pallas import tpu as pltpu

_VMEM_LIMIT = 32 * 1024 * 1024  # explicit scoped-VMEM request, safe on v5e/v6e/v7x


def _pick_tile_h(ho, wo, cap_rows=512):
    """Largest divisor of `ho` with tile_h*wo <= cap_rows and a multiple of 8."""
    for d in range(ho, 0, -1):
        if ho % d == 0 and d * wo <= cap_rows and (d * wo) % 8 == 0:
            return d
    return ho  # fallback: one tile per image


def _pick_tile_m(m, cap_rows=1024):
    """Largest divisor of `m` that is <= cap_rows and a multiple of 8 (or m)."""
    for d in range(min(m, cap_rows), 0, -1):
        if m % d == 0 and (d % 8 == 0 or d == m):
            return d
    return m


def _make_conv_stats_kernel(kh, kw, stride, tile_h, wo, cout_pad):
    """Pass 1: conv via shifted-matmul accumulation + per-channel sum / sumsq."""
    rows = tile_h * wo

    def kernel(xp_ref, w_ref, y_ref, sum_ref, ssq_ref):
        n = pl.program_id(0)
        t = pl.program_id(1)

        @pl.when((n == 0) & (t == 0))
        def _init():
            sum_ref[...] = jnp.zeros_like(sum_ref)
            ssq_ref[...] = jnp.zeros_like(ssq_ref)

        row0 = t * (tile_h * stride)  # first padded input row for this h-tile
        acc = jnp.zeros((rows, cout_pad), jnp.float32)
        for i in range(kh):
            for j in range(kw):
                if stride == 1:
                    r_sl = pl.ds(row0 + i, tile_h)
                    c_sl = pl.ds(j, wo)
                else:
                    r_sl = pl.ds(row0 + i, tile_h, stride=stride)
                    c_sl = pl.ds(j, wo, stride=stride)
                xs = xp_ref[0, r_sl, c_sl, :]                  # (tile_h, wo, Cin)
                xs = xs.reshape(rows, xs.shape[-1]).astype(w_ref.dtype)
                acc = acc + jnp.dot(xs, w_ref[i, j, :, :],
                                    preferred_element_type=jnp.float32)

        y_ref[...] = acc.astype(y_ref.dtype)
        sum_ref[...] += jnp.sum(acc, axis=0, keepdims=True)
        ssq_ref[...] += jnp.sum(acc * acc, axis=0, keepdims=True)

    return kernel


def _make_bn_act_kernel(act):
    """Pass 2: fused BN scale+shift and activation (elementwise, M-tiled)."""

    def kernel(y_ref, scale_ref, shift_ref, o_ref):
        z = y_ref[...] * scale_ref[...] + shift_ref[...]
        if act == "hardswish":
            z = z * jnp.clip(z + 3.0, 0.0, 6.0) * (1.0 / 6.0)
        elif act == "relu":
            z = jnp.maximum(z, 0.0)
        o_ref[...] = z.astype(o_ref.dtype)

    return kernel


def conv_bn_layer(x, weight, bias, gamma, beta, *, stride=1, padding=1,
                  if_act=True, act="hardswish", eps=1e-5,
                  mxu_dtype=jnp.bfloat16):
    """ConvBNLayer forward (groups=1). x: (N, Cin, H, W) NCHW float32."""
    # TODO(synk): grouped / depthwise convolution (groups > 1) is not implemented.
    N, Cin, H, W = x.shape
    Cout, Cin_w, kh, kw = weight.shape
    assert Cin == Cin_w, "only groups=1 is implemented"

    Ho = (H + 2 * padding - kh) // stride + 1
    Wo = (W + 2 * padding - kw) // stride + 1
    M = N * Ho * Wo
    Cout_pad = ((Cout + 127) // 128) * 128  # lane-dense output channels

    # ---- glue: single layout change (no im2col), spatial zero-padding ----
    xp = jnp.transpose(x, (0, 2, 3, 1))                               # NHWC
    xp = jnp.pad(xp, ((0, 0), (padding, padding), (padding, padding), (0, 0)))
    Hp, Wp = H + 2 * padding, W + 2 * padding

    # Weight -> (kh, kw, Cin, Cout_pad), bf16 for the MXU, zero-padded lanes.
    w = jnp.transpose(weight, (2, 3, 1, 0))
    w = jnp.pad(w, ((0, 0), (0, 0), (0, 0), (0, Cout_pad - Cout))).astype(mxu_dtype)

    # Conv bias intentionally ignored: train-mode BN cancels it exactly.
    del bias

    tile_h = _pick_tile_h(Ho, Wo)
    n_ht = Ho // tile_h
    tile_rows = tile_h * Wo
    # TODO(synk): for very large H*W, additionally tile the per-sample input
    # slab over H (overlapping halo via manual DMA) instead of keeping the
    # whole padded image resident in VMEM.

    # ---------------- pass 1: conv + channel statistics ----------------
    conv_kernel = _make_conv_stats_kernel(kh, kw, stride, tile_h, Wo, Cout_pad)
    y, csum, cssq = pl.pallas_call(
        conv_kernel,
        out_shape=(
            jax.ShapeDtypeStruct((M, Cout_pad), jnp.float32),
            jax.ShapeDtypeStruct((1, Cout_pad), jnp.float32),
            jax.ShapeDtypeStruct((1, Cout_pad), jnp.float32),
        ),
        grid=(N, n_ht),
        in_specs=[
            pl.BlockSpec((1, Hp, Wp, Cin), lambda n, t: (n, 0, 0, 0)),
            pl.BlockSpec((kh, kw, Cin, Cout_pad), lambda n, t: (0, 0, 0, 0)),
        ],
        out_specs=(
            pl.BlockSpec((tile_rows, Cout_pad), lambda n, t: (n * n_ht + t, 0)),
            pl.BlockSpec((1, Cout_pad), lambda n, t: (0, 0)),
            pl.BlockSpec((1, Cout_pad), lambda n, t: (0, 0)),
        ),
        compiler_params=pltpu.CompilerParams(
            dimension_semantics=("arbitrary", "arbitrary"),
            vmem_limit_bytes=_VMEM_LIMIT),
    )(xp, w)

    # -------- finalize BN: fused per-channel scale + shift (tiny, in XLA) ----
    mean = csum * (1.0 / M)
    var = jnp.maximum(cssq * (1.0 / M) - mean * mean, 0.0)
    inv_std = jax.lax.rsqrt(var + eps)
    gamma_p = jnp.pad(gamma, (0, Cout_pad - Cout)).reshape(1, Cout_pad)
    beta_p = jnp.pad(beta, (0, Cout_pad - Cout)).reshape(1, Cout_pad)
    scale = (gamma_p * inv_std).astype(jnp.float32)
    shift = (beta_p - mean * gamma_p * inv_std).astype(jnp.float32)

    # ---------------- pass 2: normalize + activation ----------------
    tile_m = _pick_tile_m(M)
    act_kernel = _make_bn_act_kernel(act if if_act else None)
    out2d = pl.pallas_call(
        act_kernel,
        out_shape=jax.ShapeDtypeStruct((M, Cout_pad), x.dtype),
        grid=(M // tile_m,),
        in_specs=[
            pl.BlockSpec((tile_m, Cout_pad), lambda i: (i, 0)),
            pl.BlockSpec((1, Cout_pad), lambda i: (0, 0)),
            pl.BlockSpec((1, Cout_pad), lambda i: (0, 0)),
        ],
        out_specs=pl.BlockSpec((tile_m, Cout_pad), lambda i: (i, 0)),
        compiler_params=pltpu.CompilerParams(
            dimension_semantics=("parallel",),
            vmem_limit_bytes=_VMEM_LIMIT),
    )(y, scale, shift)

    # back to NCHW, dropping padded channels
    out = out2d[:, :Cout].reshape(N, Ho, Wo, Cout)
    return jnp.transpose(out, (0, 3, 1, 2))


def _reference(x, weight, bias, gamma, beta, stride, padding, eps=1e-5):
    y = jax.lax.conv_general_dilated(
        x, weight, window_strides=(stride, stride),
        padding=[(padding, padding), (padding, padding)],
        dimension_numbers=("NCHW", "OIHW", "NCHW"))
    y = y + bias[None, :, None, None]
    mean = jnp.mean(y, axis=(0, 2, 3), keepdims=True)
    var = jnp.mean((y - mean) ** 2, axis=(0, 2, 3), keepdims=True)
    y = (y - mean) / jnp.sqrt(var + eps)
    y = y * gamma[None, :, None, None] + beta[None, :, None, None]
    return y * jnp.clip(y + 3.0, 0.0, 6.0) / 6.0


if __name__ == "__main__":
    # ConvBNLayer(in_channels=4, out_channels=8, kernel_size=3, stride=1,
    #             padding=1, groups=1, if_act=True, act='hardswish')
    N, Cin, H, W = 2, 4, 16, 16
    Cout, k, stride, padding = 8, 3, 1, 1

    key = jax.random.PRNGKey(0)
    kx, kw_, kb, kg, kbeta = jax.random.split(key, 5)
    x = jax.random.normal(kx, (N, Cin, H, W), dtype=jnp.float32)
    weight = 0.1 * jax.random.normal(kw_, (Cout, Cin, k, k), dtype=jnp.float32)
    bias = 0.1 * jax.random.normal(kb, (Cout,), dtype=jnp.float32)
    gamma = 1.0 + 0.1 * jax.random.normal(kg, (Cout,), dtype=jnp.float32)
    beta = 0.1 * jax.random.normal(kbeta, (Cout,), dtype=jnp.float32)

    out = conv_bn_layer(x, weight, bias, gamma, beta,
                        stride=stride, padding=padding)
    out = jax.block_until_ready(out)

    ref = _reference(x, weight, bias, gamma, beta, stride, padding)
    assert out.shape == (N, Cout, H, W)
    # bf16 MXU operands (f32 accumulation) vs f32 reference -> loose tolerance.
    assert jnp.allclose(out, ref, atol=3e-2, rtol=3e-2), "mismatch vs reference"

    print("KERNEL_OK")
</pallas_src>

<mosaic_0001>
module attributes {stable_mosaic.version = 11 : i64} {
  func.func @kernel(%arg0: i32, %arg1: i32, %arg2: memref<1x18x18x4xf32, #tpu.memory_space<vmem>>, %arg3: memref<3x3x4x128xbf16, #tpu.memory_space<vmem>>, %arg4: memref<256x128xf32, #tpu.memory_space<vmem>>, %arg5: memref<1x128xf32, #tpu.memory_space<vmem>>, %arg6: memref<1x128xf32, #tpu.memory_space<vmem>>) attributes {dimension_semantics = [#tpu.dimension_semantics<arbitrary>, #tpu.dimension_semantics<arbitrary>], iteration_bounds = array<i64: 2, 1>, scalar_prefetch = 0 : i64, scratch_operands = 0 : i64, tpu.core_type = #tpu.core_type<tc>, window_params = [{transform_indices = @transform_0, window_bounds = array<i64: 1, 18, 18, 4>}, {pipeline_mode = #tpu.pipeline_mode<synchronous>, transform_indices = @transform_1, window_bounds = array<i64: 3, 3, 4, 128>}, {transform_indices = @transform_2, window_bounds = array<i64: 256, 128>}, {pipeline_mode = #tpu.pipeline_mode<synchronous>, transform_indices = @transform_3, window_bounds = array<i64: 1, 128>}, {pipeline_mode = #tpu.pipeline_mode<synchronous>, transform_indices = @transform_4, window_bounds = array<i64: 1, 128>}]} {
    %c0_i32 = arith.constant 0 : i32
    %0 = arith.cmpi eq, %arg0, %c0_i32 : i32
    %c0_i32_0 = arith.constant 0 : i32
    %1 = arith.cmpi eq, %arg1, %c0_i32_0 : i32
    %2 = arith.andi %0, %1 : i1
    %3 = arith.extui %2 : i1 to i32
    %c0_i32_1 = arith.constant 0 : i32
    %4 = arith.cmpi ne, %3, %c0_i32_1 : i32
    scf.if %4 {
      %cst_90 = arith.constant 0.000000e+00 : f32
      %109 = vector.broadcast %cst_90 : f32 to vector<1x128xf32>
      %c0_91 = arith.constant 0 : index
      %c0_92 = arith.constant 0 : index
      %110 = vector.load %arg5[%c0_91, %c0_92] : memref<1x128xf32, #tpu.memory_space<vmem>>, vector<1x128xf32>
      tpu.vector_store %arg5[%c0_91, %c0_92], %109 {strides = array<i32>} : memref<1x128xf32, #tpu.memory_space<vmem>>, vector<1x128xf32>,
      %cst_93 = arith.constant 0.000000e+00 : f32
      %111 = vector.broadcast %cst_93 : f32 to vector<1x128xf32>
      %c0_94 = arith.constant 0 : index
      %c0_95 = arith.constant 0 : index
      %112 = vector.load %arg6[%c0_94, %c0_95] : memref<1x128xf32, #tpu.memory_space<vmem>>, vector<1x128xf32>
      tpu.vector_store %arg6[%c0_94, %c0_95], %111 {strides = array<i32>} : memref<1x128xf32, #tpu.memory_space<vmem>>, vector<1x128xf32>,
    } else {
    }
    %c16_i32 = arith.constant 16 : i32
    %5 = arith.muli %arg1, %c16_i32 : i32
    %cst = arith.constant 0.000000e+00 : f32
    %6 = vector.broadcast %cst : f32 to vector<256x128xf32>
    %c0_i32_2 = arith.constant 0 : i32
    %7 = arith.addi %5, %c0_i32_2 : i32
    %c0 = arith.constant 0 : index
    %8 = arith.index_cast %7 : i32 to index
    %c0_3 = arith.constant 0 : index
    %c0_4 = arith.constant 0 : index
    %9 = vector.load %arg2[%c0, %8, %c0_3, %c0_4] : memref<1x18x18x4xf32, #tpu.memory_space<vmem>>, vector<1x16x16x4xf32>
    %10 = vector.shape_cast %9 : vector<1x16x16x4xf32> to vector<16x16x4xf32>
    %11 = vector.shape_cast %10 : vector<16x16x4xf32> to vector<256x4xf32>
    %12 = arith.truncf %11 : vector<256x4xf32> to vector<256x4xbf16>
    %c0_5 = arith.constant 0 : index
    %c0_6 = arith.constant 0 : index
    %c0_7 = arith.constant 0 : index
    %c0_8 = arith.constant 0 : index
    %13 = vector.load %arg3[%c0_5, %c0_6, %c0_7, %c0_8] : memref<3x3x4x128xbf16, #tpu.memory_space<vmem>>, vector<1x1x4x128xbf16>
    %14 = vector.shape_cast %13 : vector<1x1x4x128xbf16> to vector<4x128xbf16>
    %cst_9 = arith.constant dense<0.000000e+00> : vector<256x128xf32>
    %15 = tpu.matmul %12, %14, %cst_9 {dimension_numbers = #tpu.dot_dimension_numbers<[1], [0], [0], [1], [0, 0, 1, 1], [], []>} : vector<256x4xbf16>, vector<4x128xbf16>, vector<256x128xf32> -> vector<256x128xf32>
    %16 = arith.addf %6, %15 : vector<256x128xf32>
    %c0_i32_10 = arith.constant 0 : i32
    %17 = arith.addi %5, %c0_i32_10 : i32
    %c0_11 = arith.constant 0 : index
    %18 = arith.index_cast %17 : i32 to index
    %c1 = arith.constant 1 : index
    %c0_12 = arith.constant 0 : index
    %19 = vector.load %arg2[%c0_11, %18, %c1, %c0_12] : memref<1x18x18x4xf32, #tpu.memory_space<vmem>>, vector<1x16x16x4xf32>
    %20 = vector.shape_cast %19 : vector<1x16x16x4xf32> to vector<16x16x4xf32>
    %21 = vector.shape_cast %20 : vector<16x16x4xf32> to vector<256x4xf32>
    %22 = arith.truncf %21 : vector<256x4xf32> to vector<256x4xbf16>
    %c0_13 = arith.constant 0 : index
    %c1_14 = arith.constant 1 : index
    %c0_15 = arith.constant 0 : index
    %c0_16 = arith.constant 0 : index
    %23 = vector.load %arg3[%c0_13, %c1_14, %c0_15, %c0_16] : memref<3x3x4x128xbf16, #tpu.memory_space<vmem>>, vector<1x1x4x128xbf16>
    %24 = vector.shape_cast %23 : vector<1x1x4x128xbf16> to vector<4x128xbf16>
    %cst_17 = arith.constant dense<0.000000e+00> : vector<256x128xf32>
    %25 = tpu.matmul %22, %24, %cst_17 {dimension_numbers = #tpu.dot_dimension_numbers<[1], [0], [0], [1], [0, 0, 1, 1], [], []>} : vector<256x4xbf16>, vector<4x128xbf16>, vector<256x128xf32> -> vector<256x128xf32>
    %26 = arith.addf %16, %25 : vector<256x128xf32>
    %c0_i32_18 = arith.constant 0 : i32
    %27 = arith.addi %5, %c0_i32_18 : i32
    %c0_19 = arith.constant 0 : index
    %28 = arith.index_cast %27 : i32 to index
    %c2 = arith.constant 2 : index
    %c0_20 = arith.constant 0 : index
    %29 = vector.load %arg2[%c0_19, %28, %c2, %c0_20] : memref<1x18x18x4xf32, #tpu.memory_space<vmem>>, vector<1x16x16x4xf32>
    %30 = vector.shape_cast %29 : vector<1x16x16x4xf32> to vector<16x16x4xf32>
    %31 = vector.shape_cast %30 : vector<16x16x4xf32> to vector<256x4xf32>
    %32 = arith.truncf %31 : vector<256x4xf32> to vector<256x4xbf16>
    %c0_21 = arith.constant 0 : index
    %c2_22 = arith.constant 2 : index
    %c0_23 = arith.constant 0 : index
    %c0_24 = arith.constant 0 : index
    %33 = vector.load %arg3[%c0_21, %c2_22, %c0_23, %c0_24] : memref<3x3x4x128xbf16, #tpu.memory_space<vmem>>, vector<1x1x4x128xbf16>
    %34 = vector.shape_cast %33 : vector<1x1x4x128xbf16> to vector<4x128xbf16>
    %cst_25 = arith.constant dense<0.000000e+00> : vector<256x128xf32>
    %35 = tpu.matmul %32, %34, %cst_25 {dimension_numbers = #tpu.dot_dimension_numbers<[1], [0], [0], [1], [0, 0, 1, 1], [], []>} : vector<256x4xbf16>, vector<4x128xbf16>, vector<256x128xf32> -> vector<256x128xf32>
    %36 = arith.addf %26, %35 : vector<256x128xf32>
    %c1_i32 = arith.constant 1 : i32
    %37 = arith.addi %5, %c1_i32 : i32
    %c0_26 = arith.constant 0 : index
    %38 = arith.index_cast %37 : i32 to index
    %c0_27 = arith.constant 0 : index
    %c0_28 = arith.constant 0 : index
    %39 = vector.load %arg2[%c0_26, %38, %c0_27, %c0_28] : memref<1x18x18x4xf32, #tpu.memory_space<vmem>>, vector<1x16x16x4xf32>
    %40 = vector.shape_cast %39 : vector<1x16x16x4xf32> to vector<16x16x4xf32>
    %41 = vector.shape_cast %40 : vector<16x16x4xf32> to vector<256x4xf32>
    %42 = arith.truncf %41 : vector<256x4xf32> to vector<256x4xbf16>
    %c1_29 = arith.constant 1 : index
    %c0_30 = arith.constant 0 : index
    %c0_31 = arith.constant 0 : index
    %c0_32 = arith.constant 0 : index
    %43 = vector.load %arg3[%c1_29, %c0_30, %c0_31, %c0_32] : memref<3x3x4x128xbf16, #tpu.memory_space<vmem>>, vector<1x1x4x128xbf16>
    %44 = vector.shape_cast %43 : vector<1x1x4x128xbf16> to vector<4x128xbf16>
    %cst_33 = arith.constant dense<0.000000e+00> : vector<256x128xf32>
    %45 = tpu.matmul %42, %44, %cst_33 {dimension_numbers = #tpu.dot_dimension_numbers<[1], [0], [0], [1], [0, 0, 1, 1], [], []>} : vector<256x4xbf16>, vector<4x128xbf16>, vector<256x128xf32> -> vector<256x128xf32>
    %46 = arith.addf %36, %45 : vector<256x128xf32>
    %c1_i32_34 = arith.constant 1 : i32
    %47 = arith.addi %5, %c1_i32_34 : i32
    %c0_35 = arith.constant 0 : index
    %48 = arith.index_cast %47 : i32 to index
    %c1_36 = arith.constant 1 : index
    %c0_37 = arith.constant 0 : index
    %49 = vector.load %arg2[%c0_35, %48, %c1_36, %c0_37] : memref<1x18x18x4xf32, #tpu.memory_space<vmem>>, vector<1x16x16x4xf32>
    %50 = vector.shape_cast %49 : vector<1x16x16x4xf32> to vector<16x16x4xf32>
    %51 = vector.shape_cast %50 : vector<16x16x4xf32> to vector<256x4xf32>
    %52 = arith.truncf %51 : vector<256x4xf32> to vector<256x4xbf16>
    %c1_38 = arith.constant 1 : index
    %c1_39 = arith.constant 1 : index
    %c0_40 = arith.constant 0 : index
    %c0_41 = arith.constant 0 : index
    %53 = vector.load %arg3[%c1_38, %c1_39, %c0_40, %c0_41] : memref<3x3x4x128xbf16, #tpu.memory_space<vmem>>, vector<1x1x4x128xbf16>
    %54 = vector.shape_cast %53 : vector<1x1x4x128xbf16> to vector<4x128xbf16>
    %cst_42 = arith.constant dense<0.000000e+00> : vector<256x128xf32>
    %55 = tpu.matmul %52, %54, %cst_42 {dimension_numbers = #tpu.dot_dimension_numbers<[1], [0], [0], [1], [0, 0, 1, 1], [], []>} : vector<256x4xbf16>, vector<4x128xbf16>, vector<256x128xf32> -> vector<256x128xf32>
    %56 = arith.addf %46, %55 : vector<256x128xf32>
    %c1_i32_43 = arith.constant 1 : i32
    %57 = arith.addi %5, %c1_i32_43 : i32
    %c0_44 = arith.constant 0 : index
    %58 = arith.index_cast %57 : i32 to index
    %c2_45 = arith.constant 2 : index
    %c0_46 = arith.constant 0 : index
    %59 = vector.load %arg2[%c0_44, %58, %c2_45, %c0_46] : memref<1x18x18x4xf32, #tpu.memory_space<vmem>>, vector<1x16x16x4xf32>
    %60 = vector.shape_cast %59 : vector<1x16x16x4xf32> to vector<16x16x4xf32>
    %61 = vector.shape_cast %60 : vector<16x16x4xf32> to vector<256x4xf32>
    %62 = arith.truncf %61 : vector<256x4xf32> to vector<256x4xbf16>
    %c1_47 = arith.constant 1 : index
    %c2_48 = arith.constant 2 : index
    %c0_49 = arith.constant 0 : index
    %c0_50 = arith.constant 0 : index
    %63 = vector.load %arg3[%c1_47, %c2_48, %c0_49, %c0_50] : memref<3x3x4x128xbf16, #tpu.memory_space<vmem>>, vector<1x1x4x128xbf16>
    %64 = vector.shape_cast %63 : vector<1x1x4x128xbf16> to vector<4x128xbf16>
    %cst_51 = arith.constant dense<0.000000e+00> : vector<256x128xf32>
    %65 = tpu.matmul %62, %64, %cst_51 {dimension_numbers = #tpu.dot_dimension_numbers<[1], [0], [0], [1], [0, 0, 1, 1], [], []>} : vector<256x4xbf16>, vector<4x128xbf16>, vector<256x128xf32> -> vector<256x128xf32>
    %66 = arith.addf %56, %65 : vector<256x128xf32>
    %c2_i32 = arith.constant 2 : i32
    %67 = arith.addi %5, %c2_i32 : i32
    %c0_52 = arith.constant 0 : index
    %68 = arith.index_cast %67 : i32 to index
    %c0_53 = arith.constant 0 : index
    %c0_54 = arith.constant 0 : index
    %69 = vector.load %arg2[%c0_52, %68, %c0_53, %c0_54] : memref<1x18x18x4xf32, #tpu.memory_space<vmem>>, vector<1x16x16x4xf32>
    %70 = vector.shape_cast %69 : vector<1x16x16x4xf32> to vector<16x16x4xf32>
    %71 = vector.shape_cast %70 : vector<16x16x4xf32> to vector<256x4xf32>
    %72 = arith.truncf %71 : vector<256x4xf32> to vector<256x4xbf16>
    %c2_55 = arith.constant 2 : index
    %c0_56 = arith.constant 0 : index
    %c0_57 = arith.constant 0 : index
    %c0_58 = arith.constant 0 : index
    %73 = vector.load %arg3[%c2_55, %c0_56, %c0_57, %c0_58] : memref<3x3x4x128xbf16, #tpu.memory_space<vmem>>, vector<1x1x4x128xbf16>
    %74 = vector.shape_cast %73 : vector<1x1x4x128xbf16> to vector<4x128xbf16>
    %cst_59 = arith.constant dense<0.000000e+00> : vector<256x128xf32>
    %75 = tpu.matmul %72, %74, %cst_59 {dimension_numbers = #tpu.dot_dimension_numbers<[1], [0], [0], [1], [0, 0, 1, 1], [], []>} : vector<256x4xbf16>, vector<4x128xbf16>, vector<256x128xf32> -> vector<256x128xf32>
    %76 = arith.addf %66, %75 : vector<256x128xf32>
    %c2_i32_60 = arith.constant 2 : i32
    %77 = arith.addi %5, %c2_i32_60 : i32
    %c0_61 = arith.constant 0 : index
    %78 = arith.index_cast %77 : i32 to index
    %c1_62 = arith.constant 1 : index
    %c0_63 = arith.constant 0 : index
    %79 = vector.load %arg2[%c0_61, %78, %c1_62, %c0_63] : memref<1x18x18x4xf32, #tpu.memory_space<vmem>>, vector<1x16x16x4xf32>
    %80 = vector.shape_cast %79 : vector<1x16x16x4xf32> to vector<16x16x4xf32>
    %81 = vector.shape_cast %80 : vector<16x16x4xf32> to vector<256x4xf32>
    %82 = arith.truncf %81 : vector<256x4xf32> to vector<256x4xbf16>
    %c2_64 = arith.constant 2 : index
    %c1_65 = arith.constant 1 : index
    %c0_66 = arith.constant 0 : index
    %c0_67 = arith.constant 0 : index
    %83 = vector.load %arg3[%c2_64, %c1_65, %c0_66, %c0_67] : memref<3x3x4x128xbf16, #tpu.memory_space<vmem>>, vector<1x1x4x128xbf16>
    %84 = vector.shape_cast %83 : vector<1x1x4x128xbf16> to vector<4x128xbf16>
    %cst_68 = arith.constant dense<0.000000e+00> : vector<256x128xf32>
    %85 = tpu.matmul %82, %84, %cst_68 {dimension_numbers = #tpu.dot_dimension_numbers<[1], [0], [0], [1], [0, 0, 1, 1], [], []>} : vector<256x4xbf16>, vector<4x128xbf16>, vector<256x128xf32> -> vector<256x128xf32>
    %86 = arith.addf %76, %85 : vector<256x128xf32>
    %c2_i32_69 = arith.constant 2 : i32
    %87 = arith.addi %5, %c2_i32_69 : i32
    %c0_70 = arith.constant 0 : index
    %88 = arith.index_cast %87 : i32 to index
    %c2_71 = arith.constant 2 : index
    %c0_72 = arith.constant 0 : index
    %89 = vector.load %arg2[%c0_70, %88, %c2_71, %c0_72] : memref<1x18x18x4xf32, #tpu.memory_space<vmem>>, vector<1x16x16x4xf32>
    %90 = vector.shape_cast %89 : vector<1x16x16x4xf32> to vector<16x16x4xf32>
    %91 = vector.shape_cast %90 : vector<16x16x4xf32> to vector<256x4xf32>
    %92 = arith.truncf %91 : vector<256x4xf32> to vector<256x4xbf16>
    %c2_73 = arith.constant 2 : index
    %c2_74 = arith.constant 2 : index
    %c0_75 = arith.constant 0 : index
    %c0_76 = arith.constant 0 : index
    %93 = vector.load %arg3[%c2_73, %c2_74, %c0_75, %c0_76] : memref<3x3x4x128xbf16, #tpu.memory_space<vmem>>, vector<1x1x4x128xbf16>
    %94 = vector.shape_cast %93 : vector<1x1x4x128xbf16> to vector<4x128xbf16>
    %cst_77 = arith.constant dense<0.000000e+00> : vector<256x128xf32>
    %95 = tpu.matmul %92, %94, %cst_77 {dimension_numbers = #tpu.dot_dimension_numbers<[1], [0], [0], [1], [0, 0, 1, 1], [], []>} : vector<256x4xbf16>, vector<4x128xbf16>, vector<256x128xf32> -> vector<256x128xf32>
    %96 = arith.addf %86, %95 : vector<256x128xf32>
    %c0_78 = arith.constant 0 : index
    %c0_79 = arith.constant 0 : index
    %97 = vector.load %arg4[%c0_78, %c0_79] : memref<256x128xf32, #tpu.memory_space<vmem>>, vector<256x128xf32>
    tpu.vector_store %arg4[%c0_78, %c0_79], %96 {strides = array<i32>} : memref<256x128xf32, #tpu.memory_space<vmem>>, vector<256x128xf32>,
    %c0_80 = arith.constant 0 : index
    %c0_81 = arith.constant 0 : index
    %98 = vector.load %arg5[%c0_80, %c0_81] : memref<1x128xf32, #tpu.memory_space<vmem>>, vector<1x128xf32>
    %cst_82 = arith.constant dense<0.000000e+00> : vector<128xf32>
    %99 = vector.multi_reduction <add>, %96, %cst_82 [0] : vector<256x128xf32> to vector<128xf32>
    %100 = vector.shape_cast %99 : vector<128xf32> to vector<1x128xf32>
    %101 = arith.addf %98, %100 : vector<1x128xf32>
    %c0_83 = arith.constant 0 : index
    %c0_84 = arith.constant 0 : index
    %102 = vector.load %arg5[%c0_83, %c0_84] : memref<1x128xf32, #tpu.memory_space<vmem>>, vector<1x128xf32>
    tpu.vector_store %arg5[%c0_83, %c0_84], %101 {strides = array<i32>} : memref<1x128xf32, #tpu.memory_space<vmem>>, vector<1x128xf32>,
    %c0_85 = arith.constant 0 : index
    %c0_86 = arith.constant 0 : index
    %103 = vector.load %arg6[%c0_85, %c0_86] : memref<1x128xf32, #tpu.memory_space<vmem>>, vector<1x128xf32>
    %104 = arith.mulf %96, %96 : vector<256x128xf32>
    %cst_87 = arith.constant dense<0.000000e+00> : vector<128xf32>
    %105 = vector.multi_reduction <add>, %104, %cst_87 [0] : vector<256x128xf32> to vector<128xf32>
    %106 = vector.shape_cast %105 : vector<128xf32> to vector<1x128xf32>
    %107 = arith.addf %103, %106 : vector<1x128xf32>
    %c0_88 = arith.constant 0 : index
    %c0_89 = arith.constant 0 : index
    %108 = vector.load %arg6[%c0_88, %c0_89] : memref<1x128xf32, #tpu.memory_space<vmem>>, vector<1x128xf32>
    tpu.vector_store %arg6[%c0_88, %c0_89], %107 {strides = array<i32>} : memref<1x128xf32, #tpu.memory_space<vmem>>, vector<1x128xf32>,
    return
  }
  func.func @transform_0(%arg0: i32, %arg1: i32) -> (i32, i32, i32, i32) {
    %c0_i32 = arith.constant 0 : i32
    %c0_i32_0 = arith.constant 0 : i32
    %c0_i32_1 = arith.constant 0 : i32
    %c0_i32_2 = arith.constant 0 : i32
    return %arg0, %c0_i32, %c0_i32_0, %c0_i32_1 : i32, i32, i32, i32
  }
  func.func @transform_1(%arg0: i32, %arg1: i32) -> (i32, i32, i32, i32) {
    %c0_i32 = arith.constant 0 : i32
    %c0_i32_0 = arith.constant 0 : i32
    %c0_i32_1 = arith.constant 0 : i32
    %c0_i32_2 = arith.constant 0 : i32
    %c0_i32_3 = arith.constant 0 : i32
    return %c0_i32, %c0_i32_0, %c0_i32_1, %c0_i32_2 : i32, i32, i32, i32
  }
  func.func @transform_2(%arg0: i32, %arg1: i32) -> (i32, i32) {
    %c1_i32 = arith.constant 1 : i32
    %0 = arith.muli %arg0, %c1_i32 : i32
    %1 = arith.addi %0, %arg1 : i32
    %c0_i32 = arith.constant 0 : i32
    %c0_i32_0 = arith.constant 0 : i32
    return %1, %c0_i32 : i32, i32
  }
  func.func @transform_3(%arg0: i32, %arg1: i32) -> (i32, i32) {
    %c0_i32 = arith.constant 0 : i32
    %c0_i32_0 = arith.constant 0 : i32
    %c0_i32_1 = arith.constant 0 : i32
    return %c0_i32, %c0_i32_0 : i32, i32
  }
  func.func @transform_4(%arg0: i32, %arg1: i32) -> (i32, i32) {
    %c0_i32 = arith.constant 0 : i32
    %c0_i32_0 = arith.constant 0 : i32
    %c0_i32_1 = arith.constant 0 : i32
    return %c0_i32, %c0_i32_0 : i32, i32
  }
}

</mosaic_0001>

<llo_original>
// kernel: tpu_custom_call.1
$region0: #{tpu_custom_call.1}
  #allocation0 [shape = 'u32[]', space=smem, size = 0x4, offset = 0x4, fixed_abs, tag = 'smem constant byte address 0x4 - core index']
  #allocation1 [shape = 'u32[144,128]{1,0:T(1,128)}', space=vmem, size = 0x12000, scoped, tag = 'internal scratch']
  %s0 = inlined_call_operand.vmem [shape: f32[2,18,18,4], index: 0, kind: input, shape index: {}]
  %s1 = inlined_call_operand.vmem [shape: bf16[3,3,4,128], index: 1, kind: input, shape index: {}]
  %s2 = inlined_call_operand.hbm [shape: f32[512,128], index: 2, kind: output, shape index: {0}]
  %s3 = inlined_call_operand.hbm [shape: f32[1,128], index: 3, kind: output, shape index: {1}]
  %s4 = inlined_call_operand.hbm [shape: f32[1,128], index: 4, kind: output, shape index: {2}]
  %5 = xla_tuple %s2, %s3, %s4
  %s6 = sld [smem:[#allocation0]]
  $region61: #{tpu_custom_call.1} parent=0
    _
  %s8 = ssub.s32 1, %s6
  %s9 = scalar_select 0, %s8, %s6
  $region1: #{tpu_custom_call.1} parent=0
    #allocation2 [shape = 'u8[262144]{0}', space=vmem, size = 0x40000, scoped, tag = 'output window, operand 0']
    #allocation3 [shape = 's32[2]{0}', space=sflag, size = 0x8, scoped, tag = 'scoped memory for tpu_custom_call.1']
    #allocation4 [shape = 'u8[512]{0}', space=vmem, size = 0x400, scoped, tag = 'output window, operand 1, single buffered']
    #allocation5 [shape = 's32[1]{0}', space=sflag, size = 0x4, scoped, tag = 'scoped memory for tpu_custom_call.1']
    #allocation6 [shape = 'u8[512]{0}', space=vmem, size = 0x400, scoped, tag = 'output window, operand 2, single buffered']
    %10 = vsyncpa [#allocation3], 0
    %s11 = scalar_lea.sflag [#allocation3], 1
    %12 = vsyncpa %s11, 0
    %13 = vsyncpa [#allocation5], 0
    loop: start=0, step=1, limit=4
    $region2: #{tpu_custom_call.1} parent=1 // loop_pre_header
      _
    $region3: #{tpu_custom_call.1} parent=1 // loop_header
      %s15 = sphi 0, %s19
      %p16 = scmp.ge.s32.totalorder %s15, 4
      %s22 = sphi 0, %s34
      %s23 = sphi 0, %s30
      %s24 = sphi 0, %s22
      %s25 = sphi 0, %s23
      %s26 = sphi 0, %s24
      %s27 = sphi 0, %s25
      %s37 = sphi 0, %s39
      %s40 = sphi 0, %s37
      %s41 = sphi 0, %s40
      %s57 = sphi 0, %s41
      %s61 = sphi 0, %s61
      %s63 = sphi 0, %s61
      %s64 = sphi 0, %s63
      %s78 = sphi 0, %s64
      %s86 = sphi 0, %s88
      %s89 = sphi 0, %s86
      %s90 = sphi 0, %s89
      %s106 = sphi 0, %s90
      %s110 = sphi 0, %s110
      %s112 = sphi 0, %s110
      %s113 = sphi 0, %s112
      %s127 = sphi 0, %s113
      %s131 = sphi 0, %s131
      %s133 = sphi 0, %s131
      %s134 = sphi 0, %s133
      %s148 = sphi 0, %s134
    $region4: #{tpu_custom_call.1} parent=1 // loop_header_branch
      %18 = sbr.rel (%p16) target = $region8
    $region5: #{tpu_custom_call.1} parent=1 // loop_body
      %s20 = ssub.s32 %s15, 1
      %s21 = ssub.s32 %s15, 2
      %s28 = sadd.s32 1, %s23
      %p29 = scmp.ge.s32.totalorder %s28, 1
      %s30 = scalar_select %p29, 0, %s28
      %s31 = sadd.s32 1, %s22
      %s32 = scalar_select %p29, %s31, %s22
      %p33 = scmp.ge.s32.totalorder %s32, 2
      %s34 = scalar_select %p33, 0, %s32
      %s35 = ssub.s32 %s22, %s34
      %p36 = scmp.eq.s32.totalorder %s35, 0
      %s38 = sadd.s32 %s37, 1
      %s39 = scalar_select %p36, %s37, %s38
      %p42 = pneg %p36
      %p43 = scmp.eq.s32.totalorder %s15, 1
      %p44 = por %p42, %p43
      %p45 = scmp.ne.s32.totalorder %s37, %s40
      %p46 = scmp.eq.s32.totalorder %s15, 0
      %p47 = por %p45, %p46
      %p48 = scmp.ne.s32.totalorder %s37, %s40
      %p49 = scmp.eq.s32.totalorder %s20, 1
      %p50 = por %p48, %p49
      %p51 = scmp.ne.s32.totalorder %s40, %s41
      %p52 = scmp.eq.s32.totalorder %s20, 0
      %p53 = por %p51, %p52
      %p54 = scmp.ne.s32.totalorder %s40, %s41
      %p55 = scmp.eq.s32.totalorder %s21, 1
      %p56 = por %p54, %p55
      %p58 = scmp.ne.s32.totalorder %s41, %s57
      %p59 = scmp.eq.s32.totalorder %s21, 0
      %p60 = por %p58, %p59
      %s62 = sadd.s32 %s61, 1
      %p65 = scmp.eq.s32.totalorder %s15, 1
      %p66 = scmp.ne.s32.totalorder %s61, %s63
      %p67 = scmp.eq.s32.totalorder %s15, 0
      %p68 = por %p66, %p67
      %p69 = scmp.ne.s32.totalorder %s61, %s63
      %p70 = scmp.eq.s32.totalorder %s20, 1
      %p71 = por %p69, %p70
      %p72 = scmp.ne.s32.totalorder %s63, %s64
      %p73 = scmp.eq.s32.totalorder %s20, 0
      %p74 = por %p72, %p73
      %p75 = scmp.ne.s32.totalorder %s63, %s64
      %p76 = scmp.eq.s32.totalorder %s21, 1
      %p77 = por %p75, %p76
      %p79 = scmp.ne.s32.totalorder %s64, %s78
      %p80 = scmp.eq.s32.totalorder %s21, 0
      %p81 = por %p79, %p80
      %s82 = sadd.s32 %s22, %s23
      %s83 = sadd.s32 %s34, %s30
      %s84 = ssub.s32 %s82, %s83
      %p85 = scmp.eq.s32.totalorder %s84, 0
      %s87 = sadd.s32 %s86, 1
      %s88 = scalar_select %p85, %s86, %s87
      %p91 = pneg %p85
      %p92 = scmp.eq.s32.totalorder %s15, 1
      %p93 = por %p91, %p92
      %p94 = scmp.ne.s32.totalorder %s86, %s89
      %p95 = scmp.eq.s32.totalorder %s15, 0
      %p96 = por %p94, %p95
      %p97 = scmp.ne.s32.totalorder %s86, %s89
      %p98 = scmp.eq.s32.totalorder %s20, 1
      %p99 = por %p97, %p98
      %p100 = scmp.ne.s32.totalorder %s89, %s90
      %p101 = scmp.eq.s32.totalorder %s20, 0
      %p102 = por %p100, %p101
      %p103 = scmp.ne.s32.totalorder %s89, %s90
      %p104 = scmp.eq.s32.totalorder %s21, 1
      %p105 = por %p103, %p104
      %p107 = scmp.ne.s32.totalorder %s90, %s106
      %p108 = scmp.eq.s32.totalorder %s21, 0
      %p109 = por %p107, %p108
      %s111 = sadd.s32 %s110, 1
      %p114 = scmp.eq.s32.totalorder %s15, 1
      %p115 = scmp.ne.s32.totalorder %s110, %s112
      %p116 = scmp.eq.s32.totalorder %s15, 0
      %p117 = por %p115, %p116
      %p118 = scmp.ne.s32.totalorder %s110, %s112
      %p119 = scmp.eq.s32.totalorder %s20, 1
      %p120 = por %p118, %p119
      %p121 = scmp.ne.s32.totalorder %s112, %s113
      %p122 = scmp.eq.s32.totalorder %s20, 0
      %p123 = por %p121, %p122
      %p124 = scmp.ne.s32.totalorder %s112, %s113
      %p125 = scmp.eq.s32.totalorder %s21, 1
      %p126 = por %p124, %p125
      %p128 = scmp.ne.s32.totalorder %s113, %s127
      %p129 = scmp.eq.s32.totalorder %s21, 0
      %p130 = por %p128, %p129
      %s132 = sadd.s32 %s131, 1
      %p135 = scmp.eq.s32.totalorder %s15, 1
      %p136 = scmp.ne.s32.totalorder %s131, %s133
      %p137 = scmp.eq.s32.totalorder %s15, 0
      %p138 = por %p136, %p137
      %p139 = scmp.ne.s32.totalorder %s131, %s133
      %p140 = scmp.eq.s32.totalorder %s20, 1
      %p141 = por %p139, %p140
      %p142 = scmp.ne.s32.totalorder %s133, %s134
      %p143 = scmp.eq.s32.totalorder %s20, 0
      %p144 = por %p142, %p143
      %p145 = scmp.ne.s32.totalorder %s133, %s134
      %p146 = scmp.eq.s32.totalorder %s21, 1
      %p147 = por %p145, %p146
      %p149 = scmp.ne.s32.totalorder %s134, %s148
      %p150 = scmp.eq.s32.totalorder %s21, 0
      %p151 = por %p149, %p150
      %p152 = scmp.le.s32.totalorder 1, %s15
      %p153 = scmp.lt.s32.totalorder %s15, 3
      %p154 = pnand %p152, %p153
      %p155 = pneg %p154
      // Predicated region
      $region9: #{tpu_custom_call.1} parent=5 // pred_check
        _
      $region10: #{tpu_custom_call.1} parent=5 // pred_check_branch
        %157 = sbr.rel (%p154) target = $region12
      $region11: #{tpu_custom_call.1} parent=5 // pred_region
        %s158 = ssub.s32 %s15, 1
        // Predicated region
        $region13: #{tpu_custom_call.1} parent=11 // pred_check
          %p159 = pneg %p74
        $region14: #{tpu_custom_call.1} parent=11 // pred_check_branch
          %161 = sbr.rel (%p159) target = $region16
        $region15: #{tpu_custom_call.1} parent=11 // pred_region
          _
        $region16: #{tpu_custom_call.1} parent=11 // pred_fallthru
          _
      $region12: #{tpu_custom_call.1} parent=5 // pred_fallthru
        _
      %p162 = scmp.lt.s32.totalorder %s15, 2
      // Predicated region
      $region17: #{tpu_custom_call.1} parent=5 // pred_check
        %p163 = pneg %p162
      $region18: #{tpu_custom_call.1} parent=5 // pred_check_branch
        %165 = sbr.rel (%p163) target = $region20
      $region19: #{tpu_custom_call.1} parent=5 // pred_region
        // Predicated region
        $region21: #{tpu_custom_call.1} parent=19 // pred_check
          %p166 = pneg %p47
        $region22: #{tpu_custom_call.1} parent=19 // pred_check_branch
          %168 = sbr.rel (%p166) target = $region24
        $region23: #{tpu_custom_call.1} parent=19 // pred_region
          %p169 = scmp.lt.s32.totalorder %s22, 1
          %s170 = scalar_select %p169, %s22, 1
          %s171 = smul.addr %s170, 54
          %s172 = smul.addr %s171, 8
          %s173 = scalar_lea.vmem %s0, %s172
        $region24: #{tpu_custom_call.1} parent=19 // pred_fallthru
          _
      $region20: #{tpu_custom_call.1} parent=5 // pred_fallthru
        _
      %p174 = scmp.le.s32.totalorder 1, %s15
      %p175 = scmp.lt.s32.totalorder %s15, 3
      %p176 = pnand %p174, %p175
      %p177 = pneg %p176
      // Predicated region
      $region25: #{tpu_custom_call.1} parent=5 // pred_check
        _
      $region26: #{tpu_custom_call.1} parent=5 // pred_check_branch
        %179 = sbr.rel (%p176) target = $region28
      $region27: #{tpu_custom_call.1} parent=5 // pred_region
        %s180 = ssub.s32 %s15, 1
        %p181 = scmp.lt.s32.totalorder %s24, 1
        %s182 = scalar_select %p181, %s24, 1
        %s183 = smul.addr %s182, 54
        %s184 = smul.addr %s183, 8
        %s185 = scalar_lea.vmem %s0, %s184
        %p186 = pneg %p53
        %p187 = pneg %p50
        %p188 = pneg %p74
        %p189 = pneg %p71
        %p190 = pneg %p102
        %p191 = pneg %p99
        %s192 = sand.u32 %s89, 1
        %s193 = scalar_lea.sflag [#allocation3], %s192
        %s194 = sand.u32 %s89, 1
        %s195 = smul.addr %s194, 256
        %s196 = scalar_lea.vmem [#allocation2], %s195
        %p197 = pneg %p123
        %p198 = pneg %p120
        %p199 = pneg %p144
        %p200 = pneg %p141
        %p201 = scmp.lt.s32.totalorder %s24, 1
        %s202 = scalar_select %p201, %s24, 1
        %s203 = smul.addr %s202, 54
        %s204 = smul.addr %s203, 8
        %s205 = scalar_lea.vmem %s0, %s204
        %s206 = sadd.s32 %s24, %s25
        %s207 = smul.u32 32, %s206
        %p209 = scmp.eq.s32.totalorder %s24, 0
        %p210 = scmp.eq.s32.totalorder %s25, 0
        %p211 = pnand %p209, %p210
        %p212 = pneg %p211
        // Predicated region
        $region29: #{tpu_custom_call.1} parent=27 // pred_check
          _
        $region30: #{tpu_custom_call.1} parent=27 // pred_check_branch
          %214 = sbr.rel (%p211) target = $region32
        $region31: #{tpu_custom_call.1} parent=27 // pred_region
          %215 = vst [vmem:[#allocation4] sm:$0x1] 0.0
          %216 = vst [vmem:[#allocation6] sm:$0x1] 0.0
        $region32: #{tpu_custom_call.1} parent=27 // pred_fallthru
          _
        %s217 = smul.u32 %s25, 16
        %s218 = smul.u32 %s217, 24
        %s219 = scalar_lea.vmem %s205, %s218
        %v220 = vld [vmem:[%s219] sm:$0xff]
        %v221 = vld [vmem:[%s219 + $0x8] sm:$0xff]
        %v222 = vld [vmem:[%s219 + $0x18] sm:$0xff]
        %v223 = vld [vmem:[%s219 + $0x20] sm:$0xff]
        %v224 = vld [vmem:[%s219 + $0x30] sm:$0xff]
        %v225 = vld [vmem:[%s219 + $0x38] sm:$0xff]
        %v226 = vld [vmem:[%s219 + $0x48] sm:$0xff]
        %v227 = vld [vmem:[%s219 + $0x50] sm:$0xff]
        %v228 = vld [vmem:[%s219 + $0x60] sm:$0xff]
        %v229 = vld [vmem:[%s219 + $0x68] sm:$0xff]
        %v230 = vld [vmem:[%s219 + $0x78] sm:$0xff]
        %v231 = vld [vmem:[%s219 + $0x80] sm:$0xff]
        %v232 = vld [vmem:[%s219 + $0x90] sm:$0xff]
        %v233 = vld [vmem:[%s219 + $0x98] sm:$0xff]
        %v234 = vld [vmem:[%s219 + $0xa8] sm:$0xff]
        %v235 = vld [vmem:[%s219 + $0xb0] sm:$0xff]
        %v236 = vld [vmem:[%s219 + $0xc0] sm:$0xff]
        %v237 = vld [vmem:[%s219 + $0xc8] sm:$0xff]
        %v238 = vld [vmem:[%s219 + $0xd8] sm:$0xff]
        %v239 = vld [vmem:[%s219 + $0xe0] sm:$0xff]
        %v240 = vld [vmem:[%s219 + $0xf0] sm:$0xff]
        %v241 = vld [vmem:[%s219 + $0xf8] sm:$0xff]
        %v242 = vld [vmem:[%s219 + $0x108] sm:$0xff]
        %v243 = vld [vmem:[%s219 + $0x110] sm:$0xff]
        %v244 = vld [vmem:[%s219 + $0x120] sm:$0xff]
        %v245 = vld [vmem:[%s219 + $0x128] sm:$0xff]
        %v246 = vld [vmem:[%s219 + $0x138] sm:$0xff]
        %v247 = vld [vmem:[%s219 + $0x140] sm:$0xff]
        %v248 = vld [vmem:[%s219 + $0x150] sm:$0xff]
        %v249 = vld [vmem:[%s219 + $0x158] sm:$0xff]
        %v250 = vld [vmem:[%s219 + $0x168] sm:$0xff]
        %v251 = vld [vmem:[%s219 + $0x170] sm:$0xff]
        %v252 = vpack.c.bf16 %v221, %v220
        %v253 = vpack.c.bf16 %v223, %v222
        %v254 = vpack.c.bf16 %v225, %v224
        %v255 = vpack.c.bf16 %v227, %v226
        %v256 = vpack.c.bf16 %v229, %v228
        %v257 = vpack.c.bf16 %v231, %v230
        %v258 = vpack.c.bf16 %v233, %v232
        %v259 = vpack.c.bf16 %v235, %v234
        %v260 = vpack.c.bf16 %v237, %v236
        %v261 = vpack.c.bf16 %v239, %v238
        %v262 = vpack.c.bf16 %v241, %v240
        %v263 = vpack.c.bf16 %v243, %v242
        %v264 = vpack.c.bf16 %v245, %v244
        %v265 = vpack.c.bf16 %v247, %v246
        %v266 = vpack.c.bf16 %v249, %v248
        %v267 = vpack.c.bf16 %v251, %v250
        %v268 = vld [vmem:[%s1] sm:$0x3]
        %v269 = vld [vmem:[%s219 + $0x1] sm:$0xff]
        %v270 = vld [vmem:[%s219 + $0x9] sm:$0xff]
        %v271 = vld [vmem:[%s219 + $0x19] sm:$0xff]
        %v272 = vld [vmem:[%s219 + $0x21] sm:$0xff]
        %v273 = vld [vmem:[%s219 + $0x31] sm:$0xff]
        %v274 = vld [vmem:[%s219 + $0x39] sm:$0xff]
        %v275 = vld [vmem:[%s219 + $0x49] sm:$0xff]
        %v276 = vld [vmem:[%s219 + $0x51] sm:$0xff]
        %v277 = vld [vmem:[%s219 + $0x61] sm:$0xff]
        %v278 = vld [vmem:[%s219 + $0x69] sm:$0xff]
        %v279 = vld [vmem:[%s219 + $0x79] sm:$0xff]
        %v280 = vld [vmem:[%s219 + $0x81] sm:$0xff]
        %v281 = vld [vmem:[%s219 + $0x91] sm:$0xff]
        %v282 = vld [vmem:[%s219 + $0x99] sm:$0xff]
        %v283 = vld [vmem:[%s219 + $0xa9] sm:$0xff]
        %v284 = vld [vmem:[%s219 + $0xb1] sm:$0xff]
        %v285 = vld [vmem:[%s219 + $0xc1] sm:$0xff]
        %v286 = vld [vmem:[%s219 + $0xc9] sm:$0xff]
        %v287 = vld [vmem:[%s219 + $0xd9] sm:$0xff]
        %v288 = vld [vmem:[%s219 + $0xe1] sm:$0xff]
        %v289 = vld [vmem:[%s219 + $0xf1] sm:$0xff]
        %v290 = vld [vmem:[%s219 + $0xf9] sm:$0xff]
        %v291 = vld [vmem:[%s219 + $0x109] sm:$0xff]
        %v292 = vld [vmem:[%s219 + $0x111] sm:$0xff]
        %v293 = vld [vmem:[%s219 + $0x121] sm:$0xff]
        %v294 = vld [vmem:[%s219 + $0x129] sm:$0xff]
        %v295 = vld [vmem:[%s219 + $0x139] sm:$0xff]
        %v296 = vld [vmem:[%s219 + $0x141] sm:$0xff]
        %v297 = vld [vmem:[%s219 + $0x151] sm:$0xff]
        %v298 = vld [vmem:[%s219 + $0x159] sm:$0xff]
        %v299 = vld [vmem:[%s219 + $0x169] sm:$0xff]
        %v300 = vld [vmem:[%s219 + $0x171] sm:$0xff]
        %v301 = vpack.c.bf16 %v270, %v269
        %v302 = vpack.c.bf16 %v272, %v271
        %v303 = vpack.c.bf16 %v274, %v273
        %v304 = vpack.c.bf16 %v276, %v275
        %v305 = vpack.c.bf16 %v278, %v277
        %v306 = vpack.c.bf16 %v280, %v279
        %v307 = vpack.c.bf16 %v282, %v281
        %v308 = vpack.c.bf16 %v284, %v283
        %v309 = vpack.c.bf16 %v286, %v285
        %v310 = vpack.c.bf16 %v288, %v287
        %v311 = vpack.c.bf16 %v290, %v289
        %v312 = vpack.c.bf16 %v292, %v291
        %v313 = vpack.c.bf16 %v294, %v293
        %v314 = vpack.c.bf16 %v296, %v295
        %v315 = vpack.c.bf16 %v298, %v297
        %v316 = vpack.c.bf16 %v300, %v299
        %s317 = scalar_lea.vmem %s1, 2
        %v318 = vld [vmem:[%s317] sm:$0x3]
        %vm319 = vcmask 31744
        %v321 = vsel %vm319, %v301, 0
        %v324 = vsel %vm319, %v302, 0
        %v327 = vsel %vm319, %v303, 0
        %v330 = vsel %vm319, %v304, 0
        %v333 = vsel %vm319, %v305, 0
        %v336 = vsel %vm319, %v306, 0
        %v339 = vsel %vm319, %v307, 0
        %v342 = vsel %vm319, %v308, 0
        %v345 = vsel %vm319, %v309, 0
        %v348 = vsel %vm319, %v310, 0
        %v351 = vsel %vm319, %v311, 0
        %v354 = vsel %vm319, %v312, 0
        %v357 = vsel %vm319, %v313, 0
        %v360 = vsel %vm319, %v314, 0
        %v363 = vsel %vm319, %v315, 0
        %v366 = vsel %vm319, %v316, 0
        %vm368 = vcmask 1041408
        %v370 = vsel %vm368, %v318, 0
        %372 = vmatprep.subr.bf16.mxu0 0
        %373 = vmatpush1.bf16.msra.mxu0 0
        %374 = vmatprep.subr.bf16.mxu0 0
        %375 = vmatpush1.bf16.msra.mxu0 0
        %376 = vmatprep.subr.bf16.mxu0 0
        %377 = vmatpush1.bf16.msra.mxu0 0
        %378 = vmatprep.subr.bf16.mxu0 0
        %379 = vmatpush1.bf16.msra.mxu0 0
        %380 = vmatprep.subr.bf16.mxu0 0
        %381 = vmatpush1.bf16.msra.mxu0 0
        %382 = vmatprep.subr.bf16.mxu0 0
        %383 = vmatpush1.bf16.msra.mxu0 0
        %384 = vmatprep.subr.bf16.mxu0 0
        %385 = vmatpush1.bf16.msra.mxu0 0
        %386 = vmatprep.subr.bf16.mxu0 0
        %387 = vmatpush1.bf16.msra.mxu0 %v370
        %388 = vmatprep.subr.bf16.mxu0 0
        %389 = vmatpush2.bf16.msra.mxu0 0
        %390 = vmatprep.subr.bf16.mxu0 0
        %391 = vmatpush2.bf16.msra.mxu0 0
        %392 = vmatprep.subr.bf16.mxu0 0
        %393 = vmatpush2.bf16.msra.mxu0 0
        %394 = vmatprep.subr.bf16.mxu0 0
        %395 = vmatpush2.bf16.msra.mxu0 0
        %396 = vmatprep.subr.bf16.mxu0 0
        %397 = vmatpush2.bf16.msra.mxu0 0
        %398 = vmatprep.subr.bf16.mxu0 0
        %399 = vmatpush2.bf16.msra.mxu0 0
        %400 = vmatprep.subr.bf16.mxu0 0
        %401 = vmatpush2.bf16.msra.mxu0 0
        %402 = vmatprep.subr.bf16.mxu0 0
        %403 = vmatpush2.bf16.msra.mxu0 0
        %404 = vmatprep.mubr.bf16.mxu0 0
        %405 = vmatmul.mubr.bf16.gmra.mxu0 %v321
        %v406 = vpop.f32.mrf.mxu0
        %v407 = vadd.f32 0.0, %v406
        %v408 = vpop.f32.mrf.mxu0
        %v409 = vpop.f32.mrf.mxu0
        %v410 = vadd.f32 0.0, %v409
        %v411 = vpop.f32.mrf.mxu0
        %412 = vmatprep.mubr.bf16.mxu0 0
        %413 = vmatmul.mubr.bf16.gmra.mxu0 %v324
        %v414 = vpop.f32.mrf.mxu0
        %v415 = vadd.f32 0.0, %v414
        %v416 = vpop.f32.mrf.mxu0
        %v417 = vpop.f32.mrf.mxu0
        %v418 = vadd.f32 0.0, %v417
        %v419 = vpop.f32.mrf.mxu0
        %420 = vmatprep.mubr.bf16.mxu0 0
        %421 = vmatmul.mubr.bf16.gmra.mxu0 %v327
        %v422 = vpop.f32.mrf.mxu0
        %v423 = vadd.f32 0.0, %v422
        %v424 = vpop.f32.mrf.mxu0
        %v425 = vpop.f32.mrf.mxu0
        %v426 = vadd.f32 0.0, %v425
        %v427 = vpop.f32.mrf.mxu0
        %428 = vmatprep.mubr.bf16.mxu0 0
        %429 = vmatmul.mubr.bf16.gmra.mxu0 %v330
        %v430 = vpop.f32.mrf.mxu0
        %v431 = vadd.f32 0.0, %v430
        %v432 = vpop.f32.mrf.mxu0
        %v433 = vpop.f32.mrf.mxu0
        %v434 = vadd.f32 0.0, %v433
        %v435 = vpop.f32.mrf.mxu0
        %436 = vmatprep.mubr.bf16.mxu0 0
        %437 = vmatmul.mubr.bf16.gmra.mxu0 %v333
        %v438 = vpop.f32.mrf.mxu0
        %v439 = vadd.f32 0.0, %v438
        %v440 = vpop.f32.mrf.mxu0
        %v441 = vpop.f32.mrf.mxu0
        %v442 = vadd.f32 0.0, %v441
        %v443 = vpop.f32.mrf.mxu0
        %444 = vmatprep.mubr.bf16.mxu0 0
        %445 = vmatmul.mubr.bf16.gmra.mxu0 %v336
        %v446 = vpop.f32.mrf.mxu0
        %v447 = vadd.f32 0.0, %v446
        %v448 = vpop.f32.mrf.mxu0
        %v449 = vpop.f32.mrf.mxu0
        %v450 = vadd.f32 0.0, %v449
        %v451 = vpop.f32.mrf.mxu0
        %452 = vmatprep.mubr.bf16.mxu0 0
        %453 = vmatmul.mubr.bf16.gmra.mxu0 %v339
        %v454 = vpop.f32.mrf.mxu0
        %v455 = vadd.f32 0.0, %v454
        %v456 = vpop.f32.mrf.mxu0
        %v457 = vpop.f32.mrf.mxu0
        %v458 = vadd.f32 0.0, %v457
        %v459 = vpop.f32.mrf.mxu0
        %460 = vmatprep.mubr.bf16.mxu0 0
        %461 = vmatmul.mubr.bf16.gmra.mxu0 %v342
        %v462 = vpop.f32.mrf.mxu0
        %v463 = vadd.f32 0.0, %v462
        %v464 = vpop.f32.mrf.mxu0
        %v465 = vpop.f32.mrf.mxu0
        %v466 = vadd.f32 0.0, %v465
        %v467 = vpop.f32.mrf.mxu0
        %468 = vmatprep.mubr.bf16.mxu0 0
        %469 = vmatmul.mubr.bf16.gmra.mxu0 %v345
        %v470 = vpop.f32.mrf.mxu0
        %v471 = vadd.f32 0.0, %v470
        %v472 = vpop.f32.mrf.mxu0
        %v473 = vpop.f32.mrf.mxu0
        %v474 = vadd.f32 0.0, %v473
        %v475 = vpop.f32.mrf.mxu0
        %476 = vmatprep.mubr.bf16.mxu0 0
        %477 = vmatmul.mubr.bf16.gmra.mxu0 %v348
        %v478 = vpop.f32.mrf.mxu0
        %v479 = vadd.f32 0.0, %v478
        %v480 = vpop.f32.mrf.mxu0
        %v481 = vpop.f32.mrf.mxu0
        %v482 = vadd.f32 0.0, %v481
        %v483 = vpop.f32.mrf.mxu0
        %484 = vmatprep.mubr.bf16.mxu0 0
        %485 = vmatmul.mubr.bf16.gmra.mxu0 %v351
        %v486 = vpop.f32.mrf.mxu0
        %v487 = vadd.f32 0.0, %v486
        %v488 = vpop.f32.mrf.mxu0
        %v489 = vpop.f32.mrf.mxu0
        %v490 = vadd.f32 0.0, %v489
        %v491 = vpop.f32.mrf.mxu0
        %492 = vmatprep.mubr.bf16.mxu0 0
        %493 = vmatmul.mubr.bf16.gmra.mxu0 %v354
        %v494 = vpop.f32.mrf.mxu0
        %v495 = vadd.f32 0.0, %v494
        %v496 = vpop.f32.mrf.mxu0
        %v497 = vpop.f32.mrf.mxu0
        %v498 = vadd.f32 0.0, %v497
        %v499 = vpop.f32.mrf.mxu0
        %500 = vmatprep.mubr.bf16.mxu0 0
        %501 = vmatmul.mubr.bf16.gmra.mxu0 %v357
        %v502 = vpop.f32.mrf.mxu0
        %v503 = vadd.f32 0.0, %v502
        %v504 = vpop.f32.mrf.mxu0
        %v505 = vpop.f32.mrf.mxu0
        %v506 = vadd.f32 0.0, %v505
        %v507 = vpop.f32.mrf.mxu0
        %508 = vmatprep.mubr.bf16.mxu0 0
        %509 = vmatmul.mubr.bf16.gmra.mxu0 %v360
        %v510 = vpop.f32.mrf.mxu0
        %v511 = vadd.f32 0.0, %v510
        %v512 = vpop.f32.mrf.mxu0
        %v513 = vpop.f32.mrf.mxu0
        %v514 = vadd.f32 0.0, %v513
        %v515 = vpop.f32.mrf.mxu0
        %516 = vmatprep.mubr.bf16.mxu0 0
        %517 = vmatmul.mubr.bf16.gmra.mxu0 %v363
        %v518 = vpop.f32.mrf.mxu0
        %v519 = vadd.f32 0.0, %v518
        %v520 = vpop.f32.mrf.mxu0
        %v521 = vpop.f32.mrf.mxu0
        %v522 = vadd.f32 0.0, %v521
        %v523 = vpop.f32.mrf.mxu0
        %524 = vmatprep.mubr.bf16.mxu0 0
        %525 = vmatmul.mubr.bf16.gmra.mxu0 %v366
        %v526 = vpop.f32.mrf.mxu0
        %v527 = vadd.f32 0.0, %v526
        %v528 = vpop.f32.mrf.mxu0
        %v529 = vpop.f32.mrf.mxu0
        %v530 = vadd.f32 0.0, %v529
        %v531 = vpop.f32.mrf.mxu0
        %532 = vdwg.mxu0
        %v534 = vsel %vm319, %v252, 0
        %v537 = vsel %vm319, %v253, 0
        %v540 = vsel %vm319, %v254, 0
        %v543 = vsel %vm319, %v255, 0
        %v546 = vsel %vm319, %v256, 0
        %v549 = vsel %vm319, %v257, 0
        %v552 = vsel %vm319, %v258, 0
        %v555 = vsel %vm319, %v259, 0
        %v558 = vsel %vm319, %v260, 0
        %v561 = vsel %vm319, %v261, 0
        %v564 = vsel %vm319, %v262, 0
        %v567 = vsel %vm319, %v263, 0
        %v570 = vsel %vm319, %v264, 0
        %v573 = vsel %vm319, %v265, 0
        %v576 = vsel %vm319, %v266, 0
        %v579 = vsel %vm319, %v267, 0
        %v582 = vsel %vm368, %v268, 0
        %584 = vmatprep.subr.bf16.mxu0 0
        %585 = vmatpush1.bf16.msra.mxu0 0
        %586 = vmatprep.subr.bf16.mxu0 0
        %587 = vmatpush1.bf16.msra.mxu0 0
        %588 = vmatprep.subr.bf16.mxu0 0
        %589 = vmatpush1.bf16.msra.mxu0 0
        %590 = vmatprep.subr.bf16.mxu0 0
        %591 = vmatpush1.bf16.msra.mxu0 0
        %592 = vmatprep.subr.bf16.mxu0 0
        %593 = vmatpush1.bf16.msra.mxu0 0
        %594 = vmatprep.subr.bf16.mxu0 0
        %595 = vmatpush1.bf16.msra.mxu0 0
        %596 = vmatprep.subr.bf16.mxu0 0
        %597 = vmatpush1.bf16.msra.mxu0 0
        %598 = vmatprep.subr.bf16.mxu0 0
        %599 = vmatpush1.bf16.msra.mxu0 %v582
        %600 = vmatprep.subr.bf16.mxu0 0
        %601 = vmatpush2.bf16.msra.mxu0 0
        %602 = vmatprep.subr.bf16.mxu0 0
        %603 = vmatpush2.bf16.msra.mxu0 0
        %604 = vmatprep.subr.bf16.mxu0 0
        %605 = vmatpush2.bf16.msra.mxu0 0
        %606 = vmatprep.subr.bf16.mxu0 0
        %607 = vmatpush2.bf16.msra.mxu0 0
        %608 = vmatprep.subr.bf16.mxu0 0
        %609 = vmatpush2.bf16.msra.mxu0 0
        %610 = vmatprep.subr.bf16.mxu0 0
        %611 = vmatpush2.bf16.msra.mxu0 0
        %612 = vmatprep.subr.bf16.mxu0 0
        %613 = vmatpush2.bf16.msra.mxu0 0
        %614 = vmatprep.subr.bf16.mxu0 0
        %615 = vmatpush2.bf16.msra.mxu0 0
        %616 = vmatprep.mubr.bf16.mxu0 0
        %617 = vmatmul.mubr.bf16.gmra.mxu0 %v534
        %v618 = vpop.f32.mrf.mxu0
        %v619 = vadd.f32 %v407, %v618
        %v620 = vpop.f32.mrf.mxu0
        %v621 = vpop.f32.mrf.mxu0
        %v622 = vadd.f32 %v410, %v621
        %v623 = vpop.f32.mrf.mxu0
        %624 = vmatprep.mubr.bf16.mxu0 0
        %625 = vmatmul.mubr.bf16.gmra.mxu0 %v537
        %v626 = vpop.f32.mrf.mxu0
        %v627 = vadd.f32 %v415, %v626
        %v628 = vpop.f32.mrf.mxu0
        %v629 = vpop.f32.mrf.mxu0
        %v630 = vadd.f32 %v418, %v629
        %v631 = vpop.f32.mrf.mxu0
        %632 = vmatprep.mubr.bf16.mxu0 0
        %633 = vmatmul.mubr.bf16.gmra.mxu0 %v540
        %v634 = vpop.f32.mrf.mxu0
        %v635 = vadd.f32 %v423, %v634
        %v636 = vpop.f32.mrf.mxu0
        %v637 = vpop.f32.mrf.mxu0
        %v638 = vadd.f32 %v426, %v637
        %v639 = vpop.f32.mrf.mxu0
        %640 = vmatprep.mubr.bf16.mxu0 0
        %641 = vmatmul.mubr.bf16.gmra.mxu0 %v543
        %v642 = vpop.f32.mrf.mxu0
        %v643 = vadd.f32 %v431, %v642
        %v644 = vpop.f32.mrf.mxu0
        %v645 = vpop.f32.mrf.mxu0
        %v646 = vadd.f32 %v434, %v645
        %v647 = vpop.f32.mrf.mxu0
        %648 = vmatprep.mubr.bf16.mxu0 0
        %649 = vmatmul.mubr.bf16.gmra.mxu0 %v546
        %v650 = vpop.f32.mrf.mxu0
        %v651 = vadd.f32 %v439, %v650
        %v652 = vpop.f32.mrf.mxu0
        %v653 = vpop.f32.mrf.mxu0
        %v654 = vadd.f32 %v442, %v653
        %v655 = vpop.f32.mrf.mxu0
        %656 = vmatprep.mubr.bf16.mxu0 0
        %657 = vmatmul.mubr.bf16.gmra.mxu0 %v549
        %v658 = vpop.f32.mrf.mxu0
        %v659 = vadd.f32 %v447, %v658
        %v660 = vpop.f32.mrf.mxu0
        %v661 = vpop.f32.mrf.mxu0
        %v662 = vadd.f32 %v450, %v661
        %v663 = vpop.f32.mrf.mxu0
        %664 = vmatprep.mubr.bf16.mxu0 0
        %665 = vmatmul.mubr.bf16.gmra.mxu0 %v552
        %v666 = vpop.f32.mrf.mxu0
        %v667 = vadd.f32 %v455, %v666
        %v668 = vpop.f32.mrf.mxu0
        %v669 = vpop.f32.mrf.mxu0
        %v670 = vadd.f32 %v458, %v669
        %v671 = vpop.f32.mrf.mxu0
        %672 = vmatprep.mubr.bf16.mxu0 0
        %673 = vmatmul.mubr.bf16.gmra.mxu0 %v555
        %v674 = vpop.f32.mrf.mxu0
        %v675 = vadd.f32 %v463, %v674
        %v676 = vpop.f32.mrf.mxu0
        %v677 = vpop.f32.mrf.mxu0
        %v678 = vadd.f32 %v466, %v677
        %v679 = vpop.f32.mrf.mxu0
        %680 = vmatprep.mubr.bf16.mxu0 0
        %681 = vmatmul.mubr.bf16.gmra.mxu0 %v558
        %v682 = vpop.f32.mrf.mxu0
        %v683 = vadd.f32 %v471, %v682
        %v684 = vpop.f32.mrf.mxu0
        %v685 = vpop.f32.mrf.mxu0
        %v686 = vadd.f32 %v474, %v685
        %v687 = vpop.f32.mrf.mxu0
        %688 = vmatprep.mubr.bf16.mxu0 0
        %689 = vmatmul.mubr.bf16.gmra.mxu0 %v561
        %v690 = vpop.f32.mrf.mxu0
        %v691 = vadd.f32 %v479, %v690
        %v692 = vpop.f32.mrf.mxu0
        %v693 = vpop.f32.mrf.mxu0
        %v694 = vadd.f32 %v482, %v693
        %v695 = vpop.f32.mrf.mxu0
        %696 = vmatprep.mubr.bf16.mxu0 0
        %697 = vmatmul.mubr.bf16.gmra.mxu0 %v564
        %v698 = vpop.f32.mrf.mxu0
        %v699 = vadd.f32 %v487, %v698
        %v700 = vpop.f32.mrf.mxu0
        %v701 = vpop.f32.mrf.mxu0
        %v702 = vadd.f32 %v490, %v701
        %v703 = vpop.f32.mrf.mxu0
        %704 = vmatprep.mubr.bf16.mxu0 0
        %705 = vmatmul.mubr.bf16.gmra.mxu0 %v567
        %v706 = vpop.f32.mrf.mxu0
        %v707 = vadd.f32 %v495, %v706
        %v708 = vpop.f32.mrf.mxu0
        %v709 = vpop.f32.mrf.mxu0
        %v710 = vadd.f32 %v498, %v709
        %v711 = vpop.f32.mrf.mxu0
        %712 = vmatprep.mubr.bf16.mxu0 0
        %713 = vmatmul.mubr.bf16.gmra.mxu0 %v570
        %v714 = vpop.f32.mrf.mxu0
        %v715 = vadd.f32 %v503, %v714
        %v716 = vpop.f32.mrf.mxu0
        %v717 = vpop.f32.mrf.mxu0
        %v718 = vadd.f32 %v506, %v717
        %v719 = vpop.f32.mrf.mxu0
        %720 = vmatprep.mubr.bf16.mxu0 0
        %721 = vmatmul.mubr.bf16.gmra.mxu0 %v573
        %v722 = vpop.f32.mrf.mxu0
        %v723 = vadd.f32 %v511, %v722
        %v724 = vpop.f32.mrf.mxu0
        %v725 = vpop.f32.mrf.mxu0
        %v726 = vadd.f32 %v514, %v725
        %v727 = vpop.f32.mrf.mxu0
        %728 = vmatprep.mubr.bf16.mxu0 0
        %729 = vmatmul.mubr.bf16.gmra.mxu0 %v576
        %v730 = vpop.f32.mrf.mxu0
        %v731 = vadd.f32 %v519, %v730
        %v732 = vpop.f32.mrf.mxu0
        %v733 = vpop.f32.mrf.mxu0
        %v734 = vadd.f32 %v522, %v733
        %v735 = vpop.f32.mrf.mxu0
        %736 = vmatprep.mubr.bf16.mxu0 0
        %737 = vmatmul.mubr.bf16.gmra.mxu0 %v579
        %v738 = vpop.f32.mrf.mxu0
        %v739 = vadd.f32 %v527, %v738
        %v740 = vpop.f32.mrf.mxu0
        %v741 = vpop.f32.mrf.mxu0
        %v742 = vadd.f32 %v530, %v741
        %v743 = vpop.f32.mrf.mxu0
        %744 = vdwg.mxu0
        %v745 = vld [vmem:[%s219 + $0x2] sm:$0xff]
        %v746 = vld [vmem:[%s219 + $0xa] sm:$0xff]
        %v747 = vld [vmem:[%s219 + $0x1a] sm:$0xff]
        %v748 = vld [vmem:[%s219 + $0x22] sm:$0xff]
        %v749 = vld [vmem:[%s219 + $0x32] sm:$0xff]
        %v750 = vld [vmem:[%s219 + $0x3a] sm:$0xff]
        %v751 = vld [vmem:[%s219 + $0x4a] sm:$0xff]
        %v752 = vld [vmem:[%s219 + $0x52] sm:$0xff]
        %v753 = vld [vmem:[%s219 + $0x62] sm:$0xff]
        %v754 = vld [vmem:[%s219 + $0x6a] sm:$0xff]
        %v755 = vld [vmem:[%s219 + $0x7a] sm:$0xff]
        %v756 = vld [vmem:[%s219 + $0x82] sm:$0xff]
        %v757 = vld [vmem:[%s219 + $0x92] sm:$0xff]
        %v758 = vld [vmem:[%s219 + $0x9a] sm:$0xff]
        %v759 = vld [vmem:[%s219 + $0xaa] sm:$0xff]
        %v760 = vld [vmem:[%s219 + $0xb2] sm:$0xff]
        %v761 = vld [vmem:[%s219 + $0xc2] sm:$0xff]
        %v762 = vld [vmem:[%s219 + $0xca] sm:$0xff]
        %v763 = vld [vmem:[%s219 + $0xda] sm:$0xff]
        %v764 = vld [vmem:[%s219 + $0xe2] sm:$0xff]
        %v765 = vld [vmem:[%s219 + $0xf2] sm:$0xff]
        %v766 = vld [vmem:[%s219 + $0xfa] sm:$0xff]
        %v767 = vld [vmem:[%s219 + $0x10a] sm:$0xff]
        %v768 = vld [vmem:[%s219 + $0x112] sm:$0xff]
        %v769 = vld [vmem:[%s219 + $0x122] sm:$0xff]
        %v770 = vld [vmem:[%s219 + $0x12a] sm:$0xff]
        %v771 = vld [vmem:[%s219 + $0x13a] sm:$0xff]
        %v772 = vld [vmem:[%s219 + $0x142] sm:$0xff]
        %v773 = vld [vmem:[%s219 + $0x152] sm:$0xff]
        %v774 = vld [vmem:[%s219 + $0x15a] sm:$0xff]
        %v775 = vld [vmem:[%s219 + $0x16a] sm:$0xff]
        %v776 = vld [vmem:[%s219 + $0x172] sm:$0xff]
        %v777 = vpack.c.bf16 %v746, %v745
        %v778 = vpack.c.bf16 %v748, %v747
        %v779 = vpack.c.bf16 %v750, %v749
        %v780 = vpack.c.bf16 %v752, %v751
        %v781 = vpack.c.bf16 %v754, %v753
        %v782 = vpack.c.bf16 %v756, %v755
        %v783 = vpack.c.bf16 %v758, %v757
        %v784 = vpack.c.bf16 %v760, %v759
        %v785 = vpack.c.bf16 %v762, %v761
        %v786 = vpack.c.bf16 %v764, %v763
        %v787 = vpack.c.bf16 %v766, %v765
        %v788 = vpack.c.bf16 %v768, %v767
        %v789 = vpack.c.bf16 %v770, %v769
        %v790 = vpack.c.bf16 %v772, %v771
        %v791 = vpack.c.bf16 %v774, %v773
        %v792 = vpack.c.bf16 %v776, %v775
        %s793 = scalar_lea.vmem %s1, 4
        %v794 = vld [vmem:[%s793] sm:$0x3]
        %v796 = vsel %vm319, %v777, 0
        %v799 = vsel %vm319, %v778, 0
        %v802 = vsel %vm319, %v779, 0
        %v805 = vsel %vm319, %v780, 0
        %v808 = vsel %vm319, %v781, 0
        %v811 = vsel %vm319, %v782, 0
        %v814 = vsel %vm319, %v783, 0
        %v817 = vsel %vm319, %v784, 0
        %v820 = vsel %vm319, %v785, 0
        %v823 = vsel %vm319, %v786, 0
        %v826 = vsel %vm319, %v787, 0
        %v829 = vsel %vm319, %v788, 0
        %v832 = vsel %vm319, %v789, 0
        %v835 = vsel %vm319, %v790, 0
        %v838 = vsel %vm319, %v791, 0
        %v841 = vsel %vm319, %v792, 0
        %v844 = vsel %vm368, %v794, 0
        %846 = vmatprep.subr.bf16.mxu0 0
        %847 = vmatpush1.bf16.msra.mxu0 0
        %848 = vmatprep.subr.bf16.mxu0 0
        %849 = vmatpush1.bf16.msra.mxu0 0
        %850 = vmatprep.subr.bf16.mxu0 0
        %851 = vmatpush1.bf16.msra.mxu0 0
        %852 = vmatprep.subr.bf16.mxu0 0
        %853 = vmatpush1.bf16.msra.mxu0 0
        %854 = vmatprep.subr.bf16.mxu0 0
        %855 = vmatpush1.bf16.msra.mxu0 0
        %856 = vmatprep.subr.bf16.mxu0 0
        %857 = vmatpush1.bf16.msra.mxu0 0
        %858 = vmatprep.subr.bf16.mxu0 0
        %859 = vmatpush1.bf16.msra.mxu0 0
        %860 = vmatprep.subr.bf16.mxu0 0
        %861 = vmatpush1.bf16.msra.mxu0 %v844
        %862 = vmatprep.subr.bf16.mxu0 0
        %863 = vmatpush2.bf16.msra.mxu0 0
        %864 = vmatprep.subr.bf16.mxu0 0
        %865 = vmatpush2.bf16.msra.mxu0 0
        %866 = vmatprep.subr.bf16.mxu0 0
        %867 = vmatpush2.bf16.msra.mxu0 0
        %868 = vmatprep.subr.bf16.mxu0 0
        %869 = vmatpush2.bf16.msra.mxu0 0
        %870 = vmatprep.subr.bf16.mxu0 0
        %871 = vmatpush2.bf16.msra.mxu0 0
        %872 = vmatprep.subr.bf16.mxu0 0
        %873 = vmatpush2.bf16.msra.mxu0 0
        %874 = vmatprep.subr.bf16.mxu0 0
        %875 = vmatpush2.bf16.msra.mxu0 0
        %876 = vmatprep.subr.bf16.mxu0 0
        %877 = vmatpush2.bf16.msra.mxu0 0
        %878 = vmatprep.mubr.bf16.mxu0 0
        %879 = vmatmul.mubr.bf16.gmra.mxu0 %v796
        %v880 = vpop.f32.mrf.mxu0
        %v881 = vadd.f32 0.0, %v880
        %v882 = vpop.f32.mrf.mxu0
        %v883 = vpop.f32.mrf.mxu0
        %v884 = vadd.f32 0.0, %v883
        %v885 = vpop.f32.mrf.mxu0
        %886 = vmatprep.mubr.bf16.mxu0 0
        %887 = vmatmul.mubr.bf16.gmra.mxu0 %v799
        %v888 = vpop.f32.mrf.mxu0
        %v889 = vadd.f32 0.0, %v888
        %v890 = vpop.f32.mrf.mxu0
        %v891 = vpop.f32.mrf.mxu0
        %v892 = vadd.f32 0.0, %v891
        %v893 = vpop.f32.mrf.mxu0
        %894 = vmatprep.mubr.bf16.mxu0 0
        %895 = vmatmul.mubr.bf16.gmra.mxu0 %v802
        %v896 = vpop.f32.mrf.mxu0
        %v897 = vadd.f32 0.0, %v896
        %v898 = vpop.f32.mrf.mxu0
        %v899 = vpop.f32.mrf.mxu0
        %v900 = vadd.f32 0.0, %v899
        %v901 = vpop.f32.mrf.mxu0
        %902 = vmatprep.mubr.bf16.mxu0 0
        %903 = vmatmul.mubr.bf16.gmra.mxu0 %v805
        %v904 = vpop.f32.mrf.mxu0
        %v905 = vadd.f32 0.0, %v904
        %v906 = vpop.f32.mrf.mxu0
        %v907 = vpop.f32.mrf.mxu0
        %v908 = vadd.f32 0.0, %v907
        %v909 = vpop.f32.mrf.mxu0
        %910 = vmatprep.mubr.bf16.mxu0 0
        %911 = vmatmul.mubr.bf16.gmra.mxu0 %v808
        %v912 = vpop.f32.mrf.mxu0
        %v913 = vadd.f32 0.0, %v912
        %v914 = vpop.f32.mrf.mxu0
        %v915 = vpop.f32.mrf.mxu0
        %v916 = vadd.f32 0.0, %v915
        %v917 = vpop.f32.mrf.mxu0
        %918 = vmatprep.mubr.bf16.mxu0 0
        %919 = vmatmul.mubr.bf16.gmra.mxu0 %v811
        %v920 = vpop.f32.mrf.mxu0
        %v921 = vadd.f32 0.0, %v920
        %v922 = vpop.f32.mrf.mxu0
        %v923 = vpop.f32.mrf.mxu0
        %v924 = vadd.f32 0.0, %v923
        %v925 = vpop.f32.mrf.mxu0
        %926 = vmatprep.mubr.bf16.mxu0 0
        %927 = vmatmul.mubr.bf16.gmra.mxu0 %v814
        %v928 = vpop.f32.mrf.mxu0
        %v929 = vadd.f32 0.0, %v928
        %v930 = vpop.f32.mrf.mxu0
        %v931 = vpop.f32.mrf.mxu0
        %v932 = vadd.f32 0.0, %v931
        %v933 = vpop.f32.mrf.mxu0
        %934 = vmatprep.mubr.bf16.mxu0 0
        %935 = vmatmul.mubr.bf16.gmra.mxu0 %v817
        %v936 = vpop.f32.mrf.mxu0
        %v937 = vadd.f32 0.0, %v936
        %v938 = vpop.f32.mrf.mxu0
        %v939 = vpop.f32.mrf.mxu0
        %v940 = vadd.f32 0.0, %v939
        %v941 = vpop.f32.mrf.mxu0
        %942 = vmatprep.mubr.bf16.mxu0 0
        %943 = vmatmul.mubr.bf16.gmra.mxu0 %v820
        %v944 = vpop.f32.mrf.mxu0
        %v945 = vadd.f32 0.0, %v944
        %v946 = vpop.f32.mrf.mxu0
        %v947 = vpop.f32.mrf.mxu0
        %v948 = vadd.f32 0.0, %v947
        %v949 = vpop.f32.mrf.mxu0
        %950 = vmatprep.mubr.bf16.mxu0 0
        %951 = vmatmul.mubr.bf16.gmra.mxu0 %v823
        %v952 = vpop.f32.mrf.mxu0
        %v953 = vadd.f32 0.0, %v952
        %v954 = vpop.f32.mrf.mxu0
        %v955 = vpop.f32.mrf.mxu0
        %v956 = vadd.f32 0.0, %v955
        %v957 = vpop.f32.mrf.mxu0
        %958 = vmatprep.mubr.bf16.mxu0 0
        %959 = vmatmul.mubr.bf16.gmra.mxu0 %v826
        %v960 = vpop.f32.mrf.mxu0
        %v961 = vadd.f32 0.0, %v960
        %v962 = vpop.f32.mrf.mxu0
        %v963 = vpop.f32.mrf.mxu0
        %v964 = vadd.f32 0.0, %v963
        %v965 = vpop.f32.mrf.mxu0
        %966 = vmatprep.mubr.bf16.mxu0 0
        %967 = vmatmul.mubr.bf16.gmra.mxu0 %v829
        %v968 = vpop.f32.mrf.mxu0
        %v969 = vadd.f32 0.0, %v968
        %v970 = vpop.f32.mrf.mxu0
        %v971 = vpop.f32.mrf.mxu0
        %v972 = vadd.f32 0.0, %v971
        %v973 = vpop.f32.mrf.mxu0
        %974 = vmatprep.mubr.bf16.mxu0 0
        %975 = vmatmul.mubr.bf16.gmra.mxu0 %v832
        %v976 = vpop.f32.mrf.mxu0
        %v977 = vadd.f32 0.0, %v976
        %v978 = vpop.f32.mrf.mxu0
        %v979 = vpop.f32.mrf.mxu0
        %v980 = vadd.f32 0.0, %v979
        %v981 = vpop.f32.mrf.mxu0
        %982 = vmatprep.mubr.bf16.mxu0 0
        %983 = vmatmul.mubr.bf16.gmra.mxu0 %v835
        %v984 = vpop.f32.mrf.mxu0
        %v985 = vadd.f32 0.0, %v984
        %v986 = vpop.f32.mrf.mxu0
        %v987 = vpop.f32.mrf.mxu0
        %v988 = vadd.f32 0.0, %v987
        %v989 = vpop.f32.mrf.mxu0
        %990 = vmatprep.mubr.bf16.mxu0 0
        %991 = vmatmul.mubr.bf16.gmra.mxu0 %v838
        %v992 = vpop.f32.mrf.mxu0
        %v993 = vadd.f32 0.0, %v992
        %v994 = vpop.f32.mrf.mxu0
        %v995 = vpop.f32.mrf.mxu0
        %v996 = vadd.f32 0.0, %v995
        %v997 = vpop.f32.mrf.mxu0
        %998 = vmatprep.mubr.bf16.mxu0 0
        %999 = vmatmul.mubr.bf16.gmra.mxu0 %v841
        %v1000 = vpop.f32.mrf.mxu0
        %v1001 = vadd.f32 0.0, %v1000
        %v1002 = vpop.f32.mrf.mxu0
        %v1003 = vpop.f32.mrf.mxu0
        %v1004 = vadd.f32 0.0, %v1003
        %v1005 = vpop.f32.mrf.mxu0
        %1006 = vdwg.mxu0
        %v1007 = vadd.f32 %v619, %v881
        %v1008 = vadd.f32 %v622, %v884
        %v1009 = vadd.f32 %v627, %v889
        %v1010 = vadd.f32 %v630, %v892
        %v1011 = vadd.f32 %v635, %v897
        %v1012 = vadd.f32 %v638, %v900
        %v1013 = vadd.f32 %v643, %v905
        %v1014 = vadd.f32 %v646, %v908
        %v1015 = vadd.f32 %v651, %v913
        %v1016 = vadd.f32 %v654, %v916
        %v1017 = vadd.f32 %v659, %v921
        %v1018 = vadd.f32 %v662, %v924
        %v1019 = vadd.f32 %v667, %v929
        %v1020 = vadd.f32 %v670, %v932
        %v1021 = vadd.f32 %v675, %v937
        %v1022 = vadd.f32 %v678, %v940
        %v1023 = vadd.f32 %v683, %v945
        %v1024 = vadd.f32 %v686, %v948
        %v1025 = vadd.f32 %v691, %v953
        %v1026 = vadd.f32 %v694, %v956
        %v1027 = vadd.f32 %v699, %v961
        %v1028 = vadd.f32 %v702, %v964
        %v1029 = vadd.f32 %v707, %v969
        %v1030 = vadd.f32 %v710, %v972
        %v1031 = vadd.f32 %v715, %v977
        %v1032 = vadd.f32 %v718, %v980
        %v1033 = vadd.f32 %v723, %v985
        %v1034 = vadd.f32 %v726, %v988
        %v1035 = vadd.f32 %v731, %v993
        %v1036 = vadd.f32 %v734, %v996
        %v1037 = vadd.f32 %v739, %v1001
        %v1038 = vadd.f32 %v742, %v1004
        %s1039 = sadd.s32 %s217, 1
        %s1040 = smul.u32 %s1039, 24
        %s1041 = scalar_lea.vmem %s205, %s1040
        %v1042 = vld [vmem:[%s1041] sm:$0xff]
        %v1043 = vld [vmem:[%s1041 + $0x8] sm:$0xff]
        %v1044 = vld [vmem:[%s1041 + $0x18] sm:$0xff]
        %v1045 = vld [vmem:[%s1041 + $0x20] sm:$0xff]
        %v1046 = vld [vmem:[%s1041 + $0x30] sm:$0xff]
        %v1047 = vld [vmem:[%s1041 + $0x38] sm:$0xff]
        %v1048 = vld [vmem:[%s1041 + $0x48] sm:$0xff]
        %v1049 = vld [vmem:[%s1041 + $0x50] sm:$0xff]
        %v1050 = vld [vmem:[%s1041 + $0x60] sm:$0xff]
        %v1051 = vld [vmem:[%s1041 + $0x68] sm:$0xff]
        %v1052 = vld [vmem:[%s1041 + $0x78] sm:$0xff]
        %v1053 = vld [vmem:[%s1041 + $0x80] sm:$0xff]
        %v1054 = vld [vmem:[%s1041 + $0x90] sm:$0xff]
        %v1055 = vld [vmem:[%s1041 + $0x98] sm:$0xff]
        %v1056 = vld [vmem:[%s1041 + $0xa8] sm:$0xff]
        %v1057 = vld [vmem:[%s1041 + $0xb0] sm:$0xff]
        %v1058 = vld [vmem:[%s1041 + $0xc0] sm:$0xff]
        %v1059 = vld [vmem:[%s1041 + $0xc8] sm:$0xff]
        %v1060 = vld [vmem:[%s1041 + $0xd8] sm:$0xff]
        %v1061 = vld [vmem:[%s1041 + $0xe0] sm:$0xff]
        %v1062 = vld [vmem:[%s1041 + $0xf0] sm:$0xff]
        %v1063 = vld [vmem:[%s1041 + $0xf8] sm:$0xff]
        %v1064 = vld [vmem:[%s1041 + $0x108] sm:$0xff]
        %v1065 = vld [vmem:[%s1041 + $0x110] sm:$0xff]
        %v1066 = vld [vmem:[%s1041 + $0x120] sm:$0xff]
        %v1067 = vld [vmem:[%s1041 + $0x128] sm:$0xff]
        %v1068 = vld [vmem:[%s1041 + $0x138] sm:$0xff]
        %v1069 = vld [vmem:[%s1041 + $0x140] sm:$0xff]
        %v1070 = vld [vmem:[%s1041 + $0x150] sm:$0xff]
        %v1071 = vld [vmem:[%s1041 + $0x158] sm:$0xff]
        %v1072 = vld [vmem:[%s1041 + $0x168] sm:$0xff]
        %v1073 = vld [vmem:[%s1041 + $0x170] sm:$0xff]
        %v1074 = vpack.c.bf16 %v1043, %v1042
        %v1075 = vpack.c.bf16 %v1045, %v1044
        %v1076 = vpack.c.bf16 %v1047, %v1046
        %v1077 = vpack.c.bf16 %v1049, %v1048
        %v1078 = vpack.c.bf16 %v1051, %v1050
        %v1079 = vpack.c.bf16 %v1053, %v1052
        %v1080 = vpack.c.bf16 %v1055, %v1054
        %v1081 = vpack.c.bf16 %v1057, %v1056
        %v1082 = vpack.c.bf16 %v1059, %v1058
        %v1083 = vpack.c.bf16 %v1061, %v1060
        %v1084 = vpack.c.bf16 %v1063, %v1062
        %v1085 = vpack.c.bf16 %v1065, %v1064
        %v1086 = vpack.c.bf16 %v1067, %v1066
        %v1087 = vpack.c.bf16 %v1069, %v1068
        %v1088 = vpack.c.bf16 %v1071, %v1070
        %v1089 = vpack.c.bf16 %v1073, %v1072
        %s1090 = scalar_lea.vmem %s1, 6
        %v1091 = vld [vmem:[%s1090] sm:$0x3]
        %v1093 = vsel %vm319, %v1074, 0
        %v1096 = vsel %vm319, %v1075, 0
        %v1099 = vsel %vm319, %v1076, 0
        %v1102 = vsel %vm319, %v1077, 0
        %v1105 = vsel %vm319, %v1078, 0
        %v1108 = vsel %vm319, %v1079, 0
        %v1111 = vsel %vm319, %v1080, 0
        %v1114 = vsel %vm319, %v1081, 0
        %v1117 = vsel %vm319, %v1082, 0
        %v1120 = vsel %vm319, %v1083, 0
        %v1123 = vsel %vm319, %v1084, 0
        %v1126 = vsel %vm319, %v1085, 0
        %v1129 = vsel %vm319, %v1086, 0
        %v1132 = vsel %vm319, %v1087, 0
        %v1135 = vsel %vm319, %v1088, 0
        %v1138 = vsel %vm319, %v1089, 0
        %v1141 = vsel %vm368, %v1091, 0
        %1143 = vmatprep.subr.bf16.mxu0 0
        %1144 = vmatpush1.bf16.msra.mxu0 0
        %1145 = vmatprep.subr.bf16.mxu0 0
        %1146 = vmatpush1.bf16.msra.mxu0 0
        %1147 = vmatprep.subr.bf16.mxu0 0
        %1148 = vmatpush1.bf16.msra.mxu0 0
        %1149 = vmatprep.subr.bf16.mxu0 0
        %1150 = vmatpush1.bf16.msra.mxu0 0
        %1151 = vmatprep.subr.bf16.mxu0 0
        %1152 = vmatpush1.bf16.msra.mxu0 0
        %1153 = vmatprep.subr.bf16.mxu0 0
        %1154 = vmatpush1.bf16.msra.mxu0 0
        %1155 = vmatprep.subr.bf16.mxu0 0
        %1156 = vmatpush1.bf16.msra.mxu0 0
        %1157 = vmatprep.subr.bf16.mxu0 0
        %1158 = vmatpush1.bf16.msra.mxu0 %v1141
        %1159 = vmatprep.subr.bf16.mxu0 0
        %1160 = vmatpush2.bf16.msra.mxu0 0
        %1161 = vmatprep.subr.bf16.mxu0 0
        %1162 = vmatpush2.bf16.msra.mxu0 0
        %1163 = vmatprep.subr.bf16.mxu0 0
        %1164 = vmatpush2.bf16.msra.mxu0 0
        %1165 = vmatprep.subr.bf16.mxu0 0
        %1166 = vmatpush2.bf16.msra.mxu0 0
        %1167 = vmatprep.subr.bf16.mxu0 0
        %1168 = vmatpush2.bf16.msra.mxu0 0
        %1169 = vmatprep.subr.bf16.mxu0 0
        %1170 = vmatpush2.bf16.msra.mxu0 0
        %1171 = vmatprep.subr.bf16.mxu0 0
        %1172 = vmatpush2.bf16.msra.mxu0 0
        %1173 = vmatprep.subr.bf16.mxu0 0
        %1174 = vmatpush2.bf16.msra.mxu0 0
        %1175 = vmatprep.mubr.bf16.mxu0 0
        %1176 = vmatmul.mubr.bf16.gmra.mxu0 %v1093
        %v1177 = vpop.f32.mrf.mxu0
        %v1178 = vadd.f32 0.0, %v1177
        %v1179 = vpop.f32.mrf.mxu0
        %v1180 = vpop.f32.mrf.mxu0
        %v1181 = vadd.f32 0.0, %v1180
        %v1182 = vpop.f32.mrf.mxu0
        %1183 = vmatprep.mubr.bf16.mxu0 0
        %1184 = vmatmul.mubr.bf16.gmra.mxu0 %v1096
        %v1185 = vpop.f32.mrf.mxu0
        %v1186 = vadd.f32 0.0, %v1185
        %v1187 = vpop.f32.mrf.mxu0
        %v1188 = vpop.f32.mrf.mxu0
        %v1189 = vadd.f32 0.0, %v1188
        %v1190 = vpop.f32.mrf.mxu0
        %1191 = vmatprep.mubr.bf16.mxu0 0
        %1192 = vmatmul.mubr.bf16.gmra.mxu0 %v1099
        %v1193 = vpop.f32.mrf.mxu0
        %v1194 = vadd.f32 0.0, %v1193
        %v1195 = vpop.f32.mrf.mxu0
        %v1196 = vpop.f32.mrf.mxu0
        %v1197 = vadd.f32 0.0, %v1196
        %v1198 = vpop.f32.mrf.mxu0
        %1199 = vmatprep.mubr.bf16.mxu0 0
        %1200 = vmatmul.mubr.bf16.gmra.mxu0 %v1102
        %v1201 = vpop.f32.mrf.mxu0
        %v1202 = vadd.f32 0.0, %v1201
        %v1203 = vpop.f32.mrf.mxu0
        %v1204 = vpop.f32.mrf.mxu0
        %v1205 = vadd.f32 0.0, %v1204
        %v1206 = vpop.f32.mrf.mxu0
        %1207 = vmatprep.mubr.bf16.mxu0 0
        %1208 = vmatmul.mubr.bf16.gmra.mxu0 %v1105
        %v1209 = vpop.f32.mrf.mxu0
        %v1210 = vadd.f32 0.0, %v1209
        %v1211 = vpop.f32.mrf.mxu0
        %v1212 = vpop.f32.mrf.mxu0
        %v1213 = vadd.f32 0.0, %v1212
        %v1214 = vpop.f32.mrf.mxu0
        %1215 = vmatprep.mubr.bf16.mxu0 0
        %1216 = vmatmul.mubr.bf16.gmra.mxu0 %v1108
        %v1217 = vpop.f32.mrf.mxu0
        %v1218 = vadd.f32 0.0, %v1217
        %v1219 = vpop.f32.mrf.mxu0
        %v1220 = vpop.f32.mrf.mxu0
        %v1221 = vadd.f32 0.0, %v1220
        %v1222 = vpop.f32.mrf.mxu0
        %1223 = vmatprep.mubr.bf16.mxu0 0
        %1224 = vmatmul.mubr.bf16.gmra.mxu0 %v1111
        %v1225 = vpop.f32.mrf.mxu0
        %v1226 = vadd.f32 0.0, %v1225
        %v1227 = vpop.f32.mrf.mxu0
        %v1228 = vpop.f32.mrf.mxu0
        %v1229 = vadd.f32 0.0, %v1228
        %v1230 = vpop.f32.mrf.mxu0
        %1231 = vmatprep.mubr.bf16.mxu0 0
        %1232 = vmatmul.mubr.bf16.gmra.mxu0 %v1114
        %v1233 = vpop.f32.mrf.mxu0
        %v1234 = vadd.f32 0.0, %v1233
        %v1235 = vpop.f32.mrf.mxu0
        %v1236 = vpop.f32.mrf.mxu0
        %v1237 = vadd.f32 0.0, %v1236
        %v1238 = vpop.f32.mrf.mxu0
        %1239 = vmatprep.mubr.bf16.mxu0 0
        %1240 = vmatmul.mubr.bf16.gmra.mxu0 %v1117
        %v1241 = vpop.f32.mrf.mxu0
        %v1242 = vadd.f32 0.0, %v1241
        %v1243 = vpop.f32.mrf.mxu0
        %v1244 = vpop.f32.mrf.mxu0
        %v1245 = vadd.f32 0.0, %v1244
        %v1246 = vpop.f32.mrf.mxu0
        %1247 = vmatprep.mubr.bf16.mxu0 0
        %1248 = vmatmul.mubr.bf16.gmra.mxu0 %v1120
        %v1249 = vpop.f32.mrf.mxu0
        %v1250 = vadd.f32 0.0, %v1249
        %v1251 = vpop.f32.mrf.mxu0
        %v1252 = vpop.f32.mrf.mxu0
        %v1253 = vadd.f32 0.0, %v1252
        %v1254 = vpop.f32.mrf.mxu0
        %1255 = vmatprep.mubr.bf16.mxu0 0
        %1256 = vmatmul.mubr.bf16.gmra.mxu0 %v1123
        %v1257 = vpop.f32.mrf.mxu0
        %v1258 = vadd.f32 0.0, %v1257
        %v1259 = vpop.f32.mrf.mxu0
        %v1260 = vpop.f32.mrf.mxu0
        %v1261 = vadd.f32 0.0, %v1260
        %v1262 = vpop.f32.mrf.mxu0
        %1263 = vmatprep.mubr.bf16.mxu0 0
        %1264 = vmatmul.mubr.bf16.gmra.mxu0 %v1126
        %v1265 = vpop.f32.mrf.mxu0
        %v1266 = vadd.f32 0.0, %v1265
        %v1267 = vpop.f32.mrf.mxu0
        %v1268 = vpop.f32.mrf.mxu0
        %v1269 = vadd.f32 0.0, %v1268
        %v1270 = vpop.f32.mrf.mxu0
        %1271 = vmatprep.mubr.bf16.mxu0 0
        %1272 = vmatmul.mubr.bf16.gmra.mxu0 %v1129
        %v1273 = vpop.f32.mrf.mxu0
        %v1274 = vadd.f32 0.0, %v1273
        %v1275 = vpop.f32.mrf.mxu0
        %v1276 = vpop.f32.mrf.mxu0
        %v1277 = vadd.f32 0.0, %v1276
        %v1278 = vpop.f32.mrf.mxu0
        %1279 = vmatprep.mubr.bf16.mxu0 0
        %1280 = vmatmul.mubr.bf16.gmra.mxu0 %v1132
        %v1281 = vpop.f32.mrf.mxu0
        %v1282 = vadd.f32 0.0, %v1281
        %v1283 = vpop.f32.mrf.mxu0
        %v1284 = vpop.f32.mrf.mxu0
        %v1285 = vadd.f32 0.0, %v1284
        %v1286 = vpop.f32.mrf.mxu0
        %1287 = vmatprep.mubr.bf16.mxu0 0
        %1288 = vmatmul.mubr.bf16.gmra.mxu0 %v1135
        %v1289 = vpop.f32.mrf.mxu0
        %v1290 = vadd.f32 0.0, %v1289
        %v1291 = vpop.f32.mrf.mxu0
        %v1292 = vpop.f32.mrf.mxu0
        %v1293 = vadd.f32 0.0, %v1292
        %v1294 = vpop.f32.mrf.mxu0
        %1295 = vmatprep.mubr.bf16.mxu0 0
        %1296 = vmatmul.mubr.bf16.gmra.mxu0 %v1138
        %v1297 = vpop.f32.mrf.mxu0
        %v1298 = vadd.f32 0.0, %v1297
        %v1299 = vpop.f32.mrf.mxu0
        %v1300 = vpop.f32.mrf.mxu0
        %v1301 = vadd.f32 0.0, %v1300
        %v1302 = vpop.f32.mrf.mxu0
        %1303 = vdwg.mxu0
        %v1304 = vadd.f32 %v1007, %v1178
        %v1305 = vadd.f32 %v1008, %v1181
        %v1306 = vadd.f32 %v1009, %v1186
        %v1307 = vadd.f32 %v1010, %v1189
        %v1308 = vadd.f32 %v1011, %v1194
        %v1309 = vadd.f32 %v1012, %v1197
        %v1310 = vadd.f32 %v1013, %v1202
        %v1311 = vadd.f32 %v1014, %v1205
        %v1312 = vadd.f32 %v1015, %v1210
        %v1313 = vadd.f32 %v1016, %v1213
        %v1314 = vadd.f32 %v1017, %v1218
        %v1315 = vadd.f32 %v1018, %v1221
        %v1316 = vadd.f32 %v1019, %v1226
        %v1317 = vadd.f32 %v1020, %v1229
        %v1318 = vadd.f32 %v1021, %v1234
        %v1319 = vadd.f32 %v1022, %v1237
        %v1320 = vadd.f32 %v1023, %v1242
        %v1321 = vadd.f32 %v1024, %v1245
        %v1322 = vadd.f32 %v1025, %v1250
        %v1323 = vadd.f32 %v1026, %v1253
        %v1324 = vadd.f32 %v1027, %v1258
        %v1325 = vadd.f32 %v1028, %v1261
        %v1326 = vadd.f32 %v1029, %v1266
        %v1327 = vadd.f32 %v1030, %v1269
        %v1328 = vadd.f32 %v1031, %v1274
        %v1329 = vadd.f32 %v1032, %v1277
        %v1330 = vadd.f32 %v1033, %v1282
        %v1331 = vadd.f32 %v1034, %v1285
        %v1332 = vadd.f32 %v1035, %v1290
        %v1333 = vadd.f32 %v1036, %v1293
        %v1334 = vadd.f32 %v1037, %v1298
        %v1335 = vadd.f32 %v1038, %v1301
        %v1336 = vld [vmem:[%s1041 + $0x1] sm:$0xff]
        %v1337 = vld [vmem:[%s1041 + $0x9] sm:$0xff]
        %v1338 = vld [vmem:[%s1041 + $0x19] sm:$0xff]
        %v1339 = vld [vmem:[%s1041 + $0x21] sm:$0xff]
        %v1340 = vld [vmem:[%s1041 + $0x31] sm:$0xff]
        %v1341 = vld [vmem:[%s1041 + $0x39] sm:$0xff]
        %v1342 = vld [vmem:[%s1041 + $0x49] sm:$0xff]
        %v1343 = vld [vmem:[%s1041 + $0x51] sm:$0xff]
        %v1344 = vld [vmem:[%s1041 + $0x61] sm:$0xff]
        %v1345 = vld [vmem:[%s1041 + $0x69] sm:$0xff]
        %v1346 = vld [vmem:[%s1041 + $0x79] sm:$0xff]
        %v1347 = vld [vmem:[%s1041 + $0x81] sm:$0xff]
        %v1348 = vld [vmem:[%s1041 + $0x91] sm:$0xff]
        %v1349 = vld [vmem:[%s1041 + $0x99] sm:$0xff]
        %v1350 = vld [vmem:[%s1041 + $0xa9] sm:$0xff]
        %v1351 = vld [vmem:[%s1041 + $0xb1] sm:$0xff]
        %v1352 = vld [vmem:[%s1041 + $0xc1] sm:$0xff]
        %v1353 = vld [vmem:[%s1041 + $0xc9] sm:$0xff]
        %v1354 = vld [vmem:[%s1041 + $0xd9] sm:$0xff]
        %v1355 = vld [vmem:[%s1041 + $0xe1] sm:$0xff]
        %v1356 = vld [vmem:[%s1041 + $0xf1] sm:$0xff]
        %v1357 = vld [vmem:[%s1041 + $0xf9] sm:$0xff]
        %v1358 = vld [vmem:[%s1041 + $0x109] sm:$0xff]
        %v1359 = vld [vmem:[%s1041 + $0x111] sm:$0xff]
        %v1360 = vld [vmem:[%s1041 + $0x121] sm:$0xff]
        %v1361 = vld [vmem:[%s1041 + $0x129] sm:$0xff]
        %v1362 = vld [vmem:[%s1041 + $0x139] sm:$0xff]
        %v1363 = vld [vmem:[%s1041 + $0x141] sm:$0xff]
        %v1364 = vld [vmem:[%s1041 + $0x151] sm:$0xff]
        %v1365 = vld [vmem:[%s1041 + $0x159] sm:$0xff]
        %v1366 = vld [vmem:[%s1041 + $0x169] sm:$0xff]
        %v1367 = vld [vmem:[%s1041 + $0x171] sm:$0xff]
        %v1368 = vpack.c.bf16 %v1337, %v1336
        %v1369 = vpack.c.bf16 %v1339, %v1338
        %v1370 = vpack.c.bf16 %v1341, %v1340
        %v1371 = vpack.c.bf16 %v1343, %v1342
        %v1372 = vpack.c.bf16 %v1345, %v1344
        %v1373 = vpack.c.bf16 %v1347, %v1346
        %v1374 = vpack.c.bf16 %v1349, %v1348
        %v1375 = vpack.c.bf16 %v1351, %v1350
        %v1376 = vpack.c.bf16 %v1353, %v1352
        %v1377 = vpack.c.bf16 %v1355, %v1354
        %v1378 = vpack.c.bf16 %v1357, %v1356
        %v1379 = vpack.c.bf16 %v1359, %v1358
        %v1380 = vpack.c.bf16 %v1361, %v1360
        %v1381 = vpack.c.bf16 %v1363, %v1362
        %v1382 = vpack.c.bf16 %v1365, %v1364
        %v1383 = vpack.c.bf16 %v1367, %v1366
        %s1384 = scalar_lea.vmem %s1, 8
        %v1385 = vld [vmem:[%s1384] sm:$0x3]
        %v1387 = vsel %vm319, %v1368, 0
        %v1390 = vsel %vm319, %v1369, 0
        %v1393 = vsel %vm319, %v1370, 0
        %v1396 = vsel %vm319, %v1371, 0
        %v1399 = vsel %vm319, %v1372, 0
        %v1402 = vsel %vm319, %v1373, 0
        %v1405 = vsel %vm319, %v1374, 0
        %v1408 = vsel %vm319, %v1375, 0
        %v1411 = vsel %vm319, %v1376, 0
        %v1414 = vsel %vm319, %v1377, 0
        %v1417 = vsel %vm319, %v1378, 0
        %v1420 = vsel %vm319, %v1379, 0
        %v1423 = vsel %vm319, %v1380, 0
        %v1426 = vsel %vm319, %v1381, 0
        %v1429 = vsel %vm319, %v1382, 0
        %v1432 = vsel %vm319, %v1383, 0
        %v1435 = vsel %vm368, %v1385, 0
        %1437 = vmatprep.subr.bf16.mxu0 0
        %1438 = vmatpush1.bf16.msra.mxu0 0
        %1439 = vmatprep.subr.bf16.mxu0 0
        %1440 = vmatpush1.bf16.msra.mxu0 0
        %1441 = vmatprep.subr.bf16.mxu0 0
        %1442 = vmatpush1.bf16.msra.mxu0 0
        %1443 = vmatprep.subr.bf16.mxu0 0
        %1444 = vmatpush1.bf16.msra.mxu0 0
        %1445 = vmatprep.subr.bf16.mxu0 0
        %1446 = vmatpush1.bf16.msra.mxu0 0
        %1447 = vmatprep.subr.bf16.mxu0 0
        %1448 = vmatpush1.bf16.msra.mxu0 0
        %1449 = vmatprep.subr.bf16.mxu0 0
        %1450 = vmatpush1.bf16.msra.mxu0 0
        %1451 = vmatprep.subr.bf16.mxu0 0
        %1452 = vmatpush1.bf16.msra.mxu0 %v1435
        %1453 = vmatprep.subr.bf16.mxu0 0
        %1454 = vmatpush2.bf16.msra.mxu0 0
        %1455 = vmatprep.subr.bf16.mxu0 0
        %1456 = vmatpush2.bf16.msra.mxu0 0
        %1457 = vmatprep.subr.bf16.mxu0 0
        %1458 = vmatpush2.bf16.msra.mxu0 0
        %1459 = vmatprep.subr.bf16.mxu0 0
        %1460 = vmatpush2.bf16.msra.mxu0 0
        %1461 = vmatprep.subr.bf16.mxu0 0
        %1462 = vmatpush2.bf16.msra.mxu0 0
        %1463 = vmatprep.subr.bf16.mxu0 0
        %1464 = vmatpush2.bf16.msra.mxu0 0
        %1465 = vmatprep.subr.bf16.mxu0 0
        %1466 = vmatpush2.bf16.msra.mxu0 0
        %1467 = vmatprep.subr.bf16.mxu0 0
        %1468 = vmatpush2.bf16.msra.mxu0 0
        %1469 = vmatprep.mubr.bf16.mxu0 0
        %1470 = vmatmul.mubr.bf16.gmra.mxu0 %v1387
        %v1471 = vpop.f32.mrf.mxu0
        %v1472 = vadd.f32 0.0, %v1471
        %v1473 = vpop.f32.mrf.mxu0
        %v1474 = vpop.f32.mrf.mxu0
        %v1475 = vadd.f32 0.0, %v1474
        %v1476 = vpop.f32.mrf.mxu0
        %1477 = vmatprep.mubr.bf16.mxu0 0
        %1478 = vmatmul.mubr.bf16.gmra.mxu0 %v1390
        %v1479 = vpop.f32.mrf.mxu0
        %v1480 = vadd.f32 0.0, %v1479
        %v1481 = vpop.f32.mrf.mxu0
        %v1482 = vpop.f32.mrf.mxu0
        %v1483 = vadd.f32 0.0, %v1482
        %v1484 = vpop.f32.mrf.mxu0
        %1485 = vmatprep.mubr.bf16.mxu0 0
        %1486 = vmatmul.mubr.bf16.gmra.mxu0 %v1393
        %v1487 = vpop.f32.mrf.mxu0
        %v1488 = vadd.f32 0.0, %v1487
        %v1489 = vpop.f32.mrf.mxu0
        %v1490 = vpop.f32.mrf.mxu0
        %v1491 = vadd.f32 0.0, %v1490
        %v1492 = vpop.f32.mrf.mxu0
        %1493 = vmatprep.mubr.bf16.mxu0 0
        %1494 = vmatmul.mubr.bf16.gmra.mxu0 %v1396
        %v1495 = vpop.f32.mrf.mxu0
        %v1496 = vadd.f32 0.0, %v1495
        %v1497 = vpop.f32.mrf.mxu0
        %v1498 = vpop.f32.mrf.mxu0
        %v1499 = vadd.f32 0.0, %v1498
        %v1500 = vpop.f32.mrf.mxu0
        %1501 = vmatprep.mubr.bf16.mxu0 0
        %1502 = vmatmul.mubr.bf16.gmra.mxu0 %v1399
        %v1503 = vpop.f32.mrf.mxu0
        %v1504 = vadd.f32 0.0, %v1503
        %v1505 = vpop.f32.mrf.mxu0
        %v1506 = vpop.f32.mrf.mxu0
        %v1507 = vadd.f32 0.0, %v1506
        %v1508 = vpop.f32.mrf.mxu0
        %1509 = vmatprep.mubr.bf16.mxu0 0
        %1510 = vmatmul.mubr.bf16.gmra.mxu0 %v1402
        %v1511 = vpop.f32.mrf.mxu0
        %v1512 = vadd.f32 0.0, %v1511
        %v1513 = vpop.f32.mrf.mxu0
        %v1514 = vpop.f32.mrf.mxu0
        %v1515 = vadd.f32 0.0, %v1514
        %v1516 = vpop.f32.mrf.mxu0
        %1517 = vmatprep.mubr.bf16.mxu0 0
        %1518 = vmatmul.mubr.bf16.gmra.mxu0 %v1405
        %v1519 = vpop.f32.mrf.mxu0
        %v1520 = vadd.f32 0.0, %v1519
        %v1521 = vpop.f32.mrf.mxu0
        %v1522 = vpop.f32.mrf.mxu0
        %v1523 = vadd.f32 0.0, %v1522
        %v1524 = vpop.f32.mrf.mxu0
        %1525 = vmatprep.mubr.bf16.mxu0 0
        %1526 = vmatmul.mubr.bf16.gmra.mxu0 %v1408
        %v1527 = vpop.f32.mrf.mxu0
        %v1528 = vadd.f32 0.0, %v1527
        %v1529 = vpop.f32.mrf.mxu0
        %v1530 = vpop.f32.mrf.mxu0
        %v1531 = vadd.f32 0.0, %v1530
        %v1532 = vpop.f32.mrf.mxu0
        %1533 = vmatprep.mubr.bf16.mxu0 0
        %1534 = vmatmul.mubr.bf16.gmra.mxu0 %v1411
        %v1535 = vpop.f32.mrf.mxu0
        %v1536 = vadd.f32 0.0, %v1535
        %v1537 = vpop.f32.mrf.mxu0
        %v1538 = vpop.f32.mrf.mxu0
        %v1539 = vadd.f32 0.0, %v1538
        %v1540 = vpop.f32.mrf.mxu0
        %1541 = vmatprep.mubr.bf16.mxu0 0
        %1542 = vmatmul.mubr.bf16.gmra.mxu0 %v1414
        %v1543 = vpop.f32.mrf.mxu0
        %v1544 = vadd.f32 0.0, %v1543
        %v1545 = vpop.f32.mrf.mxu0
        %v1546 = vpop.f32.mrf.mxu0
        %v1547 = vadd.f32 0.0, %v1546
        %v1548 = vpop.f32.mrf.mxu0
        %1549 = vmatprep.mubr.bf16.mxu0 0
        %1550 = vmatmul.mubr.bf16.gmra.mxu0 %v1417
        %v1551 = vpop.f32.mrf.mxu0
        %v1552 = vadd.f32 0.0, %v1551
        %v1553 = vpop.f32.mrf.mxu0
        %v1554 = vpop.f32.mrf.mxu0
        %v1555 = vadd.f32 0.0, %v1554
        %v1556 = vpop.f32.mrf.mxu0
        %1557 = vmatprep.mubr.bf16.mxu0 0
        %1558 = vmatmul.mubr.bf16.gmra.mxu0 %v1420
        %v1559 = vpop.f32.mrf.mxu0
        %v1560 = vadd.f32 0.0, %v1559
        %v1561 = vpop.f32.mrf.mxu0
        %v1562 = vpop.f32.mrf.mxu0
        %v1563 = vadd.f32 0.0, %v1562
        %v1564 = vpop.f32.mrf.mxu0
        %1565 = vmatprep.mubr.bf16.mxu0 0
        %1566 = vmatmul.mubr.bf16.gmra.mxu0 %v1423
        %v1567 = vpop.f32.mrf.mxu0
        %v1568 = vadd.f32 0.0, %v1567
        %v1569 = vpop.f32.mrf.mxu0
        %v1570 = vpop.f32.mrf.mxu0
        %v1571 = vadd.f32 0.0, %v1570
        %v1572 = vpop.f32.mrf.mxu0
        %1573 = vmatprep.mubr.bf16.mxu0 0
        %1574 = vmatmul.mubr.bf16.gmra.mxu0 %v1426
        %v1575 = vpop.f32.mrf.mxu0
        %v1576 = vadd.f32 0.0, %v1575
        %v1577 = vpop.f32.mrf.mxu0
        %v1578 = vpop.f32.mrf.mxu0
        %v1579 = vadd.f32 0.0, %v1578
        %v1580 = vpop.f32.mrf.mxu0
        %1581 = vmatprep.mubr.bf16.mxu0 0
        %1582 = vmatmul.mubr.bf16.gmra.mxu0 %v1429
        %v1583 = vpop.f32.mrf.mxu0
        %v1584 = vadd.f32 0.0, %v1583
        %v1585 = vpop.f32.mrf.mxu0
        %v1586 = vpop.f32.mrf.mxu0
        %v1587 = vadd.f32 0.0, %v1586
        %v1588 = vpop.f32.mrf.mxu0
        %1589 = vmatprep.mubr.bf16.mxu0 0
        %1590 = vmatmul.mubr.bf16.gmra.mxu0 %v1432
        %v1591 = vpop.f32.mrf.mxu0
        %v1592 = vadd.f32 0.0, %v1591
        %v1593 = vpop.f32.mrf.mxu0
        %v1594 = vpop.f32.mrf.mxu0
        %v1595 = vadd.f32 0.0, %v1594
        %v1596 = vpop.f32.mrf.mxu0
        %1597 = vdwg.mxu0
        %v1598 = vadd.f32 %v1304, %v1472
        %v1599 = vadd.f32 %v1305, %v1475
        %v1600 = vadd.f32 %v1306, %v1480
        %v1601 = vadd.f32 %v1307, %v1483
        %v1602 = vadd.f32 %v1308, %v1488
        %v1603 = vadd.f32 %v1309, %v1491
        %v1604 = vadd.f32 %v1310, %v1496
        %v1605 = vadd.f32 %v1311, %v1499
        %v1606 = vadd.f32 %v1312, %v1504
        %v1607 = vadd.f32 %v1313, %v1507
        %v1608 = vadd.f32 %v1314, %v1512
        %v1609 = vadd.f32 %v1315, %v1515
        %v1610 = vadd.f32 %v1316, %v1520
        %v1611 = vadd.f32 %v1317, %v1523
        %v1612 = vadd.f32 %v1318, %v1528
        %v1613 = vadd.f32 %v1319, %v1531
        %v1614 = vadd.f32 %v1320, %v1536
        %v1615 = vadd.f32 %v1321, %v1539
        %v1616 = vadd.f32 %v1322, %v1544
        %v1617 = vadd.f32 %v1323, %v1547
        %v1618 = vadd.f32 %v1324, %v1552
        %v1619 = vadd.f32 %v1325, %v1555
        %v1620 = vadd.f32 %v1326, %v1560
        %v1621 = vadd.f32 %v1327, %v1563
        %v1622 = vadd.f32 %v1328, %v1568
        %v1623 = vadd.f32 %v1329, %v1571
        %v1624 = vadd.f32 %v1330, %v1576
        %v1625 = vadd.f32 %v1331, %v1579
        %v1626 = vadd.f32 %v1332, %v1584
        %v1627 = vadd.f32 %v1333, %v1587
        %v1628 = vadd.f32 %v1334, %v1592
        %v1629 = vadd.f32 %v1335, %v1595
        %v1630 = vld [vmem:[%s1041 + $0x2] sm:$0xff]
        %v1631 = vld [vmem:[%s1041 + $0xa] sm:$0xff]
        %v1632 = vld [vmem:[%s1041 + $0x1a] sm:$0xff]
        %v1633 = vld [vmem:[%s1041 + $0x22] sm:$0xff]
        %v1634 = vld [vmem:[%s1041 + $0x32] sm:$0xff]
        %v1635 = vld [vmem:[%s1041 + $0x3a] sm:$0xff]
        %v1636 = vld [vmem:[%s1041 + $0x4a] sm:$0xff]
        %v1637 = vld [vmem:[%s1041 + $0x52] sm:$0xff]
        %v1638 = vld [vmem:[%s1041 + $0x62] sm:$0xff]
        %v1639 = vld [vmem:[%s1041 + $0x6a] sm:$0xff]
        %v1640 = vld [vmem:[%s1041 + $0x7a] sm:$0xff]
        %v1641 = vld [vmem:[%s1041 + $0x82] sm:$0xff]
        %v1642 = vld [vmem:[%s1041 + $0x92] sm:$0xff]
        %v1643 = vld [vmem:[%s1041 + $0x9a] sm:$0xff]
        %v1644 = vld [vmem:[%s1041 + $0xaa] sm:$0xff]
        %v1645 = vld [vmem:[%s1041 + $0xb2] sm:$0xff]
        %v1646 = vld [vmem:[%s1041 + $0xc2] sm:$0xff]
        %v1647 = vld [vmem:[%s1041 + $0xca] sm:$0xff]
        %v1648 = vld [vmem:[%s1041 + $0xda] sm:$0xff]
        %v1649 = vld [vmem:[%s1041 + $0xe2] sm:$0xff]
        %v1650 = vld [vmem:[%s1041 + $0xf2] sm:$0xff]
        %v1651 = vld [vmem:[%s1041 + $0xfa] sm:$0xff]
        %v1652 = vld [vmem:[%s1041 + $0x10a] sm:$0xff]
        %v1653 = vld [vmem:[%s1041 + $0x112] sm:$0xff]
        %v1654 = vld [vmem:[%s1041 + $0x122] sm:$0xff]
        %v1655 = vld [vmem:[%s1041 + $0x12a] sm:$0xff]
        %v1656 = vld [vmem:[%s1041 + $0x13a] sm:$0xff]
        %v1657 = vld [vmem:[%s1041 + $0x142] sm:$0xff]
        %v1658 = vld [vmem:[%s1041 + $0x152] sm:$0xff]
        %v1659 = vld [vmem:[%s1041 + $0x15a] sm:$0xff]
        %v1660 = vld [vmem:[%s1041 + $0x16a] sm:$0xff]
        %v1661 = vld [vmem:[%s1041 + $0x172] sm:$0xff]
        %v1662 = vpack.c.bf16 %v1631, %v1630
        %v1663 = vpack.c.bf16 %v1633, %v1632
        %v1664 = vpack.c.bf16 %v1635, %v1634
        %v1665 = vpack.c.bf16 %v1637, %v1636
        %v1666 = vpack.c.bf16 %v1639, %v1638
        %v1667 = vpack.c.bf16 %v1641, %v1640
        %v1668 = vpack.c.bf16 %v1643, %v1642
        %v1669 = vpack.c.bf16 %v1645, %v1644
        %v1670 = vpack.c.bf16 %v1647, %v1646
        %v1671 = vpack.c.bf16 %v1649, %v1648
        %v1672 = vpack.c.bf16 %v1651, %v1650
        %v1673 = vpack.c.bf16 %v1653, %v1652
        %v1674 = vpack.c.bf16 %v1655, %v1654
        %v1675 = vpack.c.bf16 %v1657, %v1656
        %v1676 = vpack.c.bf16 %v1659, %v1658
        %v1677 = vpack.c.bf16 %v1661, %v1660
        %s1678 = scalar_lea.vmem %s1, 10
        %v1679 = vld [vmem:[%s1678] sm:$0x3]
        %v1681 = vsel %vm319, %v1662, 0
        %v1684 = vsel %vm319, %v1663, 0
        %v1687 = vsel %vm319, %v1664, 0
        %v1690 = vsel %vm319, %v1665, 0
        %v1693 = vsel %vm319, %v1666, 0
        %v1696 = vsel %vm319, %v1667, 0
        %v1699 = vsel %vm319, %v1668, 0
        %v1702 = vsel %vm319, %v1669, 0
        %v1705 = vsel %vm319, %v1670, 0
        %v1708 = vsel %vm319, %v1671, 0
        %v1711 = vsel %vm319, %v1672, 0
        %v1714 = vsel %vm319, %v1673, 0
        %v1717 = vsel %vm319, %v1674, 0
        %v1720 = vsel %vm319, %v1675, 0
        %v1723 = vsel %vm319, %v1676, 0
        %v1726 = vsel %vm319, %v1677, 0
        %v1729 = vsel %vm368, %v1679, 0
        %1731 = vmatprep.subr.bf16.mxu0 0
        %1732 = vmatpush1.bf16.msra.mxu0 0
        %1733 = vmatprep.subr.bf16.mxu0 0
        %1734 = vmatpush1.bf16.msra.mxu0 0
        %1735 = vmatprep.subr.bf16.mxu0 0
        %1736 = vmatpush1.bf16.msra.mxu0 0
        %1737 = vmatprep.subr.bf16.mxu0 0
        %1738 = vmatpush1.bf16.msra.mxu0 0
        %1739 = vmatprep.subr.bf16.mxu0 0
        %1740 = vmatpush1.bf16.msra.mxu0 0
        %1741 = vmatprep.subr.bf16.mxu0 0
        %1742 = vmatpush1.bf16.msra.mxu0 0
        %1743 = vmatprep.subr.bf16.mxu0 0
        %1744 = vmatpush1.bf16.msra.mxu0 0
        %1745 = vmatprep.subr.bf16.mxu0 0
        %1746 = vmatpush1.bf16.msra.mxu0 %v1729
        %1747 = vmatprep.subr.bf16.mxu0 0
        %1748 = vmatpush2.bf16.msra.mxu0 0
        %1749 = vmatprep.subr.bf16.mxu0 0
        %1750 = vmatpush2.bf16.msra.mxu0 0
        %1751 = vmatprep.subr.bf16.mxu0 0
        %1752 = vmatpush2.bf16.msra.mxu0 0
        %1753 = vmatprep.subr.bf16.mxu0 0
        %1754 = vmatpush2.bf16.msra.mxu0 0
        %1755 = vmatprep.subr.bf16.mxu0 0
        %1756 = vmatpush2.bf16.msra.mxu0 0
        %1757 = vmatprep.subr.bf16.mxu0 0
        %1758 = vmatpush2.bf16.msra.mxu0 0
        %1759 = vmatprep.subr.bf16.mxu0 0
        %1760 = vmatpush2.bf16.msra.mxu0 0
        %1761 = vmatprep.subr.bf16.mxu0 0
        %1762 = vmatpush2.bf16.msra.mxu0 0
        %1763 = vmatprep.mubr.bf16.mxu0 0
        %1764 = vmatmul.mubr.bf16.gmra.mxu0 %v1681
        %v1765 = vpop.f32.mrf.mxu0
        %v1766 = vadd.f32 0.0, %v1765
        %v1767 = vpop.f32.mrf.mxu0
        %v1768 = vpop.f32.mrf.mxu0
        %v1769 = vadd.f32 0.0, %v1768
        %v1770 = vpop.f32.mrf.mxu0
        %1771 = vmatprep.mubr.bf16.mxu0 0
        %1772 = vmatmul.mubr.bf16.gmra.mxu0 %v1684
        %v1773 = vpop.f32.mrf.mxu0
        %v1774 = vadd.f32 0.0, %v1773
        %v1775 = vpop.f32.mrf.mxu0
        %v1776 = vpop.f32.mrf.mxu0
        %v1777 = vadd.f32 0.0, %v1776
        %v1778 = vpop.f32.mrf.mxu0
        %1779 = vmatprep.mubr.bf16.mxu0 0
        %1780 = vmatmul.mubr.bf16.gmra.mxu0 %v1687
        %v1781 = vpop.f32.mrf.mxu0
        %v1782 = vadd.f32 0.0, %v1781
        %v1783 = vpop.f32.mrf.mxu0
        %v1784 = vpop.f32.mrf.mxu0
        %v1785 = vadd.f32 0.0, %v1784
        %v1786 = vpop.f32.mrf.mxu0
        %1787 = vmatprep.mubr.bf16.mxu0 0
        %1788 = vmatmul.mubr.bf16.gmra.mxu0 %v1690
        %v1789 = vpop.f32.mrf.mxu0
        %v1790 = vadd.f32 0.0, %v1789
        %v1791 = vpop.f32.mrf.mxu0
        %v1792 = vpop.f32.mrf.mxu0
        %v1793 = vadd.f32 0.0, %v1792
        %v1794 = vpop.f32.mrf.mxu0
        %1795 = vmatprep.mubr.bf16.mxu0 0
        %1796 = vmatmul.mubr.bf16.gmra.mxu0 %v1693
        %v1797 = vpop.f32.mrf.mxu0
        %v1798 = vadd.f32 0.0, %v1797
        %v1799 = vpop.f32.mrf.mxu0
        %v1800 = vpop.f32.mrf.mxu0
        %v1801 = vadd.f32 0.0, %v1800
        %v1802 = vpop.f32.mrf.mxu0
        %1803 = vmatprep.mubr.bf16.mxu0 0
        %1804 = vmatmul.mubr.bf16.gmra.mxu0 %v1696
        %v1805 = vpop.f32.mrf.mxu0
        %v1806 = vadd.f32 0.0, %v1805
        %v1807 = vpop.f32.mrf.mxu0
        %v1808 = vpop.f32.mrf.mxu0
        %v1809 = vadd.f32 0.0, %v1808
        %v1810 = vpop.f32.mrf.mxu0
        %1811 = vmatprep.mubr.bf16.mxu0 0
        %1812 = vmatmul.mubr.bf16.gmra.mxu0 %v1699
        %v1813 = vpop.f32.mrf.mxu0
        %v1814 = vadd.f32 0.0, %v1813
        %v1815 = vpop.f32.mrf.mxu0
        %v1816 = vpop.f32.mrf.mxu0
        %v1817 = vadd.f32 0.0, %v1816
        %v1818 = vpop.f32.mrf.mxu0
        %1819 = vmatprep.mubr.bf16.mxu0 0
        %1820 = vmatmul.mubr.bf16.gmra.mxu0 %v1702
        %v1821 = vpop.f32.mrf.mxu0
        %v1822 = vadd.f32 0.0, %v1821
        %v1823 = vpop.f32.mrf.mxu0
        %v1824 = vpop.f32.mrf.mxu0
        %v1825 = vadd.f32 0.0, %v1824
        %v1826 = vpop.f32.mrf.mxu0
        %1827 = vmatprep.mubr.bf16.mxu0 0
        %1828 = vmatmul.mubr.bf16.gmra.mxu0 %v1705
        %v1829 = vpop.f32.mrf.mxu0
        %v1830 = vadd.f32 0.0, %v1829
        %v1831 = vpop.f32.mrf.mxu0
        %v1832 = vpop.f32.mrf.mxu0
        %v1833 = vadd.f32 0.0, %v1832
        %v1834 = vpop.f32.mrf.mxu0
        %1835 = vmatprep.mubr.bf16.mxu0 0
        %1836 = vmatmul.mubr.bf16.gmra.mxu0 %v1708
        %v1837 = vpop.f32.mrf.mxu0
        %v1838 = vadd.f32 0.0, %v1837
        %v1839 = vpop.f32.mrf.mxu0
        %v1840 = vpop.f32.mrf.mxu0
        %v1841 = vadd.f32 0.0, %v1840
        %v1842 = vpop.f32.mrf.mxu0
        %1843 = vmatprep.mubr.bf16.mxu0 0
        %1844 = vmatmul.mubr.bf16.gmra.mxu0 %v1711
        %v1845 = vpop.f32.mrf.mxu0
        %v1846 = vadd.f32 0.0, %v1845
        %v1847 = vpop.f32.mrf.mxu0
        %v1848 = vpop.f32.mrf.mxu0
        %v1849 = vadd.f32 0.0, %v1848
        %v1850 = vpop.f32.mrf.mxu0
        %1851 = vmatprep.mubr.bf16.mxu0 0
        %1852 = vmatmul.mubr.bf16.gmra.mxu0 %v1714
        %v1853 = vpop.f32.mrf.mxu0
        %v1854 = vadd.f32 0.0, %v1853
        %v1855 = vpop.f32.mrf.mxu0
        %v1856 = vpop.f32.mrf.mxu0
        %v1857 = vadd.f32 0.0, %v1856
        %v1858 = vpop.f32.mrf.mxu0
        %1859 = vmatprep.mubr.bf16.mxu0 0
        %1860 = vmatmul.mubr.bf16.gmra.mxu0 %v1717
        %v1861 = vpop.f32.mrf.mxu0
        %v1862 = vadd.f32 0.0, %v1861
        %v1863 = vpop.f32.mrf.mxu0
        %v1864 = vpop.f32.mrf.mxu0
        %v1865 = vadd.f32 0.0, %v1864
        %v1866 = vpop.f32.mrf.mxu0
        %1867 = vmatprep.mubr.bf16.mxu0 0
        %1868 = vmatmul.mubr.bf16.gmra.mxu0 %v1720
        %v1869 = vpop.f32.mrf.mxu0
        %v1870 = vadd.f32 0.0, %v1869
        %v1871 = vpop.f32.mrf.mxu0
        %v1872 = vpop.f32.mrf.mxu0
        %v1873 = vadd.f32 0.0, %v1872
        %v1874 = vpop.f32.mrf.mxu0
        %1875 = vmatprep.mubr.bf16.mxu0 0
        %1876 = vmatmul.mubr.bf16.gmra.mxu0 %v1723
        %v1877 = vpop.f32.mrf.mxu0
        %v1878 = vadd.f32 0.0, %v1877
        %v1879 = vpop.f32.mrf.mxu0
        %v1880 = vpop.f32.mrf.mxu0
        %v1881 = vadd.f32 0.0, %v1880
        %v1882 = vpop.f32.mrf.mxu0
        %1883 = vmatprep.mubr.bf16.mxu0 0
        %1884 = vmatmul.mubr.bf16.gmra.mxu0 %v1726
        %v1885 = vpop.f32.mrf.mxu0
        %v1886 = vadd.f32 0.0, %v1885
        %v1887 = vpop.f32.mrf.mxu0
        %v1888 = vpop.f32.mrf.mxu0
        %v1889 = vadd.f32 0.0, %v1888
        %v1890 = vpop.f32.mrf.mxu0
        %1891 = vdwg.mxu0
        %v1892 = vadd.f32 %v1598, %v1766
        %v1893 = vadd.f32 %v1599, %v1769
        %v1894 = vadd.f32 %v1600, %v1774
        %v1895 = vadd.f32 %v1601, %v1777
        %v1896 = vadd.f32 %v1602, %v1782
        %v1897 = vadd.f32 %v1603, %v1785
        %v1898 = vadd.f32 %v1604, %v1790
        %v1899 = vadd.f32 %v1605, %v1793
        %v1900 = vadd.f32 %v1606, %v1798
        %v1901 = vadd.f32 %v1607, %v1801
        %v1902 = vadd.f32 %v1608, %v1806
        %v1903 = vadd.f32 %v1609, %v1809
        %v1904 = vadd.f32 %v1610, %v1814
        %v1905 = vadd.f32 %v1611, %v1817
        %v1906 = vadd.f32 %v1612, %v1822
        %v1907 = vadd.f32 %v1613, %v1825
        %v1908 = vadd.f32 %v1614, %v1830
        %v1909 = vadd.f32 %v1615, %v1833
        %v1910 = vadd.f32 %v1616, %v1838
        %v1911 = vadd.f32 %v1617, %v1841
        %v1912 = vadd.f32 %v1618, %v1846
        %v1913 = vadd.f32 %v1619, %v1849
        %v1914 = vadd.f32 %v1620, %v1854
        %v1915 = vadd.f32 %v1621, %v1857
        %v1916 = vadd.f32 %v1622, %v1862
        %v1917 = vadd.f32 %v1623, %v1865
        %v1918 = vadd.f32 %v1624, %v1870
        %v1919 = vadd.f32 %v1625, %v1873
        %v1920 = vadd.f32 %v1626, %v1878
        %v1921 = vadd.f32 %v1627, %v1881
        %v1922 = vadd.f32 %v1628, %v1886
        %v1923 = vadd.f32 %v1629, %v1889
        %s1924 = sadd.s32 %s217, 2
        %s1925 = smul.u32 %s1924, 24
        %s1926 = scalar_lea.vmem %s205, %s1925
        %v1927 = vld [vmem:[%s1926] sm:$0xff]
        %v1928 = vld [vmem:[%s1926 + $0x8] sm:$0xff]
        %v1929 = vld [vmem:[%s1926 + $0x18] sm:$0xff]
        %v1930 = vld [vmem:[%s1926 + $0x20] sm:$0xff]
        %v1931 = vld [vmem:[%s1926 + $0x30] sm:$0xff]
        %v1932 = vld [vmem:[%s1926 + $0x38] sm:$0xff]
        %v1933 = vld [vmem:[%s1926 + $0x48] sm:$0xff]
        %v1934 = vld [vmem:[%s1926 + $0x50] sm:$0xff]
        %v1935 = vld [vmem:[%s1926 + $0x60] sm:$0xff]
        %v1936 = vld [vmem:[%s1926 + $0x68] sm:$0xff]
        %v1937 = vld [vmem:[%s1926 + $0x78] sm:$0xff]
        %v1938 = vld [vmem:[%s1926 + $0x80] sm:$0xff]
        %v1939 = vld [vmem:[%s1926 + $0x90] sm:$0xff]
        %v1940 = vld [vmem:[%s1926 + $0x98] sm:$0xff]
        %v1941 = vld [vmem:[%s1926 + $0xa8] sm:$0xff]
        %v1942 = vld [vmem:[%s1926 + $0xb0] sm:$0xff]
        %v1943 = vld [vmem:[%s1926 + $0xc0] sm:$0xff]
        %v1944 = vld [vmem:[%s1926 + $0xc8] sm:$0xff]
        %v1945 = vld [vmem:[%s1926 + $0xd8] sm:$0xff]
        %v1946 = vld [vmem:[%s1926 + $0xe0] sm:$0xff]
        %v1947 = vld [vmem:[%s1926 + $0xf0] sm:$0xff]
        %v1948 = vld [vmem:[%s1926 + $0xf8] sm:$0xff]
        %v1949 = vld [vmem:[%s1926 + $0x108] sm:$0xff]
        %v1950 = vld [vmem:[%s1926 + $0x110] sm:$0xff]
        %v1951 = vld [vmem:[%s1926 + $0x120] sm:$0xff]
        %v1952 = vld [vmem:[%s1926 + $0x128] sm:$0xff]
        %v1953 = vld [vmem:[%s1926 + $0x138] sm:$0xff]
        %v1954 = vld [vmem:[%s1926 + $0x140] sm:$0xff]
        %v1955 = vld [vmem:[%s1926 + $0x150] sm:$0xff]
        %v1956 = vld [vmem:[%s1926 + $0x158] sm:$0xff]
        %v1957 = vld [vmem:[%s1926 + $0x168] sm:$0xff]
        %v1958 = vld [vmem:[%s1926 + $0x170] sm:$0xff]
        %v1959 = vpack.c.bf16 %v1928, %v1927
        %v1960 = vpack.c.bf16 %v1930, %v1929
        %v1961 = vpack.c.bf16 %v1932, %v1931
        %v1962 = vpack.c.bf16 %v1934, %v1933
        %v1963 = vpack.c.bf16 %v1936, %v1935
        %v1964 = vpack.c.bf16 %v1938, %v1937
        %v1965 = vpack.c.bf16 %v1940, %v1939
        %v1966 = vpack.c.bf16 %v1942, %v1941
        %v1967 = vpack.c.bf16 %v1944, %v1943
        %v1968 = vpack.c.bf16 %v1946, %v1945
        %v1969 = vpack.c.bf16 %v1948, %v1947
        %v1970 = vpack.c.bf16 %v1950, %v1949
        %v1971 = vpack.c.bf16 %v1952, %v1951
        %v1972 = vpack.c.bf16 %v1954, %v1953
        %v1973 = vpack.c.bf16 %v1956, %v1955
        %v1974 = vpack.c.bf16 %v1958, %v1957
        %s1975 = scalar_lea.vmem %s1, 12
        %v1976 = vld [vmem:[%s1975] sm:$0x3]
        %v1978 = vsel %vm319, %v1959, 0
        %v1981 = vsel %vm319, %v1960, 0
        %v1984 = vsel %vm319, %v1961, 0
        %v1987 = vsel %vm319, %v1962, 0
        %v1990 = vsel %vm319, %v1963, 0
        %v1993 = vsel %vm319, %v1964, 0
        %v1996 = vsel %vm319, %v1965, 0
        %v1999 = vsel %vm319, %v1966, 0
        %v2002 = vsel %vm319, %v1967, 0
        %v2005 = vsel %vm319, %v1968, 0
        %v2008 = vsel %vm319, %v1969, 0
        %v2011 = vsel %vm319, %v1970, 0
        %v2014 = vsel %vm319, %v1971, 0
        %v2017 = vsel %vm319, %v1972, 0
        %v2020 = vsel %vm319, %v1973, 0
        %v2023 = vsel %vm319, %v1974, 0
        %v2026 = vsel %vm368, %v1976, 0
        %2028 = vmatprep.subr.bf16.mxu0 0
        %2029 = vmatpush1.bf16.msra.mxu0 0
        %2030 = vmatprep.subr.bf16.mxu0 0
        %2031 = vmatpush1.bf16.msra.mxu0 0
        %2032 = vmatprep.subr.bf16.mxu0 0
        %2033 = vmatpush1.bf16.msra.mxu0 0
        %2034 = vmatprep.subr.bf16.mxu0 0
        %2035 = vmatpush1.bf16.msra.mxu0 0
        %2036 = vmatprep.subr.bf16.mxu0 0
        %2037 = vmatpush1.bf16.msra.mxu0 0
        %2038 = vmatprep.subr.bf16.mxu0 0
        %2039 = vmatpush1.bf16.msra.mxu0 0
        %2040 = vmatprep.subr.bf16.mxu0 0
        %2041 = vmatpush1.bf16.msra.mxu0 0
        %2042 = vmatprep.subr.bf16.mxu0 0
        %2043 = vmatpush1.bf16.msra.mxu0 %v2026
        %2044 = vmatprep.subr.bf16.mxu0 0
        %2045 = vmatpush2.bf16.msra.mxu0 0
        %2046 = vmatprep.subr.bf16.mxu0 0
        %2047 = vmatpush2.bf16.msra.mxu0 0
        %2048 = vmatprep.subr.bf16.mxu0 0
        %2049 = vmatpush2.bf16.msra.mxu0 0
        %2050 = vmatprep.subr.bf16.mxu0 0
        %2051 = vmatpush2.bf16.msra.mxu0 0
        %2052 = vmatprep.subr.bf16.mxu0 0
        %2053 = vmatpush2.bf16.msra.mxu0 0
        %2054 = vmatprep.subr.bf16.mxu0 0
        %2055 = vmatpush2.bf16.msra.mxu0 0
        %2056 = vmatprep.subr.bf16.mxu0 0
        %2057 = vmatpush2.bf16.msra.mxu0 0
        %2058 = vmatprep.subr.bf16.mxu0 0
        %2059 = vmatpush2.bf16.msra.mxu0 0
        %2060 = vmatprep.mubr.bf16.mxu0 0
        %2061 = vmatmul.mubr.bf16.gmra.mxu0 %v1978
        %v2062 = vpop.f32.mrf.mxu0
        %v2063 = vadd.f32 0.0, %v2062
        %v2064 = vpop.f32.mrf.mxu0
        %v2065 = vpop.f32.mrf.mxu0
        %v2066 = vadd.f32 0.0, %v2065
        %v2067 = vpop.f32.mrf.mxu0
        %2068 = vmatprep.mubr.bf16.mxu0 0
        %2069 = vmatmul.mubr.bf16.gmra.mxu0 %v1981
        %v2070 = vpop.f32.mrf.mxu0
        %v2071 = vadd.f32 0.0, %v2070
        %v2072 = vpop.f32.mrf.mxu0
        %v2073 = vpop.f32.mrf.mxu0
        %v2074 = vadd.f32 0.0, %v2073
        %v2075 = vpop.f32.mrf.mxu0
        %2076 = vmatprep.mubr.bf16.mxu0 0
        %2077 = vmatmul.mubr.bf16.gmra.mxu0 %v1984
        %v2078 = vpop.f32.mrf.mxu0
        %v2079 = vadd.f32 0.0, %v2078
        %v2080 = vpop.f32.mrf.mxu0
        %v2081 = vpop.f32.mrf.mxu0
        %v2082 = vadd.f32 0.0, %v2081
        %v2083 = vpop.f32.mrf.mxu0
        %2084 = vmatprep.mubr.bf16.mxu0 0
        %2085 = vmatmul.mubr.bf16.gmra.mxu0 %v1987
        %v2086 = vpop.f32.mrf.mxu0
        %v2087 = vadd.f32 0.0, %v2086
        %v2088 = vpop.f32.mrf.mxu0
        %v2089 = vpop.f32.mrf.mxu0
        %v2090 = vadd.f32 0.0, %v2089
        %v2091 = vpop.f32.mrf.mxu0
        %2092 = vmatprep.mubr.bf16.mxu0 0
        %2093 = vmatmul.mubr.bf16.gmra.mxu0 %v1990
        %v2094 = vpop.f32.mrf.mxu0
        %v2095 = vadd.f32 0.0, %v2094
        %v2096 = vpop.f32.mrf.mxu0
        %v2097 = vpop.f32.mrf.mxu0
        %v2098 = vadd.f32 0.0, %v2097
        %v2099 = vpop.f32.mrf.mxu0
        %2100 = vmatprep.mubr.bf16.mxu0 0
        %2101 = vmatmul.mubr.bf16.gmra.mxu0 %v1993
        %v2102 = vpop.f32.mrf.mxu0
        %v2103 = vadd.f32 0.0, %v2102
        %v2104 = vpop.f32.mrf.mxu0
        %v2105 = vpop.f32.mrf.mxu0
        %v2106 = vadd.f32 0.0, %v2105
        %v2107 = vpop.f32.mrf.mxu0
        %2108 = vmatprep.mubr.bf16.mxu0 0
        %2109 = vmatmul.mubr.bf16.gmra.mxu0 %v1996
        %v2110 = vpop.f32.mrf.mxu0
        %v2111 = vadd.f32 0.0, %v2110
        %v2112 = vpop.f32.mrf.mxu0
        %v2113 = vpop.f32.mrf.mxu0
        %v2114 = vadd.f32 0.0, %v2113
        %v2115 = vpop.f32.mrf.mxu0
        %2116 = vmatprep.mubr.bf16.mxu0 0
        %2117 = vmatmul.mubr.bf16.gmra.mxu0 %v1999
        %v2118 = vpop.f32.mrf.mxu0
        %v2119 = vadd.f32 0.0, %v2118
        %v2120 = vpop.f32.mrf.mxu0
        %v2121 = vpop.f32.mrf.mxu0
        %v2122 = vadd.f32 0.0, %v2121
        %v2123 = vpop.f32.mrf.mxu0
        %2124 = vmatprep.mubr.bf16.mxu0 0
        %2125 = vmatmul.mubr.bf16.gmra.mxu0 %v2002
        %v2126 = vpop.f32.mrf.mxu0
        %v2127 = vadd.f32 0.0, %v2126
        %v2128 = vpop.f32.mrf.mxu0
        %v2129 = vpop.f32.mrf.mxu0
        %v2130 = vadd.f32 0.0, %v2129
        %v2131 = vpop.f32.mrf.mxu0
        %2132 = vmatprep.mubr.bf16.mxu0 0
        %2133 = vmatmul.mubr.bf16.gmra.mxu0 %v2005
        %v2134 = vpop.f32.mrf.mxu0
        %v2135 = vadd.f32 0.0, %v2134
        %v2136 = vpop.f32.mrf.mxu0
        %v2137 = vpop.f32.mrf.mxu0
        %v2138 = vadd.f32 0.0, %v2137
        %v2139 = vpop.f32.mrf.mxu0
        %2140 = vmatprep.mubr.bf16.mxu0 0
        %2141 = vmatmul.mubr.bf16.gmra.mxu0 %v2008
        %v2142 = vpop.f32.mrf.mxu0
        %v2143 = vadd.f32 0.0, %v2142
        %v2144 = vpop.f32.mrf.mxu0
        %v2145 = vpop.f32.mrf.mxu0
        %v2146 = vadd.f32 0.0, %v2145
        %v2147 = vpop.f32.mrf.mxu0
        %2148 = vmatprep.mubr.bf16.mxu0 0
        %2149 = vmatmul.mubr.bf16.gmra.mxu0 %v2011
        %v2150 = vpop.f32.mrf.mxu0
        %v2151 = vadd.f32 0.0, %v2150
        %v2152 = vpop.f32.mrf.mxu0
        %v2153 = vpop.f32.mrf.mxu0
        %v2154 = vadd.f32 0.0, %v2153
        %v2155 = vpop.f32.mrf.mxu0
        %2156 = vmatprep.mubr.bf16.mxu0 0
        %2157 = vmatmul.mubr.bf16.gmra.mxu0 %v2014
        %v2158 = vpop.f32.mrf.mxu0
        %v2159 = vadd.f32 0.0, %v2158
        %v2160 = vpop.f32.mrf.mxu0
        %v2161 = vpop.f32.mrf.mxu0
        %v2162 = vadd.f32 0.0, %v2161
        %v2163 = vpop.f32.mrf.mxu0
        %2164 = vmatprep.mubr.bf16.mxu0 0
        %2165 = vmatmul.mubr.bf16.gmra.mxu0 %v2017
        %v2166 = vpop.f32.mrf.mxu0
        %v2167 = vadd.f32 0.0, %v2166
        %v2168 = vpop.f32.mrf.mxu0
        %v2169 = vpop.f32.mrf.mxu0
        %v2170 = vadd.f32 0.0, %v2169
        %v2171 = vpop.f32.mrf.mxu0
        %2172 = vmatprep.mubr.bf16.mxu0 0
        %2173 = vmatmul.mubr.bf16.gmra.mxu0 %v2020
        %v2174 = vpop.f32.mrf.mxu0
        %v2175 = vadd.f32 0.0, %v2174
        %v2176 = vpop.f32.mrf.mxu0
        %v2177 = vpop.f32.mrf.mxu0
        %v2178 = vadd.f32 0.0, %v2177
        %v2179 = vpop.f32.mrf.mxu0
        %2180 = vmatprep.mubr.bf16.mxu0 0
        %2181 = vmatmul.mubr.bf16.gmra.mxu0 %v2023
        %v2182 = vpop.f32.mrf.mxu0
        %v2183 = vadd.f32 0.0, %v2182
        %v2184 = vpop.f32.mrf.mxu0
        %v2185 = vpop.f32.mrf.mxu0
        %v2186 = vadd.f32 0.0, %v2185
        %v2187 = vpop.f32.mrf.mxu0
        %2188 = vdwg.mxu0
        %v2189 = vadd.f32 %v1892, %v2063
        %v2190 = vadd.f32 %v1893, %v2066
        %v2191 = vadd.f32 %v1894, %v2071
        %v2192 = vadd.f32 %v1895, %v2074
        %v2193 = vadd.f32 %v1896, %v2079
        %v2194 = vadd.f32 %v1897, %v2082
        %v2195 = vadd.f32 %v1898, %v2087
        %v2196 = vadd.f32 %v1899, %v2090
        %v2197 = vadd.f32 %v1900, %v2095
        %v2198 = vadd.f32 %v1901, %v2098
        %v2199 = vadd.f32 %v1902, %v2103
        %v2200 = vadd.f32 %v1903, %v2106
        %v2201 = vadd.f32 %v1904, %v2111
        %v2202 = vadd.f32 %v1905, %v2114
        %v2203 = vadd.f32 %v1906, %v2119
        %v2204 = vadd.f32 %v1907, %v2122
        %v2205 = vadd.f32 %v1908, %v2127
        %v2206 = vadd.f32 %v1909, %v2130
        %v2207 = vadd.f32 %v1910, %v2135
        %v2208 = vadd.f32 %v1911, %v2138
        %v2209 = vadd.f32 %v1912, %v2143
        %v2210 = vadd.f32 %v1913, %v2146
        %v2211 = vadd.f32 %v1914, %v2151
        %v2212 = vadd.f32 %v1915, %v2154
        %v2213 = vadd.f32 %v1916, %v2159
        %v2214 = vadd.f32 %v1917, %v2162
        %v2215 = vadd.f32 %v1918, %v2167
        %v2216 = vadd.f32 %v1919, %v2170
        %v2217 = vadd.f32 %v1920, %v2175
        %v2218 = vadd.f32 %v1921, %v2178
        %v2219 = vadd.f32 %v1922, %v2183
        %v2220 = vadd.f32 %v1923, %v2186
        %v2221 = vld [vmem:[%s1926 + $0x1] sm:$0xff]
        %v2222 = vld [vmem:[%s1926 + $0x9] sm:$0xff]
        %v2223 = vld [vmem:[%s1926 + $0x19] sm:$0xff]
        %v2224 = vld [vmem:[%s1926 + $0x21] sm:$0xff]
        %v2225 = vld [vmem:[%s1926 + $0x31] sm:$0xff]
        %v2226 = vld [vmem:[%s1926 + $0x39] sm:$0xff]
        %v2227 = vld [vmem:[%s1926 + $0x49] sm:$0xff]
        %v2228 = vld [vmem:[%s1926 + $0x51] sm:$0xff]
        %v2229 = vld [vmem:[%s1926 + $0x61] sm:$0xff]
        %v2230 = vld [vmem:[%s1926 + $0x69] sm:$0xff]
        %v2231 = vld [vmem:[%s1926 + $0x79] sm:$0xff]
        %v2232 = vld [vmem:[%s1926 + $0x81] sm:$0xff]
        %v2233 = vld [vmem:[%s1926 + $0x91] sm:$0xff]
        %v2234 = vld [vmem:[%s1926 + $0x99] sm:$0xff]
        %v2235 = vld [vmem:[%s1926 + $0xa9] sm:$0xff]
        %v2236 = vld [vmem:[%s1926 + $0xb1] sm:$0xff]
        %v2237 = vld [vmem:[%s1926 + $0xc1] sm:$0xff]
        %v2238 = vld [vmem:[%s1926 + $0xc9] sm:$0xff]
        %v2239 = vld [vmem:[%s1926 + $0xd9] sm:$0xff]
        %v2240 = vld [vmem:[%s1926 + $0xe1] sm:$0xff]
        %v2241 = vld [vmem:[%s1926 + $0xf1] sm:$0xff]
        %v2242 = vld [vmem:[%s1926 + $0xf9] sm:$0xff]
        %v2243 = vld [vmem:[%s1926 + $0x109] sm:$0xff]
        %v2244 = vld [vmem:[%s1926 + $0x111] sm:$0xff]
        %v2245 = vld [vmem:[%s1926 + $0x121] sm:$0xff]
        %v2246 = vld [vmem:[%s1926 + $0x129] sm:$0xff]
        %v2247 = vld [vmem:[%s1926 + $0x139] sm:$0xff]
        %v2248 = vld [vmem:[%s1926 + $0x141] sm:$0xff]
        %v2249 = vld [vmem:[%s1926 + $0x151] sm:$0xff]
        %v2250 = vld [vmem:[%s1926 + $0x159] sm:$0xff]
        %v2251 = vld [vmem:[%s1926 + $0x169] sm:$0xff]
        %v2252 = vld [vmem:[%s1926 + $0x171] sm:$0xff]
        %v2253 = vpack.c.bf16 %v2222, %v2221
        %v2254 = vpack.c.bf16 %v2224, %v2223
        %v2255 = vpack.c.bf16 %v2226, %v2225
        %v2256 = vpack.c.bf16 %v2228, %v2227
        %v2257 = vpack.c.bf16 %v2230, %v2229
        %v2258 = vpack.c.bf16 %v2232, %v2231
        %v2259 = vpack.c.bf16 %v2234, %v2233
        %v2260 = vpack.c.bf16 %v2236, %v2235
        %v2261 = vpack.c.bf16 %v2238, %v2237
        %v2262 = vpack.c.bf16 %v2240, %v2239
        %v2263 = vpack.c.bf16 %v2242, %v2241
        %v2264 = vpack.c.bf16 %v2244, %v2243
        %v2265 = vpack.c.bf16 %v2246, %v2245
        %v2266 = vpack.c.bf16 %v2248, %v2247
        %v2267 = vpack.c.bf16 %v2250, %v2249
        %v2268 = vpack.c.bf16 %v2252, %v2251
        %s2269 = scalar_lea.vmem %s1, 14
        %v2270 = vld [vmem:[%s2269] sm:$0x3]
        %v2272 = vsel %vm319, %v2253, 0
        %v2275 = vsel %vm319, %v2254, 0
        %v2278 = vsel %vm319, %v2255, 0
        %v2281 = vsel %vm319, %v2256, 0
        %v2284 = vsel %vm319, %v2257, 0
        %v2287 = vsel %vm319, %v2258, 0
        %v2290 = vsel %vm319, %v2259, 0
        %v2293 = vsel %vm319, %v2260, 0
        %v2296 = vsel %vm319, %v2261, 0
        %v2299 = vsel %vm319, %v2262, 0
        %v2302 = vsel %vm319, %v2263, 0
        %v2305 = vsel %vm319, %v2264, 0
        %v2308 = vsel %vm319, %v2265, 0
        %v2311 = vsel %vm319, %v2266, 0
        %v2314 = vsel %vm319, %v2267, 0
        %v2317 = vsel %vm319, %v2268, 0
        %v2320 = vsel %vm368, %v2270, 0
        %2322 = vmatprep.subr.bf16.mxu0 0
        %2323 = vmatpush1.bf16.msra.mxu0 0
        %2324 = vmatprep.subr.bf16.mxu0 0
        %2325 = vmatpush1.bf16.msra.mxu0 0
        %2326 = vmatprep.subr.bf16.mxu0 0
        %2327 = vmatpush1.bf16.msra.mxu0 0
        %2328 = vmatprep.subr.bf16.mxu0 0
        %2329 = vmatpush1.bf16.msra.mxu0 0
        %2330 = vmatprep.subr.bf16.mxu0 0
        %2331 = vmatpush1.bf16.msra.mxu0 0
        %2332 = vmatprep.subr.bf16.mxu0 0
        %2333 = vmatpush1.bf16.msra.mxu0 0
        %2334 = vmatprep.subr.bf16.mxu0 0
        %2335 = vmatpush1.bf16.msra.mxu0 0
        %2336 = vmatprep.subr.bf16.mxu0 0
        %2337 = vmatpush1.bf16.msra.mxu0 %v2320
        %2338 = vmatprep.subr.bf16.mxu0 0
        %2339 = vmatpush2.bf16.msra.mxu0 0
        %2340 = vmatprep.subr.bf16.mxu0 0
        %2341 = vmatpush2.bf16.msra.mxu0 0
        %2342 = vmatprep.subr.bf16.mxu0 0
        %2343 = vmatpush2.bf16.msra.mxu0 0
        %2344 = vmatprep.subr.bf16.mxu0 0
        %2345 = vmatpush2.bf16.msra.mxu0 0
        %2346 = vmatprep.subr.bf16.mxu0 0
        %2347 = vmatpush2.bf16.msra.mxu0 0
        %2348 = vmatprep.subr.bf16.mxu0 0
        %2349 = vmatpush2.bf16.msra.mxu0 0
        %2350 = vmatprep.subr.bf16.mxu0 0
        %2351 = vmatpush2.bf16.msra.mxu0 0
        %2352 = vmatprep.subr.bf16.mxu0 0
        %2353 = vmatpush2.bf16.msra.mxu0 0
        %2354 = vmatprep.mubr.bf16.mxu0 0
        %2355 = vmatmul.mubr.bf16.gmra.mxu0 %v2272
        %v2356 = vpop.f32.mrf.mxu0
        %v2357 = vadd.f32 0.0, %v2356
        %v2358 = vpop.f32.mrf.mxu0
        %v2359 = vpop.f32.mrf.mxu0
        %v2360 = vadd.f32 0.0, %v2359
        %v2361 = vpop.f32.mrf.mxu0
        %2362 = vmatprep.mubr.bf16.mxu0 0
        %2363 = vmatmul.mubr.bf16.gmra.mxu0 %v2275
        %v2364 = vpop.f32.mrf.mxu0
        %v2365 = vadd.f32 0.0, %v2364
        %v2366 = vpop.f32.mrf.mxu0
        %v2367 = vpop.f32.mrf.mxu0
        %v2368 = vadd.f32 0.0, %v2367
        %v2369 = vpop.f32.mrf.mxu0
        %2370 = vmatprep.mubr.bf16.mxu0 0
        %2371 = vmatmul.mubr.bf16.gmra.mxu0 %v2278
        %v2372 = vpop.f32.mrf.mxu0
        %v2373 = vadd.f32 0.0, %v2372
        %v2374 = vpop.f32.mrf.mxu0
        %v2375 = vpop.f32.mrf.mxu0
        %v2376 = vadd.f32 0.0, %v2375
        %v2377 = vpop.f32.mrf.mxu0
        %2378 = vmatprep.mubr.bf16.mxu0 0
        %2379 = vmatmul.mubr.bf16.gmra.mxu0 %v2281
        %v2380 = vpop.f32.mrf.mxu0
        %v2381 = vadd.f32 0.0, %v2380
        %v2382 = vpop.f32.mrf.mxu0
        %v2383 = vpop.f32.mrf.mxu0
        %v2384 = vadd.f32 0.0, %v2383
        %v2385 = vpop.f32.mrf.mxu0
        %2386 = vmatprep.mubr.bf16.mxu0 0
        %2387 = vmatmul.mubr.bf16.gmra.mxu0 %v2284
        %v2388 = vpop.f32.mrf.mxu0
        %v2389 = vadd.f32 0.0, %v2388
        %v2390 = vpop.f32.mrf.mxu0
        %v2391 = vpop.f32.mrf.mxu0
        %v2392 = vadd.f32 0.0, %v2391
        %v2393 = vpop.f32.mrf.mxu0
        %2394 = vmatprep.mubr.bf16.mxu0 0
        %2395 = vmatmul.mubr.bf16.gmra.mxu0 %v2287
        %v2396 = vpop.f32.mrf.mxu0
        %v2397 = vadd.f32 0.0, %v2396
        %v2398 = vpop.f32.mrf.mxu0
        %v2399 = vpop.f32.mrf.mxu0
        %v2400 = vadd.f32 0.0, %v2399
        %v2401 = vpop.f32.mrf.mxu0
        %2402 = vmatprep.mubr.bf16.mxu0 0
        %2403 = vmatmul.mubr.bf16.gmra.mxu0 %v2290
        %v2404 = vpop.f32.mrf.mxu0
        %v2405 = vadd.f32 0.0, %v2404
        %v2406 = vpop.f32.mrf.mxu0
        %v2407 = vpop.f32.mrf.mxu0
        %v2408 = vadd.f32 0.0, %v2407
        %v2409 = vpop.f32.mrf.mxu0
        %2410 = vmatprep.mubr.bf16.mxu0 0
        %2411 = vmatmul.mubr.bf16.gmra.mxu0 %v2293
        %v2412 = vpop.f32.mrf.mxu0
        %v2413 = vadd.f32 0.0, %v2412
        %v2414 = vpop.f32.mrf.mxu0
        %v2415 = vpop.f32.mrf.mxu0
        %v2416 = vadd.f32 0.0, %v2415
        %v2417 = vpop.f32.mrf.mxu0
        %2418 = vmatprep.mubr.bf16.mxu0 0
        %2419 = vmatmul.mubr.bf16.gmra.mxu0 %v2296
        %v2420 = vpop.f32.mrf.mxu0
        %v2421 = vadd.f32 0.0, %v2420
        %v2422 = vpop.f32.mrf.mxu0
        %v2423 = vpop.f32.mrf.mxu0
        %v2424 = vadd.f32 0.0, %v2423
        %v2425 = vpop.f32.mrf.mxu0
        %2426 = vmatprep.mubr.bf16.mxu0 0
        %2427 = vmatmul.mubr.bf16.gmra.mxu0 %v2299
        %v2428 = vpop.f32.mrf.mxu0
        %v2429 = vadd.f32 0.0, %v2428
        %v2430 = vpop.f32.mrf.mxu0
        %v2431 = vpop.f32.mrf.mxu0
        %v2432 = vadd.f32 0.0, %v2431
        %v2433 = vpop.f32.mrf.mxu0
        %2434 = vmatprep.mubr.bf16.mxu0 0
        %2435 = vmatmul.mubr.bf16.gmra.mxu0 %v2302
        %v2436 = vpop.f32.mrf.mxu0
        %v2437 = vadd.f32 0.0, %v2436
        %v2438 = vpop.f32.mrf.mxu0
        %v2439 = vpop.f32.mrf.mxu0
        %v2440 = vadd.f32 0.0, %v2439
        %v2441 = vpop.f32.mrf.mxu0
        %2442 = vmatprep.mubr.bf16.mxu0 0
        %2443 = vmatmul.mubr.bf16.gmra.mxu0 %v2305
        %v2444 = vpop.f32.mrf.mxu0
        %v2445 = vadd.f32 0.0, %v2444
        %v2446 = vpop.f32.mrf.mxu0
        %v2447 = vpop.f32.mrf.mxu0
        %v2448 = vadd.f32 0.0, %v2447
        %v2449 = vpop.f32.mrf.mxu0
        %2450 = vmatprep.mubr.bf16.mxu0 0
        %2451 = vmatmul.mubr.bf16.gmra.mxu0 %v2308
        %v2452 = vpop.f32.mrf.mxu0
        %v2453 = vadd.f32 0.0, %v2452
        %v2454 = vpop.f32.mrf.mxu0
        %v2455 = vpop.f32.mrf.mxu0
        %v2456 = vadd.f32 0.0, %v2455
        %v2457 = vpop.f32.mrf.mxu0
        %2458 = vmatprep.mubr.bf16.mxu0 0
        %2459 = vmatmul.mubr.bf16.gmra.mxu0 %v2311
        %v2460 = vpop.f32.mrf.mxu0
        %v2461 = vadd.f32 0.0, %v2460
        %v2462 = vpop.f32.mrf.mxu0
        %v2463 = vpop.f32.mrf.mxu0
        %v2464 = vadd.f32 0.0, %v2463
        %v2465 = vpop.f32.mrf.mxu0
        %2466 = vmatprep.mubr.bf16.mxu0 0
        %2467 = vmatmul.mubr.bf16.gmra.mxu0 %v2314
        %v2468 = vpop.f32.mrf.mxu0
        %v2469 = vadd.f32 0.0, %v2468
        %v2470 = vpop.f32.mrf.mxu0
        %v2471 = vpop.f32.mrf.mxu0
        %v2472 = vadd.f32 0.0, %v2471
        %v2473 = vpop.f32.mrf.mxu0
        %2474 = vmatprep.mubr.bf16.mxu0 0
        %2475 = vmatmul.mubr.bf16.gmra.mxu0 %v2317
        %v2476 = vpop.f32.mrf.mxu0
        %v2477 = vadd.f32 0.0, %v2476
        %v2478 = vpop.f32.mrf.mxu0
        %v2479 = vpop.f32.mrf.mxu0
        %v2480 = vadd.f32 0.0, %v2479
        %v2481 = vpop.f32.mrf.mxu0
        %2482 = vdwg.mxu0
        %v2483 = vadd.f32 %v2189, %v2357
        %v2484 = vadd.f32 %v2190, %v2360
        %v2485 = vadd.f32 %v2191, %v2365
        %v2486 = vadd.f32 %v2192, %v2368
        %v2487 = vadd.f32 %v2193, %v2373
        %v2488 = vadd.f32 %v2194, %v2376
        %v2489 = vadd.f32 %v2195, %v2381
        %v2490 = vadd.f32 %v2196, %v2384
        %v2491 = vadd.f32 %v2197, %v2389
        %v2492 = vadd.f32 %v2198, %v2392
        %v2493 = vadd.f32 %v2199, %v2397
        %v2494 = vadd.f32 %v2200, %v2400
        %v2495 = vadd.f32 %v2201, %v2405
        %v2496 = vadd.f32 %v2202, %v2408
        %v2497 = vadd.f32 %v2203, %v2413
        %v2498 = vadd.f32 %v2204, %v2416
        %v2499 = vadd.f32 %v2205, %v2421
        %v2500 = vadd.f32 %v2206, %v2424
        %v2501 = vadd.f32 %v2207, %v2429
        %v2502 = vadd.f32 %v2208, %v2432
        %v2503 = vadd.f32 %v2209, %v2437
        %v2504 = vadd.f32 %v2210, %v2440
        %v2505 = vadd.f32 %v2211, %v2445
        %v2506 = vadd.f32 %v2212, %v2448
        %v2507 = vadd.f32 %v2213, %v2453
        %v2508 = vadd.f32 %v2214, %v2456
        %v2509 = vadd.f32 %v2215, %v2461
        %v2510 = vadd.f32 %v2216, %v2464
        %v2511 = vadd.f32 %v2217, %v2469
        %v2512 = vadd.f32 %v2218, %v2472
        %v2513 = vadd.f32 %v2219, %v2477
        %v2514 = vadd.f32 %v2220, %v2480
        %v2515 = vld [vmem:[%s1926 + $0x2] sm:$0xff]
        %v2516 = vld [vmem:[%s1926 + $0xa] sm:$0xff]
        %v2517 = vld [vmem:[%s1926 + $0x1a] sm:$0xff]
        %v2518 = vld [vmem:[%s1926 + $0x22] sm:$0xff]
        %v2519 = vld [vmem:[%s1926 + $0x32] sm:$0xff]
        %v2520 = vld [vmem:[%s1926 + $0x3a] sm:$0xff]
        %v2521 = vld [vmem:[%s1926 + $0x4a] sm:$0xff]
        %v2522 = vld [vmem:[%s1926 + $0x52] sm:$0xff]
        %v2523 = vld [vmem:[%s1926 + $0x62] sm:$0xff]
        %v2524 = vld [vmem:[%s1926 + $0x6a] sm:$0xff]
        %v2525 = vld [vmem:[%s1926 + $0x7a] sm:$0xff]
        %v2526 = vld [vmem:[%s1926 + $0x82] sm:$0xff]
        %v2527 = vld [vmem:[%s1926 + $0x92] sm:$0xff]
        %v2528 = vld [vmem:[%s1926 + $0x9a] sm:$0xff]
        %v2529 = vld [vmem:[%s1926 + $0xaa] sm:$0xff]
        %v2530 = vld [vmem:[%s1926 + $0xb2] sm:$0xff]
        %v2531 = vld [vmem:[%s1926 + $0xc2] sm:$0xff]
        %v2532 = vld [vmem:[%s1926 + $0xca] sm:$0xff]
        %v2533 = vld [vmem:[%s1926 + $0xda] sm:$0xff]
        %v2534 = vld [vmem:[%s1926 + $0xe2] sm:$0xff]
        %v2535 = vld [vmem:[%s1926 + $0xf2] sm:$0xff]
        %v2536 = vld [vmem:[%s1926 + $0xfa] sm:$0xff]
        %v2537 = vld [vmem:[%s1926 + $0x10a] sm:$0xff]
        %v2538 = vld [vmem:[%s1926 + $0x112] sm:$0xff]
        %v2539 = vld [vmem:[%s1926 + $0x122] sm:$0xff]
        %v2540 = vld [vmem:[%s1926 + $0x12a] sm:$0xff]
        %v2541 = vld [vmem:[%s1926 + $0x13a] sm:$0xff]
        %v2542 = vld [vmem:[%s1926 + $0x142] sm:$0xff]
        %v2543 = vld [vmem:[%s1926 + $0x152] sm:$0xff]
        %v2544 = vld [vmem:[%s1926 + $0x15a] sm:$0xff]
        %v2545 = vld [vmem:[%s1926 + $0x16a] sm:$0xff]
        %v2546 = vld [vmem:[%s1926 + $0x172] sm:$0xff]
        %v2547 = vpack.c.bf16 %v2516, %v2515
        %v2548 = vpack.c.bf16 %v2518, %v2517
        %v2549 = vpack.c.bf16 %v2520, %v2519
        %v2550 = vpack.c.bf16 %v2522, %v2521
        %v2551 = vpack.c.bf16 %v2524, %v2523
        %v2552 = vpack.c.bf16 %v2526, %v2525
        %v2553 = vpack.c.bf16 %v2528, %v2527
        %v2554 = vpack.c.bf16 %v2530, %v2529
        %v2555 = vpack.c.bf16 %v2532, %v2531
        %v2556 = vpack.c.bf16 %v2534, %v2533
        %v2557 = vpack.c.bf16 %v2536, %v2535
        %v2558 = vpack.c.bf16 %v2538, %v2537
        %v2559 = vpack.c.bf16 %v2540, %v2539
        %v2560 = vpack.c.bf16 %v2542, %v2541
        %v2561 = vpack.c.bf16 %v2544, %v2543
        %v2562 = vpack.c.bf16 %v2546, %v2545
        %s2563 = scalar_lea.vmem %s1, 16
        %v2564 = vld [vmem:[%s2563] sm:$0x3]
        %v2566 = vsel %vm319, %v2547, 0
        %v2569 = vsel %vm319, %v2548, 0
        %v2572 = vsel %vm319, %v2549, 0
        %v2575 = vsel %vm319, %v2550, 0
        %v2578 = vsel %vm319, %v2551, 0
        %v2581 = vsel %vm319, %v2552, 0
        %v2584 = vsel %vm319, %v2553, 0
        %v2587 = vsel %vm319, %v2554, 0
        %v2590 = vsel %vm319, %v2555, 0
        %v2593 = vsel %vm319, %v2556, 0
        %v2596 = vsel %vm319, %v2557, 0
        %v2599 = vsel %vm319, %v2558, 0
        %v2602 = vsel %vm319, %v2559, 0
        %v2605 = vsel %vm319, %v2560, 0
        %v2608 = vsel %vm319, %v2561, 0
        %v2611 = vsel %vm319, %v2562, 0
        %v2614 = vsel %vm368, %v2564, 0
        %2616 = vmatprep.subr.bf16.mxu0 0
        %2617 = vmatpush1.bf16.msra.mxu0 0
        %2618 = vmatprep.subr.bf16.mxu0 0
        %2619 = vmatpush1.bf16.msra.mxu0 0
        %2620 = vmatprep.subr.bf16.mxu0 0
        %2621 = vmatpush1.bf16.msra.mxu0 0
        %2622 = vmatprep.subr.bf16.mxu0 0
        %2623 = vmatpush1.bf16.msra.mxu0 0
        %2624 = vmatprep.subr.bf16.mxu0 0
        %2625 = vmatpush1.bf16.msra.mxu0 0
        %2626 = vmatprep.subr.bf16.mxu0 0
        %2627 = vmatpush1.bf16.msra.mxu0 0
        %2628 = vmatprep.subr.bf16.mxu0 0
        %2629 = vmatpush1.bf16.msra.mxu0 0
        %2630 = vmatprep.subr.bf16.mxu0 0
        %2631 = vmatpush1.bf16.msra.mxu0 %v2614
        %2632 = vmatprep.subr.bf16.mxu0 0
        %2633 = vmatpush2.bf16.msra.mxu0 0
        %2634 = vmatprep.subr.bf16.mxu0 0
        %2635 = vmatpush2.bf16.msra.mxu0 0
        %2636 = vmatprep.subr.bf16.mxu0 0
        %2637 = vmatpush2.bf16.msra.mxu0 0
        %2638 = vmatprep.subr.bf16.mxu0 0
        %2639 = vmatpush2.bf16.msra.mxu0 0
        %2640 = vmatprep.subr.bf16.mxu0 0
        %2641 = vmatpush2.bf16.msra.mxu0 0
        %2642 = vmatprep.subr.bf16.mxu0 0
        %2643 = vmatpush2.bf16.msra.mxu0 0
        %2644 = vmatprep.subr.bf16.mxu0 0
        %2645 = vmatpush2.bf16.msra.mxu0 0
        %2646 = vmatprep.subr.bf16.mxu0 0
        %2647 = vmatpush2.bf16.msra.mxu0 0
        %2648 = vmatprep.mubr.bf16.mxu0 0
        %2649 = vmatmul.mubr.bf16.gmra.mxu0 %v2566
        %v2650 = vpop.f32.mrf.mxu0
        %v2651 = vadd.f32 0.0, %v2650
        %v2652 = vpop.f32.mrf.mxu0
        %v2653 = vpop.f32.mrf.mxu0
        %v2654 = vadd.f32 0.0, %v2653
        %v2655 = vpop.f32.mrf.mxu0
        %2656 = vmatprep.mubr.bf16.mxu0 0
        %2657 = vmatmul.mubr.bf16.gmra.mxu0 %v2569
        %v2658 = vpop.f32.mrf.mxu0
        %v2659 = vadd.f32 0.0, %v2658
        %v2660 = vpop.f32.mrf.mxu0
        %v2661 = vpop.f32.mrf.mxu0
        %v2662 = vadd.f32 0.0, %v2661
        %v2663 = vpop.f32.mrf.mxu0
        %2664 = vmatprep.mubr.bf16.mxu0 0
        %2665 = vmatmul.mubr.bf16.gmra.mxu0 %v2572
        %v2666 = vpop.f32.mrf.mxu0
        %v2667 = vadd.f32 0.0, %v2666
        %v2668 = vpop.f32.mrf.mxu0
        %v2669 = vpop.f32.mrf.mxu0
        %v2670 = vadd.f32 0.0, %v2669
        %v2671 = vpop.f32.mrf.mxu0
        %2672 = vmatprep.mubr.bf16.mxu0 0
        %2673 = vmatmul.mubr.bf16.gmra.mxu0 %v2575
        %v2674 = vpop.f32.mrf.mxu0
        %v2675 = vadd.f32 0.0, %v2674
        %v2676 = vpop.f32.mrf.mxu0
        %v2677 = vpop.f32.mrf.mxu0
        %v2678 = vadd.f32 0.0, %v2677
        %v2679 = vpop.f32.mrf.mxu0
        %2680 = vmatprep.mubr.bf16.mxu0 0
        %2681 = vmatmul.mubr.bf16.gmra.mxu0 %v2578
        %v2682 = vpop.f32.mrf.mxu0
        %v2683 = vadd.f32 0.0, %v2682
        %v2684 = vpop.f32.mrf.mxu0
        %v2685 = vpop.f32.mrf.mxu0
        %v2686 = vadd.f32 0.0, %v2685
        %v2687 = vpop.f32.mrf.mxu0
        %2688 = vmatprep.mubr.bf16.mxu0 0
        %2689 = vmatmul.mubr.bf16.gmra.mxu0 %v2581
        %v2690 = vpop.f32.mrf.mxu0
        %v2691 = vadd.f32 0.0, %v2690
        %v2692 = vpop.f32.mrf.mxu0
        %v2693 = vpop.f32.mrf.mxu0
        %v2694 = vadd.f32 0.0, %v2693
        %v2695 = vpop.f32.mrf.mxu0
        %2696 = vmatprep.mubr.bf16.mxu0 0
        %2697 = vmatmul.mubr.bf16.gmra.mxu0 %v2584
        %v2698 = vpop.f32.mrf.mxu0
        %v2699 = vadd.f32 0.0, %v2698
        %v2700 = vpop.f32.mrf.mxu0
        %v2701 = vpop.f32.mrf.mxu0
        %v2702 = vadd.f32 0.0, %v2701
        %v2703 = vpop.f32.mrf.mxu0
        %2704 = vmatprep.mubr.bf16.mxu0 0
        %2705 = vmatmul.mubr.bf16.gmra.mxu0 %v2587
        %v2706 = vpop.f32.mrf.mxu0
        %v2707 = vadd.f32 0.0, %v2706
        %v2708 = vpop.f32.mrf.mxu0
        %v2709 = vpop.f32.mrf.mxu0
        %v2710 = vadd.f32 0.0, %v2709
        %v2711 = vpop.f32.mrf.mxu0
        %2712 = vmatprep.mubr.bf16.mxu0 0
        %2713 = vmatmul.mubr.bf16.gmra.mxu0 %v2590
        %v2714 = vpop.f32.mrf.mxu0
        %v2715 = vadd.f32 0.0, %v2714
        %v2716 = vpop.f32.mrf.mxu0
        %v2717 = vpop.f32.mrf.mxu0
        %v2718 = vadd.f32 0.0, %v2717
        %v2719 = vpop.f32.mrf.mxu0
        %2720 = vmatprep.mubr.bf16.mxu0 0
        %2721 = vmatmul.mubr.bf16.gmra.mxu0 %v2593
        %v2722 = vpop.f32.mrf.mxu0
        %v2723 = vadd.f32 0.0, %v2722
        %v2724 = vpop.f32.mrf.mxu0
        %v2725 = vpop.f32.mrf.mxu0
        %v2726 = vadd.f32 0.0, %v2725
        %v2727 = vpop.f32.mrf.mxu0
        %2728 = vmatprep.mubr.bf16.mxu0 0
        %2729 = vmatmul.mubr.bf16.gmra.mxu0 %v2596
        %v2730 = vpop.f32.mrf.mxu0
        %v2731 = vadd.f32 0.0, %v2730
        %v2732 = vpop.f32.mrf.mxu0
        %v2733 = vpop.f32.mrf.mxu0
        %v2734 = vadd.f32 0.0, %v2733
        %v2735 = vpop.f32.mrf.mxu0
        %2736 = vmatprep.mubr.bf16.mxu0 0
        %2737 = vmatmul.mubr.bf16.gmra.mxu0 %v2599
        %v2738 = vpop.f32.mrf.mxu0
        %v2739 = vadd.f32 0.0, %v2738
        %v2740 = vpop.f32.mrf.mxu0
        %v2741 = vpop.f32.mrf.mxu0
        %v2742 = vadd.f32 0.0, %v2741
        %v2743 = vpop.f32.mrf.mxu0
        %2744 = vmatprep.mubr.bf16.mxu0 0
        %2745 = vmatmul.mubr.bf16.gmra.mxu0 %v2602
        %v2746 = vpop.f32.mrf.mxu0
        %v2747 = vadd.f32 0.0, %v2746
        %v2748 = vpop.f32.mrf.mxu0
        %v2749 = vpop.f32.mrf.mxu0
        %v2750 = vadd.f32 0.0, %v2749
        %v2751 = vpop.f32.mrf.mxu0
        %2752 = vmatprep.mubr.bf16.mxu0 0
        %2753 = vmatmul.mubr.bf16.gmra.mxu0 %v2605
        %v2754 = vpop.f32.mrf.mxu0
        %v2755 = vadd.f32 0.0, %v2754
        %v2756 = vpop.f32.mrf.mxu0
        %v2757 = vpop.f32.mrf.mxu0
        %v2758 = vadd.f32 0.0, %v2757
        %v2759 = vpop.f32.mrf.mxu0
        %2760 = vmatprep.mubr.bf16.mxu0 0
        %2761 = vmatmul.mubr.bf16.gmra.mxu0 %v2608
        %v2762 = vpop.f32.mrf.mxu0
        %v2763 = vadd.f32 0.0, %v2762
        %v2764 = vpop.f32.mrf.mxu0
        %v2765 = vpop.f32.mrf.mxu0
        %v2766 = vadd.f32 0.0, %v2765
        %v2767 = vpop.f32.mrf.mxu0
        %2768 = vmatprep.mubr.bf16.mxu0 0
        %2769 = vmatmul.mubr.bf16.gmra.mxu0 %v2611
        %v2770 = vpop.f32.mrf.mxu0
        %v2771 = vadd.f32 0.0, %v2770
        %v2772 = vpop.f32.mrf.mxu0
        %v2773 = vpop.f32.mrf.mxu0
        %v2774 = vadd.f32 0.0, %v2773
        %v2775 = vpop.f32.mrf.mxu0
        %2776 = vdwg.mxu0
        %v2777 = vadd.f32 %v2483, %v2651
        %v2778 = vadd.f32 %v2484, %v2654
        %v2779 = vadd.f32 %v2485, %v2659
        %v2780 = vadd.f32 %v2486, %v2662
        %v2781 = vadd.f32 %v2487, %v2667
        %v2782 = vadd.f32 %v2488, %v2670
        %v2783 = vadd.f32 %v2489, %v2675
        %v2784 = vadd.f32 %v2490, %v2678
        %v2785 = vadd.f32 %v2491, %v2683
        %v2786 = vadd.f32 %v2492, %v2686
        %v2787 = vadd.f32 %v2493, %v2691
        %v2788 = vadd.f32 %v2494, %v2694
        %v2789 = vadd.f32 %v2495, %v2699
        %v2790 = vadd.f32 %v2496, %v2702
        %v2791 = vadd.f32 %v2497, %v2707
        %v2792 = vadd.f32 %v2498, %v2710
        %v2793 = vadd.f32 %v2499, %v2715
        %v2794 = vadd.f32 %v2500, %v2718
        %v2795 = vadd.f32 %v2501, %v2723
        %v2796 = vadd.f32 %v2502, %v2726
        %v2797 = vadd.f32 %v2503, %v2731
        %v2798 = vadd.f32 %v2504, %v2734
        %v2799 = vadd.f32 %v2505, %v2739
        %v2800 = vadd.f32 %v2506, %v2742
        %v2801 = vadd.f32 %v2507, %v2747
        %v2802 = vadd.f32 %v2508, %v2750
        %v2803 = vadd.f32 %v2509, %v2755
        %v2804 = vadd.f32 %v2510, %v2758
        %v2805 = vadd.f32 %v2511, %v2763
        %v2806 = vadd.f32 %v2512, %v2766
        %v2807 = vadd.f32 %v2513, %v2771
        %v2808 = vadd.f32 %v2514, %v2774
        %2809 = vst [vmem:[%s196] sm:$0xff] %v2777
        %2810 = vst [vmem:[%s196 + $0x8] sm:$0xff] %v2778
        %2811 = vst [vmem:[%s196 + $0x10] sm:$0xff] %v2779
        %2812 = vst [vmem:[%s196 + $0x18] sm:$0xff] %v2780
        %2813 = vst [vmem:[%s196 + $0x20] sm:$0xff] %v2781
        %2814 = vst [vmem:[%s196 + $0x28] sm:$0xff] %v2782
        %2815 = vst [vmem:[%s196 + $0x30] sm:$0xff] %v2783
        %2816 = vst [vmem:[%s196 + $0x38] sm:$0xff] %v2784
        %2817 = vst [vmem:[%s196 + $0x40] sm:$0xff] %v2785
        %2818 = vst [vmem:[%s196 + $0x48] sm:$0xff] %v2786
        %2819 = vst [vmem:[%s196 + $0x50] sm:$0xff] %v2787
        %2820 = vst [vmem:[%s196 + $0x58] sm:$0xff] %v2788
        %2821 = vst [vmem:[%s196 + $0x60] sm:$0xff] %v2789
        %2822 = vst [vmem:[%s196 + $0x68] sm:$0xff] %v2790
        %2823 = vst [vmem:[%s196 + $0x70] sm:$0xff] %v2791
        %2824 = vst [vmem:[%s196 + $0x78] sm:$0xff] %v2792
        %2825 = vst [vmem:[%s196 + $0x80] sm:$0xff] %v2793
        %2826 = vst [vmem:[%s196 + $0x88] sm:$0xff] %v2794
        %2827 = vst [vmem:[%s196 + $0x90] sm:$0xff] %v2795
        %2828 = vst [vmem:[%s196 + $0x98] sm:$0xff] %v2796
        %2829 = vst [vmem:[%s196 + $0xa0] sm:$0xff] %v2797
        %2830 = vst [vmem:[%s196 + $0xa8] sm:$0xff] %v2798
        %2831 = vst [vmem:[%s196 + $0xb0] sm:$0xff] %v2799
        %2832 = vst [vmem:[%s196 + $0xb8] sm:$0xff] %v2800
        %2833 = vst [vmem:[%s196 + $0xc0] sm:$0xff] %v2801
        %2834 = vst [vmem:[%s196 + $0xc8] sm:$0xff] %v2802
        %2835 = vst [vmem:[%s196 + $0xd0] sm:$0xff] %v2803
        %2836 = vst [vmem:[%s196 + $0xd8] sm:$0xff] %v2804
        %2837 = vst [vmem:[%s196 + $0xe0] sm:$0xff] %v2805
        %2838 = vst [vmem:[%s196 + $0xe8] sm:$0xff] %v2806
        %2839 = vst [vmem:[%s196 + $0xf0] sm:$0xff] %v2807
        %2840 = vst [vmem:[%s196 + $0xf8] sm:$0xff] %v2808
        %v2841 = vld [vmem:[#allocation4] sm:$0x1]
        %v2842 = vadd.f32 %v2777, %v2778
        %v2843 = vadd.f32 %v2842, %v2779
        %v2844 = vadd.f32 %v2843, %v2780
        %v2845 = vadd.f32 %v2844, %v2781
        %v2846 = vadd.f32 %v2845, %v2782
        %v2847 = vadd.f32 %v2846, %v2783
        %v2848 = vadd.f32 %v2847, %v2784
        %v2849 = vadd.f32 %v2848, %v2785
        %v2850 = vadd.f32 %v2849, %v2786
        %v2851 = vadd.f32 %v2850, %v2787
        %v2852 = vadd.f32 %v2851, %v2788
        %v2853 = vadd.f32 %v2852, %v2789
        %v2854 = vadd.f32 %v2853, %v2790
        %v2855 = vadd.f32 %v2854, %v2791
        %v2856 = vadd.f32 %v2855, %v2792
        %v2857 = vadd.f32 %v2856, %v2793
        %v2858 = vadd.f32 %v2857, %v2794
        %v2859 = vadd.f32 %v2858, %v2795
        %v2860 = vadd.f32 %v2859, %v2796
        %v2861 = vadd.f32 %v2860, %v2797
        %v2862 = vadd.f32 %v2861, %v2798
        %v2863 = vadd.f32 %v2862, %v2799
        %v2864 = vadd.f32 %v2863, %v2800
        %v2865 = vadd.f32 %v2864, %v2801
        %v2866 = vadd.f32 %v2865, %v2802
        %v2867 = vadd.f32 %v2866, %v2803
        %v2868 = vadd.f32 %v2867, %v2804
        %v2869 = vadd.f32 %v2868, %v2805
        %v2870 = vadd.f32 %v2869, %v2806
        %v2871 = vadd.f32 %v2870, %v2807
        %v2872 = vadd.f32 %v2871, %v2808
        %v2873 = vrot.slane %v2872, 4
        %v2874 = vadd.f32 %v2872, %v2873
        %v2875 = vrot.slane %v2874, 2
        %v2876 = vadd.f32 %v2874, %v2875
        %v2877 = vrot.slane %v2876, 1
        %v2878 = vadd.f32 %v2876, %v2877
        %v2879 = vadd.f32 %v2841, %v2878
        %2880 = vst [vmem:[#allocation4] sm:$0x1] %v2879
        %v2881 = vld [vmem:[#allocation6] sm:$0x1]
        %v2882 = vmul.f32 %v2777, %v2777
        %v2883 = vmul.f32 %v2778, %v2778
        %v2884 = vmul.f32 %v2779, %v2779
        %v2885 = vmul.f32 %v2780, %v2780
        %v2886 = vmul.f32 %v2781, %v2781
        %v2887 = vmul.f32 %v2782, %v2782
        %v2888 = vmul.f32 %v2783, %v2783
        %v2889 = vmul.f32 %v2784, %v2784
        %v2890 = vmul.f32 %v2785, %v2785
        %v2891 = vmul.f32 %v2786, %v2786
        %v2892 = vmul.f32 %v2787, %v2787
        %v2893 = vmul.f32 %v2788, %v2788
        %v2894 = vmul.f32 %v2789, %v2789
        %v2895 = vmul.f32 %v2790, %v2790
        %v2896 = vmul.f32 %v2791, %v2791
        %v2897 = vmul.f32 %v2792, %v2792
        %v2898 = vmul.f32 %v2793, %v2793
        %v2899 = vmul.f32 %v2794, %v2794
        %v2900 = vmul.f32 %v2795, %v2795
        %v2901 = vmul.f32 %v2796, %v2796
        %v2902 = vmul.f32 %v2797, %v2797
        %v2903 = vmul.f32 %v2798, %v2798
        %v2904 = vmul.f32 %v2799, %v2799
        %v2905 = vmul.f32 %v2800, %v2800
        %v2906 = vmul.f32 %v2801, %v2801
        %v2907 = vmul.f32 %v2802, %v2802
        %v2908 = vmul.f32 %v2803, %v2803
        %v2909 = vmul.f32 %v2804, %v2804
        %v2910 = vmul.f32 %v2805, %v2805
        %v2911 = vmul.f32 %v2806, %v2806
        %v2912 = vmul.f32 %v2807, %v2807
        %v2913 = vmul.f32 %v2808, %v2808
        %v2914 = vadd.f32 %v2882, %v2883
        %v2915 = vadd.f32 %v2914, %v2884
        %v2916 = vadd.f32 %v2915, %v2885
        %v2917 = vadd.f32 %v2916, %v2886
        %v2918 = vadd.f32 %v2917, %v2887
        %v2919 = vadd.f32 %v2918, %v2888
        %v2920 = vadd.f32 %v2919, %v2889
        %v2921 = vadd.f32 %v2920, %v2890
        %v2922 = vadd.f32 %v2921, %v2891
        %v2923 = vadd.f32 %v2922, %v2892
        %v2924 = vadd.f32 %v2923, %v2893
        %v2925 = vadd.f32 %v2924, %v2894
        %v2926 = vadd.f32 %v2925, %v2895
        %v2927 = vadd.f32 %v2926, %v2896
        %v2928 = vadd.f32 %v2927, %v2897
        %v2929 = vadd.f32 %v2928, %v2898
        %v2930 = vadd.f32 %v2929, %v2899
        %v2931 = vadd.f32 %v2930, %v2900
        %v2932 = vadd.f32 %v2931, %v2901
        %v2933 = vadd.f32 %v2932, %v2902
        %v2934 = vadd.f32 %v2933, %v2903
        %v2935 = vadd.f32 %v2934, %v2904
        %v2936 = vadd.f32 %v2935, %v2905
        %v2937 = vadd.f32 %v2936, %v2906
        %v2938 = vadd.f32 %v2937, %v2907
        %v2939 = vadd.f32 %v2938, %v2908
        %v2940 = vadd.f32 %v2939, %v2909
        %v2941 = vadd.f32 %v2940, %v2910
        %v2942 = vadd.f32 %v2941, %v2911
        %v2943 = vadd.f32 %v2942, %v2912
        %v2944 = vadd.f32 %v2943, %v2913
        %v2945 = vrot.slane %v2944, 4
        %v2946 = vadd.f32 %v2944, %v2945
        %v2947 = vrot.slane %v2946, 2
        %v2948 = vadd.f32 %v2946, %v2947
        %v2949 = vrot.slane %v2948, 1
        %v2950 = vadd.f32 %v2948, %v2949
        %v2951 = vadd.f32 %v2881, %v2950
        %2952 = vst [vmem:[#allocation6] sm:$0x1] %v2951
        %s2953 = sand.u32 %s89, 1
        %s2954 = scalar_lea.sflag [#allocation3], %s2953
        %s2955 = sand.u32 %s89, 1
        %s2956 = smul.addr %s2955, 256
        %s2957 = scalar_lea.vmem [#allocation2], %s2956
        // Predicated region
        $region33: #{tpu_custom_call.1} parent=27 // pred_check
          %p2958 = pneg %p99
        $region34: #{tpu_custom_call.1} parent=27 // pred_check_branch
          %2960 = sbr.rel (%p2958) target = $region36
        $region35: #{tpu_custom_call.1} parent=27 // pred_region
          %s2961 = sadd.s32 %s24, %s25
          %s2962 = smul.u32 32, %s2961
          %s2964 = ssub.s32 4096, 4096
          %2965 = vsyncadd %s2954, %s2964
          %s2966 = smul.addr %s2962, 128
          %s2967 = scalar_lea.hbm %s2, %s2966
          %s2968 = sshll.u32 %s2957, 4
          %s2969 = int_to_ptr.vmem [resolvable:$true] %s2968
          %2974 = dma.vmem_to_hbm [thread:$0]  %s2969, 4096, %s2967, %s2954, 128, 128, 8
        $region36: #{tpu_custom_call.1} parent=27 // pred_fallthru
          _
        // Predicated region
        $region37: #{tpu_custom_call.1} parent=27 // pred_check
          %p2975 = pneg %p120
        $region38: #{tpu_custom_call.1} parent=27 // pred_check_branch
          %2977 = sbr.rel (%p2975) target = $region40
        $region39: #{tpu_custom_call.1} parent=27 // pred_region
          %s2979 = ssub.s32 16, 16
          %2980 = vsyncadd [#allocation5], %s2979
          %s2982 = sshll.u32 [#allocation4], 4
          %s2983 = int_to_ptr.vmem [resolvable:$true] %s2982
          %2985 = dma.vmem_to_hbm [thread:$0]  %s2983, 16, %s3, [#allocation5]
        $region40: #{tpu_custom_call.1} parent=27 // pred_fallthru
          _
        // Predicated region
        $region41: #{tpu_custom_call.1} parent=27 // pred_check
          %p2986 = pneg %p141
        $region42: #{tpu_custom_call.1} parent=27 // pred_check_branch
          %2988 = sbr.rel (%p2986) target = $region44
        $region43: #{tpu_custom_call.1} parent=27 // pred_region
          %s2990 = ssub.s32 16, 16
          %2991 = vsyncadd [#allocation5], %s2990
          %s2993 = sshll.u32 [#allocation6], 4
          %s2994 = int_to_ptr.vmem [resolvable:$true] %s2993
          %2996 = dma.vmem_to_hbm [thread:$0]  %s2994, 16, %s4, [#allocation5]
        $region44: #{tpu_custom_call.1} parent=27 // pred_fallthru
          _
        // Predicated region
        $region45: #{tpu_custom_call.1} parent=27 // pred_check
          %p2997 = pneg %p120
        $region46: #{tpu_custom_call.1} parent=27 // pred_check_branch
          %2999 = sbr.rel (%p2997) target = $region48
        $region47: #{tpu_custom_call.1} parent=27 // pred_region
          %3000 = dma.done [#allocation5], 16
        $region48: #{tpu_custom_call.1} parent=27 // pred_fallthru
          _
        // Predicated region
        $region49: #{tpu_custom_call.1} parent=27 // pred_check
          %p3001 = pneg %p141
        $region50: #{tpu_custom_call.1} parent=27 // pred_check_branch
          %3003 = sbr.rel (%p3001) target = $region52
        $region51: #{tpu_custom_call.1} parent=27 // pred_region
          %3004 = dma.done [#allocation5], 16
        $region52: #{tpu_custom_call.1} parent=27 // pred_fallthru
          _
      $region28: #{tpu_custom_call.1} parent=5 // pred_fallthru
        _
      %p3005 = scmp.le.s32.totalorder 2, %s15
      // Predicated region
      $region53: #{tpu_custom_call.1} parent=5 // pred_check
        %p3006 = pneg %p3005
      $region54: #{tpu_custom_call.1} parent=5 // pred_check_branch
        %3008 = sbr.rel (%p3006) target = $region56
      $region55: #{tpu_custom_call.1} parent=5 // pred_region
        %s3009 = ssub.s32 %s15, 2
        // Predicated region
        $region57: #{tpu_custom_call.1} parent=55 // pred_check
          %p3010 = pneg %p105
        $region58: #{tpu_custom_call.1} parent=55 // pred_check_branch
          %3012 = sbr.rel (%p3010) target = $region60
        $region59: #{tpu_custom_call.1} parent=55 // pred_region
          %s3013 = sand.u32 %s90, 1
          %s3014 = scalar_lea.sflag [#allocation3], %s3013
          %s3015 = sand.u32 %s90, 1
          %s3016 = smul.addr %s3015, 256
          %s3017 = scalar_lea.vmem [#allocation2], %s3016
          %3018 = dma.done %s3014, 4096
        $region60: #{tpu_custom_call.1} parent=55 // pred_fallthru
          _
      $region56: #{tpu_custom_call.1} parent=5 // pred_fallthru
        _
    $region6: #{tpu_custom_call.1} parent=1 // loop_footer
      %s19 = sadd.s32 1, %s15
    $region7: #{tpu_custom_call.1} parent=1 // loop_footer_branch
      %14 = sbr.rel target = $region3
    $region8: #{tpu_custom_call.1} parent=1 // loop_exit
      _
    %3019 = vsyncpa [#allocation3], 1
    %s3020 = scalar_lea.sflag [#allocation3], 1
    %3021 = vsyncpa %s3020, 1
    %3022 = vsyncpa [#allocation5], 1

</llo_original>
